<compile_context>
chip_gen: v7x
topology: tpu7x:2x2x1
jax: 0.10.0
libtpu: 0.0.40
codegen_flags: <defaults>
</compile_context>

<pallas_src>
import functools

import jax
import jax.numpy as jnp
from jax import lax
from jax.experimental import pallas as pl
from jax.experimental.pallas import tpu as pltpu

block_size = 64
n_embed = 192


def _mha_kernel(x_ref, wqkv_ref, wp_ref, bp_ref, o_ref, *,
                num_heads, head_size):
    # x_ref:    (Bblk, T, C)   bf16 activations for this grid step
    # wqkv_ref: (3, C, H*Hs)   bf16 packed q/k/v weights (q pre-scaled)
    # wp_ref:   (H*Hs, C)      bf16 projection weight
    # bp_ref:   (1, C)         f32 projection bias
    # o_ref:    (Bblk, T, C)   f32 output
    Bblk, T, C = x_ref.shape
    Hs = head_size
    D = num_heads * Hs
    M = Bblk * T

    x2 = x_ref[...].reshape(M, C)                       # (M, C) bf16, free

    # Fused lane-dense QKV projections: three (M, C) x (C, D) MXU matmuls.
    q = jnp.dot(x2, wqkv_ref[0], preferred_element_type=jnp.float32)
    k = jnp.dot(x2, wqkv_ref[1], preferred_element_type=jnp.float32)
    v = jnp.dot(x2, wqkv_ref[2], preferred_element_type=jnp.float32)
    q3 = q.astype(jnp.bfloat16).reshape(Bblk, T, D)
    k3 = k.astype(jnp.bfloat16).reshape(Bblk, T, D)
    v3 = v.astype(jnp.bfloat16).reshape(Bblk, T, D)

    # Static causal mask (hoisted out of the head loop).
    row = lax.broadcasted_iota(jnp.int32, (T, T), 0)
    col = lax.broadcasted_iota(jnp.int32, (T, T), 1)
    causal = (col <= row)[None, :, :]                   # (1, T, T)

    # Lane-dense output accumulator, initialized with the projection bias.
    acc = jnp.broadcast_to(bp_ref[...], (M, C)).astype(jnp.float32)

    for h in range(num_heads):                          # small static loop
        sl = slice(h * Hs, (h + 1) * Hs)
        qh = q3[:, :, sl]                               # (Bblk, T, Hs)
        kh = k3[:, :, sl]
        vh = v3[:, :, sl]

        # QK^T (scale already folded into the Q weight); no explicit transpose.
        s = jnp.einsum('bqd,bkd->bqk', qh, kh,
                       preferred_element_type=jnp.float32)
        s = jnp.where(causal, s, -jnp.inf)

        # Numerically stable softmax in f32; denominator via EUP reciprocal.
        m = jnp.max(s, axis=-1, keepdims=True)
        p = jnp.exp(s - m)
        p = p * pl.reciprocal(jnp.sum(p, axis=-1, keepdims=True), approx=True)

        ho = jnp.einsum('bqk,bkd->bqd', p.astype(jnp.bfloat16), vh,
                        preferred_element_type=jnp.float32)   # (Bblk, T, Hs)

        # Per-head projection; wp row-slice is sublane-aligned (Hs % 8 == 0).
        acc = acc + jnp.dot(ho.reshape(M, Hs).astype(jnp.bfloat16),
                            wp_ref[sl, :],
                            preferred_element_type=jnp.float32)

    o_ref[...] = acc.reshape(Bblk, T, C).astype(o_ref.dtype)


def _pack_qkv(w, scale=1.0):
    """(H, C, Hs) per-head weights -> lane-dense (C, H*Hs), optionally scaled."""
    H, C, Hs = w.shape
    return (jnp.transpose(w, (1, 0, 2)).reshape(C, H * Hs) * scale)


def multi_head_attention(x, wq, wk, wv, wp, bp, *, num_heads, head_size,
                         batch_block=1):
    """x: (B, T, C); per-head weights (H, C, Hs); returns (B, T, C) f32."""
    B, T, C = x.shape
    H, _, Hs = wq.shape
    D = H * Hs
    assert H == num_heads and Hs == head_size and C == n_embed
    assert B % batch_block == 0, "batch must be divisible by batch_block"
    Bblk = batch_block
    scale = Hs ** -0.5

    # Pack weights lane-dense; fold softmax scale into Q; cast MXU operands
    # to bf16 (halves weight/activation HBM traffic).
    wqkv = jnp.stack([_pack_qkv(wq, scale), _pack_qkv(wk), _pack_qkv(wv)],
                     axis=0).astype(jnp.bfloat16)        # (3, C, D)
    wp_b = wp.astype(jnp.bfloat16)                       # (D, C)
    bp2 = bp.reshape(1, C).astype(jnp.float32)
    x_b = x.astype(jnp.bfloat16)

    kernel = functools.partial(_mha_kernel, num_heads=num_heads,
                               head_size=head_size)

    return pl.pallas_call(
        kernel,
        out_shape=jax.ShapeDtypeStruct((B, T, C), jnp.float32),
        grid_spec=pltpu.PrefetchScalarGridSpec(
            num_scalar_prefetch=0,
            grid=(B // Bblk,),
            in_specs=[
                pl.BlockSpec((Bblk, T, C), lambda b: (b, 0, 0)),   # x
                pl.BlockSpec((3, C, D), lambda b: (0, 0, 0)),      # wqkv
                pl.BlockSpec((D, C), lambda b: (0, 0)),            # wp
                pl.BlockSpec((1, C), lambda b: (0, 0)),            # bias
            ],
            out_specs=pl.BlockSpec((Bblk, T, C), lambda b: (b, 0, 0)),
        ),
        compiler_params=pltpu.CompilerParams(
            dimension_semantics=("parallel",)),
    )(x_b, wqkv, wp_b, bp2)


def _reference(x, wq, wk, wv, wp, bp):
    """Pure-JAX f32 reference of the PyTorch forward (eval mode)."""
    B, T, C = x.shape
    H, _, Hs = wq.shape
    outs = []
    causal = jnp.tril(jnp.ones((T, T), dtype=bool))
    for h in range(H):
        q = x @ wq[h]
        k = x @ wk[h]
        v = x @ wv[h]
        wei = (q @ jnp.swapaxes(k, -1, -2)) * (Hs ** -0.5)
        wei = jnp.where(causal, wei, -jnp.inf)
        wei = jax.nn.softmax(wei, axis=-1)
        outs.append(wei @ v)
    cat = jnp.concatenate(outs, axis=-1)
    return cat @ wp + bp


if __name__ == "__main__":
    B = 4                      # 2 grid steps x 2 batch elements per step
    T = block_size             # 64
    C = n_embed                # 192
    num_heads = 4
    head_size = 48             # num_heads * head_size == n_embed

    key = jax.random.PRNGKey(0)
    kx, kq, kk, kv, kp, kb = jax.random.split(key, 6)

    x = jax.random.normal(kx, (B, T, C), dtype=jnp.float32)
    # deterministic parameter init (synthetic; not a checkpoint load)
    wq = jax.random.normal(kq, (num_heads, C, head_size), jnp.float32) * 0.02
    wk = jax.random.normal(kk, (num_heads, C, head_size), jnp.float32) * 0.02
    wv = jax.random.normal(kv, (num_heads, C, head_size), jnp.float32) * 0.02
    wp = jax.random.normal(kp, (num_heads * head_size, C), jnp.float32) * 0.02
    bp = jax.random.normal(kb, (C,), jnp.float32) * 0.02

    out = multi_head_attention(x, wq, wk, wv, wp, bp,
                               num_heads=num_heads, head_size=head_size,
                               batch_block=2)
    out = jax.block_until_ready(out)

    ref = _reference(x, wq, wk, wv, wp, bp)
    assert out.shape == (B, T, C)
    err = jnp.max(jnp.abs(out - ref))
    # bf16 compute path -> looser tolerance than the pure-f32 version.
    assert jnp.allclose(out, ref, atol=2e-2, rtol=2e-2), f"max abs err {err}"

    print("KERNEL_OK")
</pallas_src>

<mosaic_0001>
module attributes {stable_mosaic.version = 11 : i64} {
  func.func @_mha_kernel(%arg0: i32, %arg1: memref<2x64x192xbf16, #tpu.memory_space<vmem>>, %arg2: memref<3x192x192xbf16, #tpu.memory_space<vmem>>, %arg3: memref<192x192xbf16, #tpu.memory_space<vmem>>, %arg4: memref<1x192xf32, #tpu.memory_space<vmem>>, %arg5: memref<2x64x192xf32, #tpu.memory_space<vmem>>) attributes {dimension_semantics = [#tpu.dimension_semantics<parallel>], iteration_bounds = array<i64: 2>, scalar_prefetch = 0 : i64, scratch_operands = 0 : i64, tpu.core_type = #tpu.core_type<tc>, window_params = [{transform_indices = @transform_0, window_bounds = array<i64: 2, 64, 192>}, {pipeline_mode = #tpu.pipeline_mode<synchronous>, transform_indices = @transform_1, window_bounds = array<i64: 3, 192, 192>}, {pipeline_mode = #tpu.pipeline_mode<synchronous>, transform_indices = @transform_2, window_bounds = array<i64: 192, 192>}, {pipeline_mode = #tpu.pipeline_mode<synchronous>, transform_indices = @transform_3, window_bounds = array<i64: 1, 192>}, {transform_indices = @transform_4, window_bounds = array<i64: 2, 64, 192>}]} {
    %c0 = arith.constant 0 : index
    %c0_0 = arith.constant 0 : index
    %c0_1 = arith.constant 0 : index
    %0 = vector.load %arg1[%c0, %c0_0, %c0_1] : memref<2x64x192xbf16, #tpu.memory_space<vmem>>, vector<2x64x192xbf16>
    %1 = vector.shape_cast %0 : vector<2x64x192xbf16> to vector<128x192xbf16>
    %c0_2 = arith.constant 0 : index
    %c0_3 = arith.constant 0 : index
    %c0_4 = arith.constant 0 : index
    %2 = vector.load %arg2[%c0_2, %c0_3, %c0_4] : memref<3x192x192xbf16, #tpu.memory_space<vmem>>, vector<1x192x192xbf16>
    %3 = vector.shape_cast %2 : vector<1x192x192xbf16> to vector<192x192xbf16>
    %cst = arith.constant dense<0.000000e+00> : vector<128x192xf32>
    %4 = tpu.matmul %1, %3, %cst {dimension_numbers = #tpu.dot_dimension_numbers<[1], [0], [0], [1], [0, 0, 1, 1], [], []>} : vector<128x192xbf16>, vector<192x192xbf16>, vector<128x192xf32> -> vector<128x192xf32>
    %c1 = arith.constant 1 : index
    %c0_5 = arith.constant 0 : index
    %c0_6 = arith.constant 0 : index
    %5 = vector.load %arg2[%c1, %c0_5, %c0_6] : memref<3x192x192xbf16, #tpu.memory_space<vmem>>, vector<1x192x192xbf16>
    %6 = vector.shape_cast %5 : vector<1x192x192xbf16> to vector<192x192xbf16>
    %cst_7 = arith.constant dense<0.000000e+00> : vector<128x192xf32>
    %7 = tpu.matmul %1, %6, %cst_7 {dimension_numbers = #tpu.dot_dimension_numbers<[1], [0], [0], [1], [0, 0, 1, 1], [], []>} : vector<128x192xbf16>, vector<192x192xbf16>, vector<128x192xf32> -> vector<128x192xf32>
    %c2 = arith.constant 2 : index
    %c0_8 = arith.constant 0 : index
    %c0_9 = arith.constant 0 : index
    %8 = vector.load %arg2[%c2, %c0_8, %c0_9] : memref<3x192x192xbf16, #tpu.memory_space<vmem>>, vector<1x192x192xbf16>
    %9 = vector.shape_cast %8 : vector<1x192x192xbf16> to vector<192x192xbf16>
    %cst_10 = arith.constant dense<0.000000e+00> : vector<128x192xf32>
    %10 = tpu.matmul %1, %9, %cst_10 {dimension_numbers = #tpu.dot_dimension_numbers<[1], [0], [0], [1], [0, 0, 1, 1], [], []>} : vector<128x192xbf16>, vector<192x192xbf16>, vector<128x192xf32> -> vector<128x192xf32>
    %11 = arith.truncf %4 : vector<128x192xf32> to vector<128x192xbf16>
    %12 = vector.shape_cast %11 : vector<128x192xbf16> to vector<2x64x192xbf16>
    %13 = arith.truncf %7 : vector<128x192xf32> to vector<128x192xbf16>
    %14 = vector.shape_cast %13 : vector<128x192xbf16> to vector<2x64x192xbf16>
    %15 = arith.truncf %10 : vector<128x192xf32> to vector<128x192xbf16>
    %16 = vector.shape_cast %15 : vector<128x192xbf16> to vector<2x64x192xbf16>
    %17 = tpu.iota {dimensions = array<i32: 0>} : vector<64x64xi32>
    %18 = tpu.iota {dimensions = array<i32: 1>} : vector<64x64xi32>
    %19 = arith.cmpi sle, %18, %17 : vector<64x64xi32>
    %20 = vector.shape_cast %19 : vector<64x64xi1> to vector<1x64x64xi1>
    %c0_11 = arith.constant 0 : index
    %c0_12 = arith.constant 0 : index
    %21 = vector.load %arg4[%c0_11, %c0_12] : memref<1x192xf32, #tpu.memory_space<vmem>>, vector<1x192xf32>
    %22 = vector.shape_cast %21 : vector<1x192xf32> to vector<1x192xf32>
    %23 = vector.broadcast %22 : vector<1x192xf32> to vector<128x192xf32>
    %24 = vector.extract_strided_slice %12 {offsets = [0, 0, 0], sizes = [2, 64, 48], strides = [1, 1, 1]} : vector<2x64x192xbf16> to vector<2x64x48xbf16>
    %25 = vector.extract_strided_slice %14 {offsets = [0, 0, 0], sizes = [2, 64, 48], strides = [1, 1, 1]} : vector<2x64x192xbf16> to vector<2x64x48xbf16>
    %26 = vector.extract_strided_slice %16 {offsets = [0, 0, 0], sizes = [2, 64, 48], strides = [1, 1, 1]} : vector<2x64x192xbf16> to vector<2x64x48xbf16>
    "tpu.trace_start"() <{level = 10 : i32, message = "bqd,bkd->bqk"}> : () -> ()
    %cst_13 = arith.constant dense<0.000000e+00> : vector<2x64x64xf32>
    %27 = tpu.matmul %24, %25, %cst_13 {dimension_numbers = #tpu.dot_dimension_numbers<[2], [2], [1], [1], [0, 0, 0, 1, 1, 1], [0], [0]>} : vector<2x64x48xbf16>, vector<2x64x48xbf16>, vector<2x64x64xf32> -> vector<2x64x64xf32>
    %cst_14 = arith.constant 0xFF800000 : f32
    "tpu.trace_stop"() : () -> ()
    %28 = vector.shape_cast %20 : vector<1x64x64xi1> to vector<1x64x64xi1>
    %29 = vector.broadcast %28 : vector<1x64x64xi1> to vector<2x64x64xi1>
    %30 = vector.broadcast %cst_14 : f32 to vector<2x64x64xf32>
    %31 = arith.select %29, %27, %30 : vector<2x64x64xi1>, vector<2x64x64xf32>
    %cst_15 = arith.constant dense<0xFF800000> : vector<2x64xf32>
    %32 = vector.multi_reduction <maximumf>, %31, %cst_15 [2] : vector<2x64x64xf32> to vector<2x64xf32>
    %33 = vector.shape_cast %32 : vector<2x64xf32> to vector<2x64x1xf32>
    %34 = vector.broadcast %33 : vector<2x64x1xf32> to vector<2x64x64xf32>
    %35 = arith.subf %31, %34 : vector<2x64x64xf32>
    %36 = math.exp %35 : vector<2x64x64xf32>
    %cst_16 = arith.constant dense<0.000000e+00> : vector<2x64xf32>
    %37 = vector.multi_reduction <add>, %36, %cst_16 [2] : vector<2x64x64xf32> to vector<2x64xf32>
    %38 = vector.shape_cast %37 : vector<2x64xf32> to vector<2x64x1xf32>
    %39 = tpu.reciprocal %38 {approx = true} : vector<2x64x1xf32> -> vector<2x64x1xf32>
    %40 = vector.broadcast %39 : vector<2x64x1xf32> to vector<2x64x64xf32>
    %41 = arith.mulf %36, %40 : vector<2x64x64xf32>
    %42 = arith.truncf %41 : vector<2x64x64xf32> to vector<2x64x64xbf16>
    "tpu.trace_start"() <{level = 10 : i32, message = "bqk,bkd->bqd"}> : () -> ()
    %cst_17 = arith.constant dense<0.000000e+00> : vector<2x64x48xf32>
    %43 = tpu.matmul %42, %26, %cst_17 {dimension_numbers = #tpu.dot_dimension_numbers<[2], [1], [1], [2], [0, 0, 0, 1, 1, 2], [0], [0]>} : vector<2x64x64xbf16>, vector<2x64x48xbf16>, vector<2x64x48xf32> -> vector<2x64x48xf32>
    "tpu.trace_stop"() : () -> ()
    %44 = vector.shape_cast %43 : vector<2x64x48xf32> to vector<128x48xf32>
    %45 = arith.truncf %44 : vector<128x48xf32> to vector<128x48xbf16>
    %c0_18 = arith.constant 0 : index
    %c0_19 = arith.constant 0 : index
    %46 = vector.load %arg3[%c0_18, %c0_19] : memref<192x192xbf16, #tpu.memory_space<vmem>>, vector<48x192xbf16>
    %cst_20 = arith.constant dense<0.000000e+00> : vector<128x192xf32>
    %47 = tpu.matmul %45, %46, %cst_20 {dimension_numbers = #tpu.dot_dimension_numbers<[1], [0], [0], [1], [0, 0, 1, 1], [], []>} : vector<128x48xbf16>, vector<48x192xbf16>, vector<128x192xf32> -> vector<128x192xf32>
    %48 = arith.addf %23, %47 : vector<128x192xf32>
    %49 = vector.extract_strided_slice %12 {offsets = [0, 0, 48], sizes = [2, 64, 48], strides = [1, 1, 1]} : vector<2x64x192xbf16> to vector<2x64x48xbf16>
    %50 = vector.extract_strided_slice %14 {offsets = [0, 0, 48], sizes = [2, 64, 48], strides = [1, 1, 1]} : vector<2x64x192xbf16> to vector<2x64x48xbf16>
    %51 = vector.extract_strided_slice %16 {offsets = [0, 0, 48], sizes = [2, 64, 48], strides = [1, 1, 1]} : vector<2x64x192xbf16> to vector<2x64x48xbf16>
    "tpu.trace_start"() <{level = 10 : i32, message = "bqd,bkd->bqk"}> : () -> ()
    %cst_21 = arith.constant dense<0.000000e+00> : vector<2x64x64xf32>
    %52 = tpu.matmul %49, %50, %cst_21 {dimension_numbers = #tpu.dot_dimension_numbers<[2], [2], [1], [1], [0, 0, 0, 1, 1, 1], [0], [0]>} : vector<2x64x48xbf16>, vector<2x64x48xbf16>, vector<2x64x64xf32> -> vector<2x64x64xf32>
    %cst_22 = arith.constant 0xFF800000 : f32
    "tpu.trace_stop"() : () -> ()
    %53 = vector.shape_cast %20 : vector<1x64x64xi1> to vector<1x64x64xi1>
    %54 = vector.broadcast %53 : vector<1x64x64xi1> to vector<2x64x64xi1>
    %55 = vector.broadcast %cst_22 : f32 to vector<2x64x64xf32>
    %56 = arith.select %54, %52, %55 : vector<2x64x64xi1>, vector<2x64x64xf32>
    %cst_23 = arith.constant dense<0xFF800000> : vector<2x64xf32>
    %57 = vector.multi_reduction <maximumf>, %56, %cst_23 [2] : vector<2x64x64xf32> to vector<2x64xf32>
    %58 = vector.shape_cast %57 : vector<2x64xf32> to vector<2x64x1xf32>
    %59 = vector.broadcast %58 : vector<2x64x1xf32> to vector<2x64x64xf32>
    %60 = arith.subf %56, %59 : vector<2x64x64xf32>
    %61 = math.exp %60 : vector<2x64x64xf32>
    %cst_24 = arith.constant dense<0.000000e+00> : vector<2x64xf32>
    %62 = vector.multi_reduction <add>, %61, %cst_24 [2] : vector<2x64x64xf32> to vector<2x64xf32>
    %63 = vector.shape_cast %62 : vector<2x64xf32> to vector<2x64x1xf32>
    %64 = tpu.reciprocal %63 {approx = true} : vector<2x64x1xf32> -> vector<2x64x1xf32>
    %65 = vector.broadcast %64 : vector<2x64x1xf32> to vector<2x64x64xf32>
    %66 = arith.mulf %61, %65 : vector<2x64x64xf32>
    %67 = arith.truncf %66 : vector<2x64x64xf32> to vector<2x64x64xbf16>
    "tpu.trace_start"() <{level = 10 : i32, message = "bqk,bkd->bqd"}> : () -> ()
    %cst_25 = arith.constant dense<0.000000e+00> : vector<2x64x48xf32>
    %68 = tpu.matmul %67, %51, %cst_25 {dimension_numbers = #tpu.dot_dimension_numbers<[2], [1], [1], [2], [0, 0, 0, 1, 1, 2], [0], [0]>} : vector<2x64x64xbf16>, vector<2x64x48xbf16>, vector<2x64x48xf32> -> vector<2x64x48xf32>
    "tpu.trace_stop"() : () -> ()
    %69 = vector.shape_cast %68 : vector<2x64x48xf32> to vector<128x48xf32>
    %70 = arith.truncf %69 : vector<128x48xf32> to vector<128x48xbf16>
    %c48 = arith.constant 48 : index
    %c0_26 = arith.constant 0 : index
    %71 = vector.load %arg3[%c48, %c0_26] : memref<192x192xbf16, #tpu.memory_space<vmem>>, vector<48x192xbf16>
    %cst_27 = arith.constant dense<0.000000e+00> : vector<128x192xf32>
    %72 = tpu.matmul %70, %71, %cst_27 {dimension_numbers = #tpu.dot_dimension_numbers<[1], [0], [0], [1], [0, 0, 1, 1], [], []>} : vector<128x48xbf16>, vector<48x192xbf16>, vector<128x192xf32> -> vector<128x192xf32>
    %73 = arith.addf %48, %72 : vector<128x192xf32>
    %74 = vector.extract_strided_slice %12 {offsets = [0, 0, 96], sizes = [2, 64, 48], strides = [1, 1, 1]} : vector<2x64x192xbf16> to vector<2x64x48xbf16>
    %75 = vector.extract_strided_slice %14 {offsets = [0, 0, 96], sizes = [2, 64, 48], strides = [1, 1, 1]} : vector<2x64x192xbf16> to vector<2x64x48xbf16>
    %76 = vector.extract_strided_slice %16 {offsets = [0, 0, 96], sizes = [2, 64, 48], strides = [1, 1, 1]} : vector<2x64x192xbf16> to vector<2x64x48xbf16>
    "tpu.trace_start"() <{level = 10 : i32, message = "bqd,bkd->bqk"}> : () -> ()
    %cst_28 = arith.constant dense<0.000000e+00> : vector<2x64x64xf32>
    %77 = tpu.matmul %74, %75, %cst_28 {dimension_numbers = #tpu.dot_dimension_numbers<[2], [2], [1], [1], [0, 0, 0, 1, 1, 1], [0], [0]>} : vector<2x64x48xbf16>, vector<2x64x48xbf16>, vector<2x64x64xf32> -> vector<2x64x64xf32>
    %cst_29 = arith.constant 0xFF800000 : f32
    "tpu.trace_stop"() : () -> ()
    %78 = vector.shape_cast %20 : vector<1x64x64xi1> to vector<1x64x64xi1>
    %79 = vector.broadcast %78 : vector<1x64x64xi1> to vector<2x64x64xi1>
    %80 = vector.broadcast %cst_29 : f32 to vector<2x64x64xf32>
    %81 = arith.select %79, %77, %80 : vector<2x64x64xi1>, vector<2x64x64xf32>
    %cst_30 = arith.constant dense<0xFF800000> : vector<2x64xf32>
    %82 = vector.multi_reduction <maximumf>, %81, %cst_30 [2] : vector<2x64x64xf32> to vector<2x64xf32>
    %83 = vector.shape_cast %82 : vector<2x64xf32> to vector<2x64x1xf32>
    %84 = vector.broadcast %83 : vector<2x64x1xf32> to vector<2x64x64xf32>
    %85 = arith.subf %81, %84 : vector<2x64x64xf32>
    %86 = math.exp %85 : vector<2x64x64xf32>
    %cst_31 = arith.constant dense<0.000000e+00> : vector<2x64xf32>
    %87 = vector.multi_reduction <add>, %86, %cst_31 [2] : vector<2x64x64xf32> to vector<2x64xf32>
    %88 = vector.shape_cast %87 : vector<2x64xf32> to vector<2x64x1xf32>
    %89 = tpu.reciprocal %88 {approx = true} : vector<2x64x1xf32> -> vector<2x64x1xf32>
    %90 = vector.broadcast %89 : vector<2x64x1xf32> to vector<2x64x64xf32>
    %91 = arith.mulf %86, %90 : vector<2x64x64xf32>
    %92 = arith.truncf %91 : vector<2x64x64xf32> to vector<2x64x64xbf16>
    "tpu.trace_start"() <{level = 10 : i32, message = "bqk,bkd->bqd"}> : () -> ()
    %cst_32 = arith.constant dense<0.000000e+00> : vector<2x64x48xf32>
    %93 = tpu.matmul %92, %76, %cst_32 {dimension_numbers = #tpu.dot_dimension_numbers<[2], [1], [1], [2], [0, 0, 0, 1, 1, 2], [0], [0]>} : vector<2x64x64xbf16>, vector<2x64x48xbf16>, vector<2x64x48xf32> -> vector<2x64x48xf32>
    "tpu.trace_stop"() : () -> ()
    %94 = vector.shape_cast %93 : vector<2x64x48xf32> to vector<128x48xf32>
    %95 = arith.truncf %94 : vector<128x48xf32> to vector<128x48xbf16>
    %c96 = arith.constant 96 : index
    %c0_33 = arith.constant 0 : index
    %96 = vector.load %arg3[%c96, %c0_33] : memref<192x192xbf16, #tpu.memory_space<vmem>>, vector<48x192xbf16>
    %cst_34 = arith.constant dense<0.000000e+00> : vector<128x192xf32>
    %97 = tpu.matmul %95, %96, %cst_34 {dimension_numbers = #tpu.dot_dimension_numbers<[1], [0], [0], [1], [0, 0, 1, 1], [], []>} : vector<128x48xbf16>, vector<48x192xbf16>, vector<128x192xf32> -> vector<128x192xf32>
    %98 = arith.addf %73, %97 : vector<128x192xf32>
    %99 = vector.extract_strided_slice %12 {offsets = [0, 0, 144], sizes = [2, 64, 48], strides = [1, 1, 1]} : vector<2x64x192xbf16> to vector<2x64x48xbf16>
    %100 = vector.extract_strided_slice %14 {offsets = [0, 0, 144], sizes = [2, 64, 48], strides = [1, 1, 1]} : vector<2x64x192xbf16> to vector<2x64x48xbf16>
    %101 = vector.extract_strided_slice %16 {offsets = [0, 0, 144], sizes = [2, 64, 48], strides = [1, 1, 1]} : vector<2x64x192xbf16> to vector<2x64x48xbf16>
    "tpu.trace_start"() <{level = 10 : i32, message = "bqd,bkd->bqk"}> : () -> ()
    %cst_35 = arith.constant dense<0.000000e+00> : vector<2x64x64xf32>
    %102 = tpu.matmul %99, %100, %cst_35 {dimension_numbers = #tpu.dot_dimension_numbers<[2], [2], [1], [1], [0, 0, 0, 1, 1, 1], [0], [0]>} : vector<2x64x48xbf16>, vector<2x64x48xbf16>, vector<2x64x64xf32> -> vector<2x64x64xf32>
    %cst_36 = arith.constant 0xFF800000 : f32
    "tpu.trace_stop"() : () -> ()
    %103 = vector.shape_cast %20 : vector<1x64x64xi1> to vector<1x64x64xi1>
    %104 = vector.broadcast %103 : vector<1x64x64xi1> to vector<2x64x64xi1>
    %105 = vector.broadcast %cst_36 : f32 to vector<2x64x64xf32>
    %106 = arith.select %104, %102, %105 : vector<2x64x64xi1>, vector<2x64x64xf32>
    %cst_37 = arith.constant dense<0xFF800000> : vector<2x64xf32>
    %107 = vector.multi_reduction <maximumf>, %106, %cst_37 [2] : vector<2x64x64xf32> to vector<2x64xf32>
    %108 = vector.shape_cast %107 : vector<2x64xf32> to vector<2x64x1xf32>
    %109 = vector.broadcast %108 : vector<2x64x1xf32> to vector<2x64x64xf32>
    %110 = arith.subf %106, %109 : vector<2x64x64xf32>
    %111 = math.exp %110 : vector<2x64x64xf32>
    %cst_38 = arith.constant dense<0.000000e+00> : vector<2x64xf32>
    %112 = vector.multi_reduction <add>, %111, %cst_38 [2] : vector<2x64x64xf32> to vector<2x64xf32>
    %113 = vector.shape_cast %112 : vector<2x64xf32> to vector<2x64x1xf32>
    %114 = tpu.reciprocal %113 {approx = true} : vector<2x64x1xf32> -> vector<2x64x1xf32>
    %115 = vector.broadcast %114 : vector<2x64x1xf32> to vector<2x64x64xf32>
    %116 = arith.mulf %111, %115 : vector<2x64x64xf32>
    %117 = arith.truncf %116 : vector<2x64x64xf32> to vector<2x64x64xbf16>
    "tpu.trace_start"() <{level = 10 : i32, message = "bqk,bkd->bqd"}> : () -> ()
    %cst_39 = arith.constant dense<0.000000e+00> : vector<2x64x48xf32>
    %118 = tpu.matmul %117, %101, %cst_39 {dimension_numbers = #tpu.dot_dimension_numbers<[2], [1], [1], [2], [0, 0, 0, 1, 1, 2], [0], [0]>} : vector<2x64x64xbf16>, vector<2x64x48xbf16>, vector<2x64x48xf32> -> vector<2x64x48xf32>
    "tpu.trace_stop"() : () -> ()
    %119 = vector.shape_cast %118 : vector<2x64x48xf32> to vector<128x48xf32>
    %120 = arith.truncf %119 : vector<128x48xf32> to vector<128x48xbf16>
    %c144 = arith.constant 144 : index
    %c0_40 = arith.constant 0 : index
    %121 = vector.load %arg3[%c144, %c0_40] : memref<192x192xbf16, #tpu.memory_space<vmem>>, vector<48x192xbf16>
    %cst_41 = arith.constant dense<0.000000e+00> : vector<128x192xf32>
    %122 = tpu.matmul %120, %121, %cst_41 {dimension_numbers = #tpu.dot_dimension_numbers<[1], [0], [0], [1], [0, 0, 1, 1], [], []>} : vector<128x48xbf16>, vector<48x192xbf16>, vector<128x192xf32> -> vector<128x192xf32>
    %123 = arith.addf %98, %122 : vector<128x192xf32>
    %124 = vector.shape_cast %123 : vector<128x192xf32> to vector<2x64x192xf32>
    %c0_42 = arith.constant 0 : index
    %c0_43 = arith.constant 0 : index
    %c0_44 = arith.constant 0 : index
    %125 = vector.load %arg5[%c0_42, %c0_43, %c0_44] : memref<2x64x192xf32, #tpu.memory_space<vmem>>, vector<2x64x192xf32>
    tpu.vector_store %arg5[%c0_42, %c0_43, %c0_44], %124 {strides = array<i32>} : memref<2x64x192xf32, #tpu.memory_space<vmem>>, vector<2x64x192xf32>,
    return
  }
  func.func @transform_0(%arg0: i32) -> (i32, i32, i32) {
    %c0_i32 = arith.constant 0 : i32
    %c0_i32_0 = arith.constant 0 : i32
    %c0_i32_1 = arith.constant 0 : i32
    return %arg0, %c0_i32, %c0_i32_0 : i32, i32, i32
  }
  func.func @transform_1(%arg0: i32) -> (i32, i32, i32) {
    %c0_i32 = arith.constant 0 : i32
    %c0_i32_0 = arith.constant 0 : i32
    %c0_i32_1 = arith.constant 0 : i32
    %c0_i32_2 = arith.constant 0 : i32
    return %c0_i32, %c0_i32_0, %c0_i32_1 : i32, i32, i32
  }
  func.func @transform_2(%arg0: i32) -> (i32, i32) {
    %c0_i32 = arith.constant 0 : i32
    %c0_i32_0 = arith.constant 0 : i32
    %c0_i32_1 = arith.constant 0 : i32
    return %c0_i32, %c0_i32_0 : i32, i32
  }
  func.func @transform_3(%arg0: i32) -> (i32, i32) {
    %c0_i32 = arith.constant 0 : i32
    %c0_i32_0 = arith.constant 0 : i32
    %c0_i32_1 = arith.constant 0 : i32
    return %c0_i32, %c0_i32_0 : i32, i32
  }
  func.func @transform_4(%arg0: i32) -> (i32, i32, i32) {
    %c0_i32 = arith.constant 0 : i32
    %c0_i32_0 = arith.constant 0 : i32
    %c0_i32_1 = arith.constant 0 : i32
    return %arg0, %c0_i32, %c0_i32_0 : i32, i32, i32
  }
}

</mosaic_0001>

<llo_original>
// kernel: tpu_custom_call.1
$region0: #{tpu_custom_call.1}
  #allocation0 [shape = 'u32[]', space=smem, size = 0x4, offset = 0x4, fixed_abs, tag = 'smem constant byte address 0x4 - core index']
  #allocation1 [shape = 'u32[144,128]{1,0:T(1,128)}', space=vmem, size = 0x12000, scoped, tag = 'internal scratch']
  %s0 = inlined_call_operand.hbm [shape: bf16[4,64,192], index: 0, kind: input, shape index: {}]
  %s1 = inlined_call_operand.hbm [shape: bf16[3,192,192], index: 1, kind: input, shape index: {}]
  %s2 = inlined_call_operand.hbm [shape: bf16[192,192], index: 2, kind: input, shape index: {}]
  %s3 = inlined_call_operand.vmem [shape: f32[1,192], index: 3, kind: input, shape index: {}]
  %s4 = inlined_call_operand.hbm [shape: f32[4,64,192], index: 4, kind: output, shape index: {}]
  %s5 = sld [smem:[#allocation0]]
  $region61: #{tpu_custom_call.1} parent=0
    _
  %s7 = ssub.s32 1, %s5
  %s8 = scalar_select 0, %s7, %s5
  $region1: #{tpu_custom_call.1} parent=0
    #allocation2 [shape = 'u8[131072]{0}', space=vmem, size = 0x20000, scoped, tag = 'input window, operand 0']
    #allocation3 [shape = 's32[2]{0}', space=sflag, size = 0x8, scoped, tag = 'scoped memory for tpu_custom_call.1']
    #allocation4 [shape = 's32[2]{0}', space=sflag, size = 0x8, scoped, tag = 'scoped memory for tpu_custom_call.1']
    #allocation5 [shape = 'u8[294912]{0}', space=vmem, size = 0x48000, scoped, tag = 'input window, operand 1, single buffered']
    #allocation6 [shape = 's32[1]{0}', space=sflag, size = 0x4, scoped, tag = 'scoped memory for tpu_custom_call.1']
    #allocation7 [shape = 'u8[98304]{0}', space=vmem, size = 0x18000, scoped, tag = 'input window, operand 2, single buffered']
    #allocation8 [shape = 'u8[262144]{0}', space=vmem, size = 0x40000, scoped, tag = 'output window, operand 0']
    %9 = vsyncpa [#allocation3], 0
    %s10 = scalar_lea.sflag [#allocation3], 1
    %11 = vsyncpa %s10, 0
    %12 = vsyncpa [#allocation6], 0
    %13 = vsyncpa [#allocation4], 0
    %s14 = scalar_lea.sflag [#allocation4], 1
    %15 = vsyncpa %s14, 0
    loop: start=0, step=1, limit=4
    $region2: #{tpu_custom_call.1} parent=1 // loop_pre_header
      _
    $region3: #{tpu_custom_call.1} parent=1 // loop_header
      %s17 = sphi 0, %s21
      %p18 = scmp.ge.s32.totalorder %s17, 4
      %s27 = sphi 0, %s29
      %s30 = sphi 0, %s27
      %s31 = sphi 0, %s30
      %s47 = sphi 0, %s31
      %s51 = sphi 0, %s51
      %s53 = sphi 0, %s51
      %s54 = sphi 0, %s53
      %s68 = sphi 0, %s54
      %s72 = sphi 0, %s72
      %s74 = sphi 0, %s72
      %s75 = sphi 0, %s74
      %s89 = sphi 0, %s75
      %s93 = sphi 0, %s93
      %s95 = sphi 0, %s93
      %s96 = sphi 0, %s95
      %s110 = sphi 0, %s96
      %s116 = sphi 0, %s118
      %s119 = sphi 0, %s116
      %s120 = sphi 0, %s119
      %s136 = sphi 0, %s120
    $region4: #{tpu_custom_call.1} parent=1 // loop_header_branch
      %20 = sbr.rel (%p18) target = $region8
    $region5: #{tpu_custom_call.1} parent=1 // loop_body
      %s22 = ssub.s32 %s17, 1
      %s23 = ssub.s32 %s17, 2
      %s24 = sadd.s32 %s17, 1
      %s25 = ssub.s32 %s17, %s24
      %p26 = scmp.eq.s32.totalorder %s25, 0
      %s28 = sadd.s32 %s27, 1
      %s29 = scalar_select %p26, %s27, %s28
      %p32 = pneg %p26
      %p33 = scmp.eq.s32.totalorder %s17, 1
      %p34 = por %p32, %p33
      %p35 = scmp.ne.s32.totalorder %s27, %s30
      %p36 = scmp.eq.s32.totalorder %s17, 0
      %p37 = por %p35, %p36
      %p38 = scmp.ne.s32.totalorder %s27, %s30
      %p39 = scmp.eq.s32.totalorder %s22, 1
      %p40 = por %p38, %p39
      %p41 = scmp.ne.s32.totalorder %s30, %s31
      %p42 = scmp.eq.s32.totalorder %s22, 0
      %p43 = por %p41, %p42
      %p44 = scmp.ne.s32.totalorder %s30, %s31
      %p45 = scmp.eq.s32.totalorder %s23, 1
      %p46 = por %p44, %p45
      %p48 = scmp.ne.s32.totalorder %s31, %s47
      %p49 = scmp.eq.s32.totalorder %s23, 0
      %p50 = por %p48, %p49
      %s52 = sadd.s32 %s51, 1
      %p55 = scmp.eq.s32.totalorder %s17, 1
      %p56 = scmp.ne.s32.totalorder %s51, %s53
      %p57 = scmp.eq.s32.totalorder %s17, 0
      %p58 = por %p56, %p57
      %p59 = scmp.ne.s32.totalorder %s51, %s53
      %p60 = scmp.eq.s32.totalorder %s22, 1
      %p61 = por %p59, %p60
      %p62 = scmp.ne.s32.totalorder %s53, %s54
      %p63 = scmp.eq.s32.totalorder %s22, 0
      %p64 = por %p62, %p63
      %p65 = scmp.ne.s32.totalorder %s53, %s54
      %p66 = scmp.eq.s32.totalorder %s23, 1
      %p67 = por %p65, %p66
      %p69 = scmp.ne.s32.totalorder %s54, %s68
      %p70 = scmp.eq.s32.totalorder %s23, 0
      %p71 = por %p69, %p70
      %s73 = sadd.s32 %s72, 1
      %p76 = scmp.eq.s32.totalorder %s17, 1
      %p77 = scmp.ne.s32.totalorder %s72, %s74
      %p78 = scmp.eq.s32.totalorder %s17, 0
      %p79 = por %p77, %p78
      %p80 = scmp.ne.s32.totalorder %s72, %s74
      %p81 = scmp.eq.s32.totalorder %s22, 1
      %p82 = por %p80, %p81
      %p83 = scmp.ne.s32.totalorder %s74, %s75
      %p84 = scmp.eq.s32.totalorder %s22, 0
      %p85 = por %p83, %p84
      %p86 = scmp.ne.s32.totalorder %s74, %s75
      %p87 = scmp.eq.s32.totalorder %s23, 1
      %p88 = por %p86, %p87
      %p90 = scmp.ne.s32.totalorder %s75, %s89
      %p91 = scmp.eq.s32.totalorder %s23, 0
      %p92 = por %p90, %p91
      %s94 = sadd.s32 %s93, 1
      %p97 = scmp.eq.s32.totalorder %s17, 1
      %p98 = scmp.ne.s32.totalorder %s93, %s95
      %p99 = scmp.eq.s32.totalorder %s17, 0
      %p100 = por %p98, %p99
      %p101 = scmp.ne.s32.totalorder %s93, %s95
      %p102 = scmp.eq.s32.totalorder %s22, 1
      %p103 = por %p101, %p102
      %p104 = scmp.ne.s32.totalorder %s95, %s96
      %p105 = scmp.eq.s32.totalorder %s22, 0
      %p106 = por %p104, %p105
      %p107 = scmp.ne.s32.totalorder %s95, %s96
      %p108 = scmp.eq.s32.totalorder %s23, 1
      %p109 = por %p107, %p108
      %p111 = scmp.ne.s32.totalorder %s96, %s110
      %p112 = scmp.eq.s32.totalorder %s23, 0
      %p113 = por %p111, %p112
      %s114 = ssub.s32 %s17, %s24
      %p115 = scmp.eq.s32.totalorder %s114, 0
      %s117 = sadd.s32 %s116, 1
      %s118 = scalar_select %p115, %s116, %s117
      %p121 = pneg %p115
      %p122 = scmp.eq.s32.totalorder %s17, 1
      %p123 = por %p121, %p122
      %p124 = scmp.ne.s32.totalorder %s116, %s119
      %p125 = scmp.eq.s32.totalorder %s17, 0
      %p126 = por %p124, %p125
      %p127 = scmp.ne.s32.totalorder %s116, %s119
      %p128 = scmp.eq.s32.totalorder %s22, 1
      %p129 = por %p127, %p128
      %p130 = scmp.ne.s32.totalorder %s119, %s120
      %p131 = scmp.eq.s32.totalorder %s22, 0
      %p132 = por %p130, %p131
      %p133 = scmp.ne.s32.totalorder %s119, %s120
      %p134 = scmp.eq.s32.totalorder %s23, 1
      %p135 = por %p133, %p134
      %p137 = scmp.ne.s32.totalorder %s120, %s136
      %p138 = scmp.eq.s32.totalorder %s23, 0
      %p139 = por %p137, %p138
      %p140 = scmp.le.s32.totalorder 1, %s17
      %p141 = scmp.lt.s32.totalorder %s17, 3
      %p142 = pnand %p140, %p141
      %p143 = pneg %p142
      // Predicated region
      $region9: #{tpu_custom_call.1} parent=5 // pred_check
        _
      $region10: #{tpu_custom_call.1} parent=5 // pred_check_branch
        %145 = sbr.rel (%p142) target = $region12
      $region11: #{tpu_custom_call.1} parent=5 // pred_region
        %s146 = ssub.s32 %s17, 1
        // Predicated region
        $region13: #{tpu_custom_call.1} parent=11 // pred_check
          %p147 = pneg %p64
        $region14: #{tpu_custom_call.1} parent=11 // pred_check_branch
          %149 = sbr.rel (%p147) target = $region16
        $region15: #{tpu_custom_call.1} parent=11 // pred_region
          %s151 = ssub.s32 9216, 9216
          %152 = vsyncadd [#allocation6], %s151
          %s153 = sshll.u32 [#allocation5], 4
          %s154 = int_to_ptr.vmem [resolvable:$true] %s153
          %159 = dma.hbm_to_vmem [thread:$0]  %s1, 9216, %s154, [#allocation6], 128, 128, 8
        $region16: #{tpu_custom_call.1} parent=11 // pred_fallthru
          _
        // Predicated region
        $region17: #{tpu_custom_call.1} parent=11 // pred_check
          %p160 = pneg %p85
        $region18: #{tpu_custom_call.1} parent=11 // pred_check_branch
          %162 = sbr.rel (%p160) target = $region20
        $region19: #{tpu_custom_call.1} parent=11 // pred_region
          %s164 = ssub.s32 3072, 3072
          %165 = vsyncadd [#allocation6], %s164
          %s166 = sshll.u32 [#allocation7], 4
          %s167 = int_to_ptr.vmem [resolvable:$true] %s166
          %172 = dma.hbm_to_vmem [thread:$0]  %s2, 3072, %s167, [#allocation6], 128, 128, 8
        $region20: #{tpu_custom_call.1} parent=11 // pred_fallthru
          _
        // Predicated region
        $region21: #{tpu_custom_call.1} parent=11 // pred_check
          %p173 = pneg %p106
        $region22: #{tpu_custom_call.1} parent=11 // pred_check_branch
          %175 = sbr.rel (%p173) target = $region24
        $region23: #{tpu_custom_call.1} parent=11 // pred_region
          _
        $region24: #{tpu_custom_call.1} parent=11 // pred_fallthru
          _
      $region12: #{tpu_custom_call.1} parent=5 // pred_fallthru
        _
      %p176 = scmp.lt.s32.totalorder %s17, 2
      // Predicated region
      $region25: #{tpu_custom_call.1} parent=5 // pred_check
        %p177 = pneg %p176
      $region26: #{tpu_custom_call.1} parent=5 // pred_check_branch
        %179 = sbr.rel (%p177) target = $region28
      $region27: #{tpu_custom_call.1} parent=5 // pred_region
        // Predicated region
        $region29: #{tpu_custom_call.1} parent=27 // pred_check
          %p180 = pneg %p37
        $region30: #{tpu_custom_call.1} parent=27 // pred_check_branch
          %182 = sbr.rel (%p180) target = $region32
        $region31: #{tpu_custom_call.1} parent=27 // pred_region
          %s183 = sand.u32 %s27, 1
          %s184 = scalar_lea.sflag [#allocation3], %s183
          %s185 = sand.u32 %s27, 1
          %s186 = smul.addr %s185, 128
          %s187 = scalar_lea.vmem [#allocation2], %s186
          %s188 = smul.u32 2, %s17
          %s190 = ssub.s32 2048, 2048
          %191 = vsyncadd %s184, %s190
          %s192 = smul.addr %s188, 16
          %s193 = smul.addr %s192, 64
          %s194 = scalar_lea.hbm %s0, %s193
          %s195 = sshll.u32 %s187, 4
          %s196 = int_to_ptr.vmem [resolvable:$true] %s195
          %201 = dma.hbm_to_vmem [thread:$0]  %s194, 2048, %s196, %s184, 128, 128, 8
        $region32: #{tpu_custom_call.1} parent=27 // pred_fallthru
          _
      $region28: #{tpu_custom_call.1} parent=5 // pred_fallthru
        _
      %p202 = scmp.le.s32.totalorder 1, %s17
      %p203 = scmp.lt.s32.totalorder %s17, 3
      %p204 = pnand %p202, %p203
      %p205 = pneg %p204
      // Predicated region
      $region33: #{tpu_custom_call.1} parent=5 // pred_check
        _
      $region34: #{tpu_custom_call.1} parent=5 // pred_check_branch
        %207 = sbr.rel (%p204) target = $region36
      $region35: #{tpu_custom_call.1} parent=5 // pred_region
        %s208 = ssub.s32 %s17, 1
        %s209 = sand.u32 %s30, 1
        %s210 = scalar_lea.sflag [#allocation3], %s209
        %s211 = sand.u32 %s30, 1
        %s212 = smul.addr %s211, 128
        %s213 = scalar_lea.vmem [#allocation2], %s212
        // Predicated region
        $region37: #{tpu_custom_call.1} parent=35 // pred_check
          %p214 = pneg %p43
        $region38: #{tpu_custom_call.1} parent=35 // pred_check_branch
          %216 = sbr.rel (%p214) target = $region40
        $region39: #{tpu_custom_call.1} parent=35 // pred_region
          %217 = dma.done %s210, 2048
        $region40: #{tpu_custom_call.1} parent=35 // pred_fallthru
          _
        // Predicated region
        $region41: #{tpu_custom_call.1} parent=35 // pred_check
          %p218 = pneg %p64
        $region42: #{tpu_custom_call.1} parent=35 // pred_check_branch
          %220 = sbr.rel (%p218) target = $region44
        $region43: #{tpu_custom_call.1} parent=35 // pred_region
          %221 = dma.done [#allocation6], 9216
        $region44: #{tpu_custom_call.1} parent=35 // pred_fallthru
          _
        // Predicated region
        $region45: #{tpu_custom_call.1} parent=35 // pred_check
          %p222 = pneg %p85
        $region46: #{tpu_custom_call.1} parent=35 // pred_check_branch
          %224 = sbr.rel (%p222) target = $region48
        $region47: #{tpu_custom_call.1} parent=35 // pred_region
          %225 = dma.done [#allocation6], 3072
        $region48: #{tpu_custom_call.1} parent=35 // pred_fallthru
          _
        %s226 = sand.u32 %s30, 1
        %s227 = scalar_lea.sflag [#allocation3], %s226
        %s228 = sand.u32 %s30, 1
        %s229 = smul.addr %s228, 128
        %s230 = scalar_lea.vmem [#allocation2], %s229
        %p231 = pneg %p43
        %p232 = pneg %p40
        %p233 = pneg %p64
        %p234 = pneg %p61
        %p235 = pneg %p85
        %p236 = pneg %p82
        %p237 = pneg %p106
        %p238 = pneg %p103
        %p239 = pneg %p132
        %p240 = pneg %p129
        %s241 = sand.u32 %s119, 1
        %s242 = scalar_lea.sflag [#allocation4], %s241
        %s243 = sand.u32 %s119, 1
        %s244 = smul.addr %s243, 256
        %s245 = scalar_lea.vmem [#allocation8], %s244
        %s246 = smul.u32 2, %s22
        %s247 = smul.u32 2, %s22
        %v249 = vld [vmem:[%s213] sm:$0xff]
        %v250 = vld [vmem:[%s213 + $0x8] sm:$0xff]
        %v251 = vld [vmem:[%s213 + $0x10] sm:$0xff]
        %v252 = vld [vmem:[%s213 + $0x18] sm:$0xff]
        %v253 = vld [vmem:[%s213 + $0x20] sm:$0xff]
        %v254 = vld [vmem:[%s213 + $0x28] sm:$0xff]
        %v255 = vld [vmem:[%s213 + $0x30] sm:$0xff]
        %v256 = vld [vmem:[%s213 + $0x38] sm:$0xff]
        %v257 = vld [vmem:[%s213 + $0x40] sm:$0xff]
        %v258 = vld [vmem:[%s213 + $0x48] sm:$0xff]
        %v259 = vld [vmem:[%s213 + $0x50] sm:$0xff]
        %v260 = vld [vmem:[%s213 + $0x58] sm:$0xff]
        %v261 = vld [vmem:[%s213 + $0x60] sm:$0xff]
        %v262 = vld [vmem:[%s213 + $0x68] sm:$0xff]
        %v263 = vld [vmem:[%s213 + $0x70] sm:$0xff]
        %v264 = vld [vmem:[%s213 + $0x78] sm:$0xff]
        %v265 = vld [vmem:[#allocation5] sm:$0xff]
        %v266 = vld [vmem:[#allocation5 + $0x8] sm:$0xff]
        %v267 = vld [vmem:[#allocation5 + $0x10] sm:$0xff]
        %v268 = vld [vmem:[#allocation5 + $0x18] sm:$0xff]
        %v269 = vld [vmem:[#allocation5 + $0x20] sm:$0xff]
        %v270 = vld [vmem:[#allocation5 + $0x28] sm:$0xff]
        %v271 = vld [vmem:[#allocation5 + $0x30] sm:$0xff]
        %v272 = vld [vmem:[#allocation5 + $0x38] sm:$0xff]
        %v273 = vld [vmem:[#allocation5 + $0x40] sm:$0xff]
        %v274 = vld [vmem:[#allocation5 + $0x48] sm:$0xff]
        %v275 = vld [vmem:[#allocation5 + $0x50] sm:$0xff]
        %v276 = vld [vmem:[#allocation5 + $0x58] sm:$0xff]
        %v277 = vld [vmem:[#allocation5 + $0x60] sm:$0xff]
        %v278 = vld [vmem:[#allocation5 + $0x68] sm:$0xff]
        %v279 = vld [vmem:[#allocation5 + $0x70] sm:$0xff]
        %v280 = vld [vmem:[#allocation5 + $0x78] sm:$0xff]
        %v281 = vld [vmem:[#allocation5 + $0x80] sm:$0xff]
        %v282 = vld [vmem:[#allocation5 + $0x88] sm:$0xff]
        %v283 = vld [vmem:[#allocation5 + $0x90] sm:$0xff]
        %v284 = vld [vmem:[#allocation5 + $0x98] sm:$0xff]
        %v285 = vld [vmem:[#allocation5 + $0xa0] sm:$0xff]
        %v286 = vld [vmem:[#allocation5 + $0xa8] sm:$0xff]
        %v287 = vld [vmem:[#allocation5 + $0xb0] sm:$0xff]
        %v288 = vld [vmem:[#allocation5 + $0xb8] sm:$0xff]
        %v305 = vunpack.c.l.b16 %v249
        %v306 = vunpack.c.h.b16 %v249
        %v307 = vunpack.c.l.b16 %v250
        %v308 = vunpack.c.h.b16 %v250
        %v309 = vunpack.c.l.b16 %v251
        %v310 = vunpack.c.h.b16 %v251
        %v311 = vunpack.c.l.b16 %v252
        %v312 = vunpack.c.h.b16 %v252
        %v313 = vunpack.c.l.b16 %v253
        %v314 = vunpack.c.h.b16 %v253
        %v315 = vunpack.c.l.b16 %v254
        %v316 = vunpack.c.h.b16 %v254
        %v317 = vunpack.c.l.b16 %v255
        %v318 = vunpack.c.h.b16 %v255
        %v319 = vunpack.c.l.b16 %v256
        %v320 = vunpack.c.h.b16 %v256
        %v321 = vunpack.c.l.b16 %v257
        %v322 = vunpack.c.h.b16 %v257
        %v323 = vunpack.c.l.b16 %v258
        %v324 = vunpack.c.h.b16 %v258
        %v325 = vunpack.c.l.b16 %v259
        %v326 = vunpack.c.h.b16 %v259
        %v327 = vunpack.c.l.b16 %v260
        %v328 = vunpack.c.h.b16 %v260
        %v329 = vunpack.c.l.b16 %v261
        %v330 = vunpack.c.h.b16 %v261
        %v331 = vunpack.c.l.b16 %v262
        %v332 = vunpack.c.h.b16 %v262
        %v333 = vunpack.c.l.b16 %v263
        %v334 = vunpack.c.h.b16 %v263
        %v335 = vunpack.c.l.b16 %v264
        %v336 = vunpack.c.h.b16 %v264
        %v337 = vpack.c.b16 %v307, %v305
        %v338 = vpack.c.b16 %v308, %v306
        %v339 = vpack.c.b16 %v311, %v309
        %v340 = vpack.c.b16 %v312, %v310
        %v341 = vpack.c.b16 %v315, %v313
        %v342 = vpack.c.b16 %v316, %v314
        %v343 = vpack.c.b16 %v319, %v317
        %v344 = vpack.c.b16 %v320, %v318
        %v345 = vpack.c.b16 %v323, %v321
        %v346 = vpack.c.b16 %v324, %v322
        %v347 = vpack.c.b16 %v327, %v325
        %v348 = vpack.c.b16 %v328, %v326
        %v349 = vpack.c.b16 %v331, %v329
        %v350 = vpack.c.b16 %v332, %v330
        %v351 = vpack.c.b16 %v335, %v333
        %v352 = vpack.c.b16 %v336, %v334
        %v385 = vunpack.c.l.b16 %v265
        %v386 = vunpack.c.h.b16 %v265
        %v387 = vunpack.c.l.b16 %v266
        %v388 = vunpack.c.h.b16 %v266
        %v389 = vunpack.c.l.b16 %v267
        %v390 = vunpack.c.h.b16 %v267
        %v391 = vunpack.c.l.b16 %v268
        %v392 = vunpack.c.h.b16 %v268
        %v393 = vunpack.c.l.b16 %v269
        %v394 = vunpack.c.h.b16 %v269
        %v395 = vunpack.c.l.b16 %v270
        %v396 = vunpack.c.h.b16 %v270
        %v397 = vunpack.c.l.b16 %v271
        %v398 = vunpack.c.h.b16 %v271
        %v399 = vunpack.c.l.b16 %v272
        %v400 = vunpack.c.h.b16 %v272
        %v401 = vunpack.c.l.b16 %v273
        %v402 = vunpack.c.h.b16 %v273
        %v403 = vunpack.c.l.b16 %v274
        %v404 = vunpack.c.h.b16 %v274
        %v405 = vunpack.c.l.b16 %v275
        %v406 = vunpack.c.h.b16 %v275
        %v407 = vunpack.c.l.b16 %v276
        %v408 = vunpack.c.h.b16 %v276
        %v409 = vunpack.c.l.b16 %v277
        %v410 = vunpack.c.h.b16 %v277
        %v411 = vunpack.c.l.b16 %v278
        %v412 = vunpack.c.h.b16 %v278
        %v413 = vunpack.c.l.b16 %v279
        %v414 = vunpack.c.h.b16 %v279
        %v415 = vunpack.c.l.b16 %v280
        %v416 = vunpack.c.h.b16 %v280
        %v417 = vunpack.c.l.b16 %v281
        %v418 = vunpack.c.h.b16 %v281
        %v419 = vunpack.c.l.b16 %v282
        %v420 = vunpack.c.h.b16 %v282
        %v421 = vunpack.c.l.b16 %v283
        %v422 = vunpack.c.h.b16 %v283
        %v423 = vunpack.c.l.b16 %v284
        %v424 = vunpack.c.h.b16 %v284
        %v425 = vunpack.c.l.b16 %v285
        %v426 = vunpack.c.h.b16 %v285
        %v427 = vunpack.c.l.b16 %v286
        %v428 = vunpack.c.h.b16 %v286
        %v429 = vunpack.c.l.b16 %v287
        %v430 = vunpack.c.h.b16 %v287
        %v431 = vunpack.c.l.b16 %v288
        %v432 = vunpack.c.h.b16 %v288
        %v433 = vpack.c.b16 %v387, %v385
        %v434 = vpack.c.b16 %v388, %v386
        %v435 = vpack.c.b16 %v391, %v389
        %v436 = vpack.c.b16 %v392, %v390
        %v437 = vpack.c.b16 %v395, %v393
        %v438 = vpack.c.b16 %v396, %v394
        %v439 = vpack.c.b16 %v399, %v397
        %v440 = vpack.c.b16 %v400, %v398
        %v441 = vpack.c.b16 %v403, %v401
        %v442 = vpack.c.b16 %v404, %v402
        %v443 = vpack.c.b16 %v407, %v405
        %v444 = vpack.c.b16 %v408, %v406
        %v445 = vpack.c.b16 %v411, %v409
        %v446 = vpack.c.b16 %v412, %v410
        %v447 = vpack.c.b16 %v415, %v413
        %v448 = vpack.c.b16 %v416, %v414
        %v449 = vpack.c.b16 %v419, %v417
        %v450 = vpack.c.b16 %v420, %v418
        %v451 = vpack.c.b16 %v423, %v421
        %v452 = vpack.c.b16 %v424, %v422
        %v453 = vpack.c.b16 %v427, %v425
        %v454 = vpack.c.b16 %v428, %v426
        %v455 = vpack.c.b16 %v431, %v429
        %v456 = vpack.c.b16 %v432, %v430
        %vm481 = vcmask 523264
        %v483 = vsel %vm481, %v338, 0
        %v486 = vsel %vm481, %v340, 0
        %v489 = vsel %vm481, %v342, 0
        %v492 = vsel %vm481, %v344, 0
        %v495 = vsel %vm481, %v346, 0
        %v498 = vsel %vm481, %v348, 0
        %v501 = vsel %vm481, %v350, 0
        %v504 = vsel %vm481, %v352, 0
        %506 = vmatprep.subr.bf16.mxu0 %v434
        %507 = vmatpush1.bf16.msra.mxu0 %v433
        %508 = vmatprep.subr.bf16.mxu0 %v436
        %509 = vmatpush1.bf16.msra.mxu0 %v435
        %510 = vmatprep.subr.bf16.mxu0 %v438
        %511 = vmatpush1.bf16.msra.mxu0 %v437
        %512 = vmatprep.subr.bf16.mxu0 %v440
        %513 = vmatpush1.bf16.msra.mxu0 %v439
        %514 = vmatprep.subr.bf16.mxu0 %v442
        %515 = vmatpush1.bf16.msra.mxu0 %v441
        %516 = vmatprep.subr.bf16.mxu0 %v444
        %517 = vmatpush1.bf16.msra.mxu0 %v443
        %518 = vmatprep.subr.bf16.mxu0 %v446
        %519 = vmatpush1.bf16.msra.mxu0 %v445
        %520 = vmatprep.subr.bf16.mxu0 %v448
        %521 = vmatpush1.bf16.msra.mxu0 %v447
        %522 = vmatprep.subr.bf16.mxu0 %v450
        %523 = vmatpush1.bf16.msra.mxu0 %v449
        %524 = vmatprep.subr.bf16.mxu0 %v452
        %525 = vmatpush1.bf16.msra.mxu0 %v451
        %526 = vmatprep.subr.bf16.mxu0 %v454
        %527 = vmatpush1.bf16.msra.mxu0 %v453
        %528 = vmatprep.subr.bf16.mxu0 %v456
        %529 = vmatpush1.bf16.msra.mxu0 %v455
        %530 = vmatprep.subr.bf16.mxu0 0
        %531 = vmatpush1.bf16.msra.mxu0 0
        %532 = vmatprep.subr.bf16.mxu0 0
        %533 = vmatpush1.bf16.msra.mxu0 0
        %534 = vmatprep.subr.bf16.mxu0 0
        %535 = vmatpush1.bf16.msra.mxu0 0
        %536 = vmatprep.subr.bf16.mxu0 0
        %537 = vmatpush1.bf16.msra.mxu0 0
        %538 = vmatprep.mubr.bf16.mxu0 %v483
        %539 = vmatmul.mubr.bf16.gmra.mrb[0].mxu0 %v337
        %v540 = vpop.f32.mrb[0].mxu0
        %v541 = vadd.f32 0.0, %v540
        %v542 = vpop.f32.mrb[0].mxu0
        %v543 = vadd.f32 0.0, %v542
        %v544 = vpop.f32.mrb[0].mxu0
        %v545 = vadd.f32 0.0, %v544
        %v546 = vpop.f32.mrb[0].mxu0
        %v547 = vadd.f32 0.0, %v546
        %548 = vmatprep.mubr.bf16.mxu0 %v486
        %549 = vmatmul.mubr.bf16.gmra.mrb[0].mxu0 %v339
        %v550 = vpop.f32.mrb[0].mxu0
        %v551 = vadd.f32 0.0, %v550
        %v552 = vpop.f32.mrb[0].mxu0
        %v553 = vadd.f32 0.0, %v552
        %v554 = vpop.f32.mrb[0].mxu0
        %v555 = vadd.f32 0.0, %v554
        %v556 = vpop.f32.mrb[0].mxu0
        %v557 = vadd.f32 0.0, %v556
        %558 = vmatprep.mubr.bf16.mxu0 %v489
        %559 = vmatmul.mubr.bf16.gmra.mrb[0].mxu0 %v341
        %v560 = vpop.f32.mrb[0].mxu0
        %v561 = vadd.f32 0.0, %v560
        %v562 = vpop.f32.mrb[0].mxu0
        %v563 = vadd.f32 0.0, %v562
        %v564 = vpop.f32.mrb[0].mxu0
        %v565 = vadd.f32 0.0, %v564
        %v566 = vpop.f32.mrb[0].mxu0
        %v567 = vadd.f32 0.0, %v566
        %568 = vmatprep.mubr.bf16.mxu0 %v492
        %569 = vmatmul.mubr.bf16.gmra.mrb[0].mxu0 %v343
        %v570 = vpop.f32.mrb[0].mxu0
        %v571 = vadd.f32 0.0, %v570
        %v572 = vpop.f32.mrb[0].mxu0
        %v573 = vadd.f32 0.0, %v572
        %v574 = vpop.f32.mrb[0].mxu0
        %v575 = vadd.f32 0.0, %v574
        %v576 = vpop.f32.mrb[0].mxu0
        %v577 = vadd.f32 0.0, %v576
        %578 = vmatprep.mubr.bf16.mxu0 %v495
        %579 = vmatmul.mubr.bf16.gmra.mrb[0].mxu0 %v345
        %v580 = vpop.f32.mrb[0].mxu0
        %v581 = vadd.f32 0.0, %v580
        %v582 = vpop.f32.mrb[0].mxu0
        %v583 = vadd.f32 0.0, %v582
        %v584 = vpop.f32.mrb[0].mxu0
        %v585 = vadd.f32 0.0, %v584
        %v586 = vpop.f32.mrb[0].mxu0
        %v587 = vadd.f32 0.0, %v586
        %588 = vmatprep.mubr.bf16.mxu0 %v498
        %589 = vmatmul.mubr.bf16.gmra.mrb[0].mxu0 %v347
        %v590 = vpop.f32.mrb[0].mxu0
        %v591 = vadd.f32 0.0, %v590
        %v592 = vpop.f32.mrb[0].mxu0
        %v593 = vadd.f32 0.0, %v592
        %v594 = vpop.f32.mrb[0].mxu0
        %v595 = vadd.f32 0.0, %v594
        %v596 = vpop.f32.mrb[0].mxu0
        %v597 = vadd.f32 0.0, %v596
        %598 = vmatprep.mubr.bf16.mxu0 %v501
        %599 = vmatmul.mubr.bf16.gmra.mrb[0].mxu0 %v349
        %v600 = vpop.f32.mrb[0].mxu0
        %v601 = vadd.f32 0.0, %v600
        %v602 = vpop.f32.mrb[0].mxu0
        %v603 = vadd.f32 0.0, %v602
        %v604 = vpop.f32.mrb[0].mxu0
        %v605 = vadd.f32 0.0, %v604
        %v606 = vpop.f32.mrb[0].mxu0
        %v607 = vadd.f32 0.0, %v606
        %608 = vmatprep.mubr.bf16.mxu0 %v504
        %609 = vmatmul.mubr.bf16.gmra.mrb[0].mxu0 %v351
        %v610 = vpop.f32.mrb[0].mxu0
        %v611 = vadd.f32 0.0, %v610
        %v612 = vpop.f32.mrb[0].mxu0
        %v613 = vadd.f32 0.0, %v612
        %v614 = vpop.f32.mrb[0].mxu0
        %v615 = vadd.f32 0.0, %v614
        %v616 = vpop.f32.mrb[0].mxu0
        %v617 = vadd.f32 0.0, %v616
        %618 = vdwg.mxu0
        %s619 = scalar_lea.vmem [#allocation5], 192
        %v620 = vld [vmem:[%s619] sm:$0xff]
        %v621 = vld [vmem:[%s619 + $0x8] sm:$0xff]
        %v622 = vld [vmem:[%s619 + $0x10] sm:$0xff]
        %v623 = vld [vmem:[%s619 + $0x18] sm:$0xff]
        %v624 = vld [vmem:[%s619 + $0x20] sm:$0xff]
        %v625 = vld [vmem:[%s619 + $0x28] sm:$0xff]
        %v626 = vld [vmem:[%s619 + $0x30] sm:$0xff]
        %v627 = vld [vmem:[%s619 + $0x38] sm:$0xff]
        %v628 = vld [vmem:[%s619 + $0x40] sm:$0xff]
        %v629 = vld [vmem:[%s619 + $0x48] sm:$0xff]
        %v630 = vld [vmem:[%s619 + $0x50] sm:$0xff]
        %v631 = vld [vmem:[%s619 + $0x58] sm:$0xff]
        %v632 = vld [vmem:[%s619 + $0x60] sm:$0xff]
        %v633 = vld [vmem:[%s619 + $0x68] sm:$0xff]
        %v634 = vld [vmem:[%s619 + $0x70] sm:$0xff]
        %v635 = vld [vmem:[%s619 + $0x78] sm:$0xff]
        %v636 = vld [vmem:[%s619 + $0x80] sm:$0xff]
        %v637 = vld [vmem:[%s619 + $0x88] sm:$0xff]
        %v638 = vld [vmem:[%s619 + $0x90] sm:$0xff]
        %v639 = vld [vmem:[%s619 + $0x98] sm:$0xff]
        %v640 = vld [vmem:[%s619 + $0xa0] sm:$0xff]
        %v641 = vld [vmem:[%s619 + $0xa8] sm:$0xff]
        %v642 = vld [vmem:[%s619 + $0xb0] sm:$0xff]
        %v643 = vld [vmem:[%s619 + $0xb8] sm:$0xff]
        %v668 = vunpack.c.l.b16 %v620
        %v669 = vunpack.c.h.b16 %v620
        %v670 = vunpack.c.l.b16 %v621
        %v671 = vunpack.c.h.b16 %v621
        %v672 = vunpack.c.l.b16 %v622
        %v673 = vunpack.c.h.b16 %v622
        %v674 = vunpack.c.l.b16 %v623
        %v675 = vunpack.c.h.b16 %v623
        %v676 = vunpack.c.l.b16 %v624
        %v677 = vunpack.c.h.b16 %v624
        %v678 = vunpack.c.l.b16 %v625
        %v679 = vunpack.c.h.b16 %v625
        %v680 = vunpack.c.l.b16 %v626
        %v681 = vunpack.c.h.b16 %v626
        %v682 = vunpack.c.l.b16 %v627
        %v683 = vunpack.c.h.b16 %v627
        %v684 = vunpack.c.l.b16 %v628
        %v685 = vunpack.c.h.b16 %v628
        %v686 = vunpack.c.l.b16 %v629
        %v687 = vunpack.c.h.b16 %v629
        %v688 = vunpack.c.l.b16 %v630
        %v689 = vunpack.c.h.b16 %v630
        %v690 = vunpack.c.l.b16 %v631
        %v691 = vunpack.c.h.b16 %v631
        %v692 = vunpack.c.l.b16 %v632
        %v693 = vunpack.c.h.b16 %v632
        %v694 = vunpack.c.l.b16 %v633
        %v695 = vunpack.c.h.b16 %v633
        %v696 = vunpack.c.l.b16 %v634
        %v697 = vunpack.c.h.b16 %v634
        %v698 = vunpack.c.l.b16 %v635
        %v699 = vunpack.c.h.b16 %v635
        %v700 = vunpack.c.l.b16 %v636
        %v701 = vunpack.c.h.b16 %v636
        %v702 = vunpack.c.l.b16 %v637
        %v703 = vunpack.c.h.b16 %v637
        %v704 = vunpack.c.l.b16 %v638
        %v705 = vunpack.c.h.b16 %v638
        %v706 = vunpack.c.l.b16 %v639
        %v707 = vunpack.c.h.b16 %v639
        %v708 = vunpack.c.l.b16 %v640
        %v709 = vunpack.c.h.b16 %v640
        %v710 = vunpack.c.l.b16 %v641
        %v711 = vunpack.c.h.b16 %v641
        %v712 = vunpack.c.l.b16 %v642
        %v713 = vunpack.c.h.b16 %v642
        %v714 = vunpack.c.l.b16 %v643
        %v715 = vunpack.c.h.b16 %v643
        %v716 = vpack.c.b16 %v670, %v668
        %v717 = vpack.c.b16 %v671, %v669
        %v718 = vpack.c.b16 %v674, %v672
        %v719 = vpack.c.b16 %v675, %v673
        %v720 = vpack.c.b16 %v678, %v676
        %v721 = vpack.c.b16 %v679, %v677
        %v722 = vpack.c.b16 %v682, %v680
        %v723 = vpack.c.b16 %v683, %v681
        %v724 = vpack.c.b16 %v686, %v684
        %v725 = vpack.c.b16 %v687, %v685
        %v726 = vpack.c.b16 %v690, %v688
        %v727 = vpack.c.b16 %v691, %v689
        %v728 = vpack.c.b16 %v694, %v692
        %v729 = vpack.c.b16 %v695, %v693
        %v730 = vpack.c.b16 %v698, %v696
        %v731 = vpack.c.b16 %v699, %v697
        %v732 = vpack.c.b16 %v702, %v700
        %v733 = vpack.c.b16 %v703, %v701
        %v734 = vpack.c.b16 %v706, %v704
        %v735 = vpack.c.b16 %v707, %v705
        %v736 = vpack.c.b16 %v710, %v708
        %v737 = vpack.c.b16 %v711, %v709
        %v738 = vpack.c.b16 %v714, %v712
        %v739 = vpack.c.b16 %v715, %v713
        %764 = vmatprep.subr.bf16.mxu0 %v717
        %765 = vmatpush1.bf16.msra.mxu0 %v716
        %766 = vmatprep.subr.bf16.mxu0 %v719
        %767 = vmatpush1.bf16.msra.mxu0 %v718
        %768 = vmatprep.subr.bf16.mxu0 %v721
        %769 = vmatpush1.bf16.msra.mxu0 %v720
        %770 = vmatprep.subr.bf16.mxu0 %v723
        %771 = vmatpush1.bf16.msra.mxu0 %v722
        %772 = vmatprep.subr.bf16.mxu0 %v725
        %773 = vmatpush1.bf16.msra.mxu0 %v724
        %774 = vmatprep.subr.bf16.mxu0 %v727
        %775 = vmatpush1.bf16.msra.mxu0 %v726
        %776 = vmatprep.subr.bf16.mxu0 %v729
        %777 = vmatpush1.bf16.msra.mxu0 %v728
        %778 = vmatprep.subr.bf16.mxu0 %v731
        %779 = vmatpush1.bf16.msra.mxu0 %v730
        %780 = vmatprep.subr.bf16.mxu0 %v733
        %781 = vmatpush1.bf16.msra.mxu0 %v732
        %782 = vmatprep.subr.bf16.mxu0 %v735
        %783 = vmatpush1.bf16.msra.mxu0 %v734
        %784 = vmatprep.subr.bf16.mxu0 %v737
        %785 = vmatpush1.bf16.msra.mxu0 %v736
        %786 = vmatprep.subr.bf16.mxu0 %v739
        %787 = vmatpush1.bf16.msra.mxu0 %v738
        %788 = vmatprep.subr.bf16.mxu0 0
        %789 = vmatpush1.bf16.msra.mxu0 0
        %790 = vmatprep.subr.bf16.mxu0 0
        %791 = vmatpush1.bf16.msra.mxu0 0
        %792 = vmatprep.subr.bf16.mxu0 0
        %793 = vmatpush1.bf16.msra.mxu0 0
        %794 = vmatprep.subr.bf16.mxu0 0
        %795 = vmatpush1.bf16.msra.mxu0 0
        %796 = vmatprep.mubr.bf16.mxu0 %v483
        %797 = vmatmul.mubr.bf16.gmra.mrb[0].mxu0 %v337
        %v798 = vpop.f32.mrb[0].mxu0
        %v799 = vadd.f32 0.0, %v798
        %v800 = vpop.f32.mrb[0].mxu0
        %v801 = vadd.f32 0.0, %v800
        %v802 = vpop.f32.mrb[0].mxu0
        %v803 = vadd.f32 0.0, %v802
        %v804 = vpop.f32.mrb[0].mxu0
        %v805 = vadd.f32 0.0, %v804
        %806 = vmatprep.mubr.bf16.mxu0 %v486
        %807 = vmatmul.mubr.bf16.gmra.mrb[0].mxu0 %v339
        %v808 = vpop.f32.mrb[0].mxu0
        %v809 = vadd.f32 0.0, %v808
        %v810 = vpop.f32.mrb[0].mxu0
        %v811 = vadd.f32 0.0, %v810
        %v812 = vpop.f32.mrb[0].mxu0
        %v813 = vadd.f32 0.0, %v812
        %v814 = vpop.f32.mrb[0].mxu0
        %v815 = vadd.f32 0.0, %v814
        %816 = vmatprep.mubr.bf16.mxu0 %v489
        %817 = vmatmul.mubr.bf16.gmra.mrb[0].mxu0 %v341
        %v818 = vpop.f32.mrb[0].mxu0
        %v819 = vadd.f32 0.0, %v818
        %v820 = vpop.f32.mrb[0].mxu0
        %v821 = vadd.f32 0.0, %v820
        %v822 = vpop.f32.mrb[0].mxu0
        %v823 = vadd.f32 0.0, %v822
        %v824 = vpop.f32.mrb[0].mxu0
        %v825 = vadd.f32 0.0, %v824
        %826 = vmatprep.mubr.bf16.mxu0 %v492
        %827 = vmatmul.mubr.bf16.gmra.mrb[0].mxu0 %v343
        %v828 = vpop.f32.mrb[0].mxu0
        %v829 = vadd.f32 0.0, %v828
        %v830 = vpop.f32.mrb[0].mxu0
        %v831 = vadd.f32 0.0, %v830
        %v832 = vpop.f32.mrb[0].mxu0
        %v833 = vadd.f32 0.0, %v832
        %v834 = vpop.f32.mrb[0].mxu0
        %v835 = vadd.f32 0.0, %v834
        %836 = vmatprep.mubr.bf16.mxu0 %v495
        %837 = vmatmul.mubr.bf16.gmra.mrb[0].mxu0 %v345
        %v838 = vpop.f32.mrb[0].mxu0
        %v839 = vadd.f32 0.0, %v838
        %v840 = vpop.f32.mrb[0].mxu0
        %v841 = vadd.f32 0.0, %v840
        %v842 = vpop.f32.mrb[0].mxu0
        %v843 = vadd.f32 0.0, %v842
        %v844 = vpop.f32.mrb[0].mxu0
        %v845 = vadd.f32 0.0, %v844
        %846 = vmatprep.mubr.bf16.mxu0 %v498
        %847 = vmatmul.mubr.bf16.gmra.mrb[0].mxu0 %v347
        %v848 = vpop.f32.mrb[0].mxu0
        %v849 = vadd.f32 0.0, %v848
        %v850 = vpop.f32.mrb[0].mxu0
        %v851 = vadd.f32 0.0, %v850
        %v852 = vpop.f32.mrb[0].mxu0
        %v853 = vadd.f32 0.0, %v852
        %v854 = vpop.f32.mrb[0].mxu0
        %v855 = vadd.f32 0.0, %v854
        %856 = vmatprep.mubr.bf16.mxu0 %v501
        %857 = vmatmul.mubr.bf16.gmra.mrb[0].mxu0 %v349
        %v858 = vpop.f32.mrb[0].mxu0
        %v859 = vadd.f32 0.0, %v858
        %v860 = vpop.f32.mrb[0].mxu0
        %v861 = vadd.f32 0.0, %v860
        %v862 = vpop.f32.mrb[0].mxu0
        %v863 = vadd.f32 0.0, %v862
        %v864 = vpop.f32.mrb[0].mxu0
        %v865 = vadd.f32 0.0, %v864
        %866 = vmatprep.mubr.bf16.mxu0 %v504
        %867 = vmatmul.mubr.bf16.gmra.mrb[0].mxu0 %v351
        %v868 = vpop.f32.mrb[0].mxu0
        %v869 = vadd.f32 0.0, %v868
        %v870 = vpop.f32.mrb[0].mxu0
        %v871 = vadd.f32 0.0, %v870
        %v872 = vpop.f32.mrb[0].mxu0
        %v873 = vadd.f32 0.0, %v872
        %v874 = vpop.f32.mrb[0].mxu0
        %v875 = vadd.f32 0.0, %v874
        %876 = vdwg.mxu0
        %s877 = scalar_lea.vmem [#allocation5], 384
        %v878 = vld [vmem:[%s877] sm:$0xff]
        %v879 = vld [vmem:[%s877 + $0x8] sm:$0xff]
        %v880 = vld [vmem:[%s877 + $0x10] sm:$0xff]
        %v881 = vld [vmem:[%s877 + $0x18] sm:$0xff]
        %v882 = vld [vmem:[%s877 + $0x20] sm:$0xff]
        %v883 = vld [vmem:[%s877 + $0x28] sm:$0xff]
        %v884 = vld [vmem:[%s877 + $0x30] sm:$0xff]
        %v885 = vld [vmem:[%s877 + $0x38] sm:$0xff]
        %v886 = vld [vmem:[%s877 + $0x40] sm:$0xff]
        %v887 = vld [vmem:[%s877 + $0x48] sm:$0xff]
        %v888 = vld [vmem:[%s877 + $0x50] sm:$0xff]
        %v889 = vld [vmem:[%s877 + $0x58] sm:$0xff]
        %v890 = vld [vmem:[%s877 + $0x60] sm:$0xff]
        %v891 = vld [vmem:[%s877 + $0x68] sm:$0xff]
        %v892 = vld [vmem:[%s877 + $0x70] sm:$0xff]
        %v893 = vld [vmem:[%s877 + $0x78] sm:$0xff]
        %v894 = vld [vmem:[%s877 + $0x80] sm:$0xff]
        %v895 = vld [vmem:[%s877 + $0x88] sm:$0xff]
        %v896 = vld [vmem:[%s877 + $0x90] sm:$0xff]
        %v897 = vld [vmem:[%s877 + $0x98] sm:$0xff]
        %v898 = vld [vmem:[%s877 + $0xa0] sm:$0xff]
        %v899 = vld [vmem:[%s877 + $0xa8] sm:$0xff]
        %v900 = vld [vmem:[%s877 + $0xb0] sm:$0xff]
        %v901 = vld [vmem:[%s877 + $0xb8] sm:$0xff]
        %v926 = vunpack.c.l.b16 %v878
        %v927 = vunpack.c.h.b16 %v878
        %v928 = vunpack.c.l.b16 %v879
        %v929 = vunpack.c.h.b16 %v879
        %v930 = vunpack.c.l.b16 %v880
        %v931 = vunpack.c.h.b16 %v880
        %v932 = vunpack.c.l.b16 %v881
        %v933 = vunpack.c.h.b16 %v881
        %v934 = vunpack.c.l.b16 %v882
        %v935 = vunpack.c.h.b16 %v882
        %v936 = vunpack.c.l.b16 %v883
        %v937 = vunpack.c.h.b16 %v883
        %v938 = vunpack.c.l.b16 %v884
        %v939 = vunpack.c.h.b16 %v884
        %v940 = vunpack.c.l.b16 %v885
        %v941 = vunpack.c.h.b16 %v885
        %v942 = vunpack.c.l.b16 %v886
        %v943 = vunpack.c.h.b16 %v886
        %v944 = vunpack.c.l.b16 %v887
        %v945 = vunpack.c.h.b16 %v887
        %v946 = vunpack.c.l.b16 %v888
        %v947 = vunpack.c.h.b16 %v888
        %v948 = vunpack.c.l.b16 %v889
        %v949 = vunpack.c.h.b16 %v889
        %v950 = vunpack.c.l.b16 %v890
        %v951 = vunpack.c.h.b16 %v890
        %v952 = vunpack.c.l.b16 %v891
        %v953 = vunpack.c.h.b16 %v891
        %v954 = vunpack.c.l.b16 %v892
        %v955 = vunpack.c.h.b16 %v892
        %v956 = vunpack.c.l.b16 %v893
        %v957 = vunpack.c.h.b16 %v893
        %v958 = vunpack.c.l.b16 %v894
        %v959 = vunpack.c.h.b16 %v894
        %v960 = vunpack.c.l.b16 %v895
        %v961 = vunpack.c.h.b16 %v895
        %v962 = vunpack.c.l.b16 %v896
        %v963 = vunpack.c.h.b16 %v896
        %v964 = vunpack.c.l.b16 %v897
        %v965 = vunpack.c.h.b16 %v897
        %v966 = vunpack.c.l.b16 %v898
        %v967 = vunpack.c.h.b16 %v898
        %v968 = vunpack.c.l.b16 %v899
        %v969 = vunpack.c.h.b16 %v899
        %v970 = vunpack.c.l.b16 %v900
        %v971 = vunpack.c.h.b16 %v900
        %v972 = vunpack.c.l.b16 %v901
        %v973 = vunpack.c.h.b16 %v901
        %v974 = vpack.c.b16 %v928, %v926
        %v975 = vpack.c.b16 %v929, %v927
        %v976 = vpack.c.b16 %v932, %v930
        %v977 = vpack.c.b16 %v933, %v931
        %v978 = vpack.c.b16 %v936, %v934
        %v979 = vpack.c.b16 %v937, %v935
        %v980 = vpack.c.b16 %v940, %v938
        %v981 = vpack.c.b16 %v941, %v939
        %v982 = vpack.c.b16 %v944, %v942
        %v983 = vpack.c.b16 %v945, %v943
        %v984 = vpack.c.b16 %v948, %v946
        %v985 = vpack.c.b16 %v949, %v947
        %v986 = vpack.c.b16 %v952, %v950
        %v987 = vpack.c.b16 %v953, %v951
        %v988 = vpack.c.b16 %v956, %v954
        %v989 = vpack.c.b16 %v957, %v955
        %v990 = vpack.c.b16 %v960, %v958
        %v991 = vpack.c.b16 %v961, %v959
        %v992 = vpack.c.b16 %v964, %v962
        %v993 = vpack.c.b16 %v965, %v963
        %v994 = vpack.c.b16 %v968, %v966
        %v995 = vpack.c.b16 %v969, %v967
        %v996 = vpack.c.b16 %v972, %v970
        %v997 = vpack.c.b16 %v973, %v971
        %1022 = vmatprep.subr.bf16.mxu0 %v975
        %1023 = vmatpush1.bf16.msra.mxu0 %v974
        %1024 = vmatprep.subr.bf16.mxu0 %v977
        %1025 = vmatpush1.bf16.msra.mxu0 %v976
        %1026 = vmatprep.subr.bf16.mxu0 %v979
        %1027 = vmatpush1.bf16.msra.mxu0 %v978
        %1028 = vmatprep.subr.bf16.mxu0 %v981
        %1029 = vmatpush1.bf16.msra.mxu0 %v980
        %1030 = vmatprep.subr.bf16.mxu0 %v983
        %1031 = vmatpush1.bf16.msra.mxu0 %v982
        %1032 = vmatprep.subr.bf16.mxu0 %v985
        %1033 = vmatpush1.bf16.msra.mxu0 %v984
        %1034 = vmatprep.subr.bf16.mxu0 %v987
        %1035 = vmatpush1.bf16.msra.mxu0 %v986
        %1036 = vmatprep.subr.bf16.mxu0 %v989
        %1037 = vmatpush1.bf16.msra.mxu0 %v988
        %1038 = vmatprep.subr.bf16.mxu0 %v991
        %1039 = vmatpush1.bf16.msra.mxu0 %v990
        %1040 = vmatprep.subr.bf16.mxu0 %v993
        %1041 = vmatpush1.bf16.msra.mxu0 %v992
        %1042 = vmatprep.subr.bf16.mxu0 %v995
        %1043 = vmatpush1.bf16.msra.mxu0 %v994
        %1044 = vmatprep.subr.bf16.mxu0 %v997
        %1045 = vmatpush1.bf16.msra.mxu0 %v996
        %1046 = vmatprep.subr.bf16.mxu0 0
        %1047 = vmatpush1.bf16.msra.mxu0 0
        %1048 = vmatprep.subr.bf16.mxu0 0
        %1049 = vmatpush1.bf16.msra.mxu0 0
        %1050 = vmatprep.subr.bf16.mxu0 0
        %1051 = vmatpush1.bf16.msra.mxu0 0
        %1052 = vmatprep.subr.bf16.mxu0 0
        %1053 = vmatpush1.bf16.msra.mxu0 0
        %1054 = vmatprep.mubr.bf16.mxu0 %v483
        %1055 = vmatmul.mubr.bf16.gmra.mrb[0].mxu0 %v337
        %v1056 = vpop.f32.mrb[0].mxu0
        %v1057 = vadd.f32 0.0, %v1056
        %v1058 = vpop.f32.mrb[0].mxu0
        %v1059 = vadd.f32 0.0, %v1058
        %v1060 = vpop.f32.mrb[0].mxu0
        %v1061 = vadd.f32 0.0, %v1060
        %v1062 = vpop.f32.mrb[0].mxu0
        %v1063 = vadd.f32 0.0, %v1062
        %1064 = vmatprep.mubr.bf16.mxu0 %v486
        %1065 = vmatmul.mubr.bf16.gmra.mrb[0].mxu0 %v339
        %v1066 = vpop.f32.mrb[0].mxu0
        %v1067 = vadd.f32 0.0, %v1066
        %v1068 = vpop.f32.mrb[0].mxu0
        %v1069 = vadd.f32 0.0, %v1068
        %v1070 = vpop.f32.mrb[0].mxu0
        %v1071 = vadd.f32 0.0, %v1070
        %v1072 = vpop.f32.mrb[0].mxu0
        %v1073 = vadd.f32 0.0, %v1072
        %1074 = vmatprep.mubr.bf16.mxu0 %v489
        %1075 = vmatmul.mubr.bf16.gmra.mrb[0].mxu0 %v341
        %v1076 = vpop.f32.mrb[0].mxu0
        %v1077 = vadd.f32 0.0, %v1076
        %v1078 = vpop.f32.mrb[0].mxu0
        %v1079 = vadd.f32 0.0, %v1078
        %v1080 = vpop.f32.mrb[0].mxu0
        %v1081 = vadd.f32 0.0, %v1080
        %v1082 = vpop.f32.mrb[0].mxu0
        %v1083 = vadd.f32 0.0, %v1082
        %1084 = vmatprep.mubr.bf16.mxu0 %v492
        %1085 = vmatmul.mubr.bf16.gmra.mrb[0].mxu0 %v343
        %v1086 = vpop.f32.mrb[0].mxu0
        %v1087 = vadd.f32 0.0, %v1086
        %v1088 = vpop.f32.mrb[0].mxu0
        %v1089 = vadd.f32 0.0, %v1088
        %v1090 = vpop.f32.mrb[0].mxu0
        %v1091 = vadd.f32 0.0, %v1090
        %v1092 = vpop.f32.mrb[0].mxu0
        %v1093 = vadd.f32 0.0, %v1092
        %1094 = vmatprep.mubr.bf16.mxu0 %v495
        %1095 = vmatmul.mubr.bf16.gmra.mrb[0].mxu0 %v345
        %v1096 = vpop.f32.mrb[0].mxu0
        %v1097 = vadd.f32 0.0, %v1096
        %v1098 = vpop.f32.mrb[0].mxu0
        %v1099 = vadd.f32 0.0, %v1098
        %v1100 = vpop.f32.mrb[0].mxu0
        %v1101 = vadd.f32 0.0, %v1100
        %v1102 = vpop.f32.mrb[0].mxu0
        %v1103 = vadd.f32 0.0, %v1102
        %1104 = vmatprep.mubr.bf16.mxu0 %v498
        %1105 = vmatmul.mubr.bf16.gmra.mrb[0].mxu0 %v347
        %v1106 = vpop.f32.mrb[0].mxu0
        %v1107 = vadd.f32 0.0, %v1106
        %v1108 = vpop.f32.mrb[0].mxu0
        %v1109 = vadd.f32 0.0, %v1108
        %v1110 = vpop.f32.mrb[0].mxu0
        %v1111 = vadd.f32 0.0, %v1110
        %v1112 = vpop.f32.mrb[0].mxu0
        %v1113 = vadd.f32 0.0, %v1112
        %1114 = vmatprep.mubr.bf16.mxu0 %v501
        %1115 = vmatmul.mubr.bf16.gmra.mrb[0].mxu0 %v349
        %v1116 = vpop.f32.mrb[0].mxu0
        %v1117 = vadd.f32 0.0, %v1116
        %v1118 = vpop.f32.mrb[0].mxu0
        %v1119 = vadd.f32 0.0, %v1118
        %v1120 = vpop.f32.mrb[0].mxu0
        %v1121 = vadd.f32 0.0, %v1120
        %v1122 = vpop.f32.mrb[0].mxu0
        %v1123 = vadd.f32 0.0, %v1122
        %1124 = vmatprep.mubr.bf16.mxu0 %v504
        %1125 = vmatmul.mubr.bf16.gmra.mrb[0].mxu0 %v351
        %v1126 = vpop.f32.mrb[0].mxu0
        %v1127 = vadd.f32 0.0, %v1126
        %v1128 = vpop.f32.mrb[0].mxu0
        %v1129 = vadd.f32 0.0, %v1128
        %v1130 = vpop.f32.mrb[0].mxu0
        %v1131 = vadd.f32 0.0, %v1130
        %v1132 = vpop.f32.mrb[0].mxu0
        %v1133 = vadd.f32 0.0, %v1132
        %1134 = vdwg.mxu0
        %v1135 = vpack.c.bf16 %v545, %v541
        %v1136 = vpack.c.bf16 %v547, %v543
        %v1137 = vpack.c.bf16 %v555, %v551
        %v1138 = vpack.c.bf16 %v557, %v553
        %v1139 = vpack.c.bf16 %v565, %v561
        %v1140 = vpack.c.bf16 %v567, %v563
        %v1141 = vpack.c.bf16 %v575, %v571
        %v1142 = vpack.c.bf16 %v577, %v573
        %v1143 = vpack.c.bf16 %v585, %v581
        %v1144 = vpack.c.bf16 %v587, %v583
        %v1145 = vpack.c.bf16 %v595, %v591
        %v1146 = vpack.c.bf16 %v597, %v593
        %v1147 = vpack.c.bf16 %v605, %v601
        %v1148 = vpack.c.bf16 %v607, %v603
        %v1149 = vpack.c.bf16 %v615, %v611
        %v1150 = vpack.c.bf16 %v617, %v613
        %v1151 = vpack.c.bf16 %v803, %v799
        %v1152 = vpack.c.bf16 %v805, %v801
        %v1153 = vpack.c.bf16 %v813, %v809
        %v1154 = vpack.c.bf16 %v815, %v811
        %v1155 = vpack.c.bf16 %v823, %v819
        %v1156 = vpack.c.bf16 %v825, %v821
        %v1157 = vpack.c.bf16 %v833, %v829
        %v1158 = vpack.c.bf16 %v835, %v831
        %v1159 = vpack.c.bf16 %v843, %v839
        %v1160 = vpack.c.bf16 %v845, %v841
        %v1161 = vpack.c.bf16 %v853, %v849
        %v1162 = vpack.c.bf16 %v855, %v851
        %v1163 = vpack.c.bf16 %v863, %v859
        %v1164 = vpack.c.bf16 %v865, %v861
        %v1165 = vpack.c.bf16 %v873, %v869
        %v1166 = vpack.c.bf16 %v875, %v871
        %v1167 = vpack.c.bf16 %v1061, %v1057
        %v1168 = vpack.c.bf16 %v1063, %v1059
        %v1169 = vpack.c.bf16 %v1071, %v1067
        %v1170 = vpack.c.bf16 %v1073, %v1069
        %v1171 = vpack.c.bf16 %v1081, %v1077
        %v1172 = vpack.c.bf16 %v1083, %v1079
        %v1173 = vpack.c.bf16 %v1091, %v1087
        %v1174 = vpack.c.bf16 %v1093, %v1089
        %v1175 = vpack.c.bf16 %v1101, %v1097
        %v1176 = vpack.c.bf16 %v1103, %v1099
        %v1177 = vpack.c.bf16 %v1111, %v1107
        %v1178 = vpack.c.bf16 %v1113, %v1109
        %v1179 = vpack.c.bf16 %v1121, %v1117
        %v1180 = vpack.c.bf16 %v1123, %v1119
        %v1181 = vpack.c.bf16 %v1131, %v1127
        %v1182 = vpack.c.bf16 %v1133, %v1129
        %v1183 = vlaneseq
        %v1184 = vshrl.u32 %v1183, 7
        %v1185 = vadd.s32 %v1184, 8
        %v1186 = vadd.s32 %v1184, 16
        %v1187 = vadd.s32 %v1184, 24
        %v1188 = vadd.s32 %v1184, 32
        %v1189 = vadd.s32 %v1184, 40
        %v1190 = vadd.s32 %v1184, 48
        %v1191 = vadd.s32 %v1184, 56
        %v1192 = vlaneseq
        %v1193 = vand.u32 %v1192, 127
        %vm1194 = vcmp.le.s32.totalorder %v1193, %v1184
        %vm1195 = vcmp.le.s32.totalorder %v1193, %v1185
        %vm1196 = vcmp.le.s32.totalorder %v1193, %v1186
        %vm1197 = vcmp.le.s32.totalorder %v1193, %v1187
        %vm1198 = vcmp.le.s32.totalorder %v1193, %v1188
        %vm1199 = vcmp.le.s32.totalorder %v1193, %v1189
        %vm1200 = vcmp.le.s32.totalorder %v1193, %v1190
        %vm1201 = vcmp.le.s32.totalorder %v1193, %v1191
        %v1202 = vld [vmem:[%s3] sm:$0x3]
        %v1204 = vlaneseq
        %v1205 = vshrl.u32 %v1204, 7
        %v1206 = vsub.s32 0, %v1205
        %v1207 = vrot.slane %v1202, %v1206
        %v1208 = vlaneseq
        %v1209 = vshrl.u32 %v1208, 7
        %v1210 = vsub.s32 1, %v1209
        %v1211 = vrot.slane %v1202, %v1210
        %vm1214 = vcmask 392192
        %v1216 = vsel %vm1214, %v1135, 0
        %v1219 = vsel %vm1214, %v1137, 0
        %v1222 = vsel %vm1214, %v1139, 0
        %v1225 = vsel %vm1214, %v1141, 0
        %v1228 = vsel %vm1214, %v1151, 0
        %v1231 = vsel %vm1214, %v1153, 0
        %v1234 = vsel %vm1214, %v1155, 0
        %v1237 = vsel %vm1214, %v1157, 0
        %1239 = vmatprep.subr.bf16.mxu0 0
        %1240 = vmatpush1.bf16.xpose.msra.mxu0 %v1228
        %1241 = vmatprep.subr.bf16.mxu0 0
        %1242 = vmatpush1.bf16.xpose.msra.mxu0 %v1231
        %1243 = vmatprep.subr.bf16.mxu0 0
        %1244 = vmatpush1.bf16.xpose.msra.mxu0 %v1234
        %1245 = vmatprep.subr.bf16.mxu0 0
        %1246 = vmatpush1.bf16.xpose.msra.mxu0 %v1237
        %1247 = vmatprep.subr.bf16.mxu0 0
        %1248 = vmatpush1.bf16.xpose.msra.mxu0 0
        %1249 = vmatprep.subr.bf16.mxu0 0
        %1250 = vmatpush1.bf16.xpose.msra.mxu0 0
        %1251 = vmatprep.subr.bf16.mxu0 0
        %1252 = vmatpush1.bf16.xpose.msra.mxu0 0
        %1253 = vmatprep.subr.bf16.mxu0 0
        %1254 = vmatpush1.bf16.xpose.msra.mxu0 0
        %1255 = vmatprep.subr.bf16.mxu0 0
        %1256 = vmatpush1.bf16.xpose.msra.mxu0 0
        %1257 = vmatprep.subr.bf16.mxu0 0
        %1258 = vmatpush1.bf16.xpose.msra.mxu0 0
        %1259 = vmatprep.subr.bf16.mxu0 0
        %1260 = vmatpush1.bf16.xpose.msra.mxu0 0
        %1261 = vmatprep.subr.bf16.mxu0 0
        %1262 = vmatpush1.bf16.xpose.msra.mxu0 0
        %1263 = vmatprep.subr.bf16.mxu0 0
        %1264 = vmatpush1.bf16.xpose.msra.mxu0 0
        %1265 = vmatprep.subr.bf16.mxu0 0
        %1266 = vmatpush1.bf16.xpose.msra.mxu0 0
        %1267 = vmatprep.subr.bf16.mxu0 0
        %1268 = vmatpush1.bf16.xpose.msra.mxu0 0
        %1269 = vmatprep.subr.bf16.mxu0 0
        %1270 = vmatpush1.bf16.xpose.msra.mxu0 0
        %1271 = vmatprep.mubr.bf16.mxu0 0
        %1272 = vmatmul.mubr.bf16.gmra.mrb[0].mxu0 %v1216
        %v1273 = vpop.f32.mrb[0].mxu0
        %v1274 = vadd.f32 0.0, %v1273
        %v1275 = vpop.f32.mrb[0].mxu0
        %v1276 = vpop.f32.mrb[0].mxu0
        %v1277 = vadd.f32 0.0, %v1276
        %v1278 = vpop.f32.mrb[0].mxu0
        %1279 = vmatprep.mubr.bf16.mxu0 0
        %1280 = vmatmul.mubr.bf16.gmra.mrb[0].mxu0 %v1219
        %v1281 = vpop.f32.mrb[0].mxu0
        %v1282 = vadd.f32 0.0, %v1281
        %v1283 = vpop.f32.mrb[0].mxu0
        %v1284 = vpop.f32.mrb[0].mxu0
        %v1285 = vadd.f32 0.0, %v1284
        %v1286 = vpop.f32.mrb[0].mxu0
        %1287 = vmatprep.mubr.bf16.mxu0 0
        %1288 = vmatmul.mubr.bf16.gmra.mrb[0].mxu0 %v1222
        %v1289 = vpop.f32.mrb[0].mxu0
        %v1290 = vadd.f32 0.0, %v1289
        %v1291 = vpop.f32.mrb[0].mxu0
        %v1292 = vpop.f32.mrb[0].mxu0
        %v1293 = vadd.f32 0.0, %v1292
        %v1294 = vpop.f32.mrb[0].mxu0
        %1295 = vmatprep.mubr.bf16.mxu0 0
        %1296 = vmatmul.mubr.bf16.gmra.mrb[0].mxu0 %v1225
        %v1297 = vpop.f32.mrb[0].mxu0
        %v1298 = vadd.f32 0.0, %v1297
        %v1299 = vpop.f32.mrb[0].mxu0
        %v1300 = vpop.f32.mrb[0].mxu0
        %v1301 = vadd.f32 0.0, %v1300
        %v1302 = vpop.f32.mrb[0].mxu0
        %1303 = vdwg.mxu0
        %v1305 = vsel %vm1214, %v1143, 0
        %v1308 = vsel %vm1214, %v1145, 0
        %v1311 = vsel %vm1214, %v1147, 0
        %v1314 = vsel %vm1214, %v1149, 0
        %v1317 = vsel %vm1214, %v1159, 0
        %v1320 = vsel %vm1214, %v1161, 0
        %v1323 = vsel %vm1214, %v1163, 0
        %v1326 = vsel %vm1214, %v1165, 0
        %1328 = vmatprep.subr.bf16.mxu0 0
        %1329 = vmatpush1.bf16.xpose.msra.mxu0 %v1317
        %1330 = vmatprep.subr.bf16.mxu0 0
        %1331 = vmatpush1.bf16.xpose.msra.mxu0 %v1320
        %1332 = vmatprep.subr.bf16.mxu0 0
        %1333 = vmatpush1.bf16.xpose.msra.mxu0 %v1323
        %1334 = vmatprep.subr.bf16.mxu0 0
        %1335 = vmatpush1.bf16.xpose.msra.mxu0 %v1326
        %1336 = vmatprep.subr.bf16.mxu0 0
        %1337 = vmatpush1.bf16.xpose.msra.mxu0 0
        %1338 = vmatprep.subr.bf16.mxu0 0
        %1339 = vmatpush1.bf16.xpose.msra.mxu0 0
        %1340 = vmatprep.subr.bf16.mxu0 0
        %1341 = vmatpush1.bf16.xpose.msra.mxu0 0
        %1342 = vmatprep.subr.bf16.mxu0 0
        %1343 = vmatpush1.bf16.xpose.msra.mxu0 0
        %1344 = vmatprep.subr.bf16.mxu0 0
        %1345 = vmatpush1.bf16.xpose.msra.mxu0 0
        %1346 = vmatprep.subr.bf16.mxu0 0
        %1347 = vmatpush1.bf16.xpose.msra.mxu0 0
        %1348 = vmatprep.subr.bf16.mxu0 0
        %1349 = vmatpush1.bf16.xpose.msra.mxu0 0
        %1350 = vmatprep.subr.bf16.mxu0 0
        %1351 = vmatpush1.bf16.xpose.msra.mxu0 0
        %1352 = vmatprep.subr.bf16.mxu0 0
        %1353 = vmatpush1.bf16.xpose.msra.mxu0 0
        %1354 = vmatprep.subr.bf16.mxu0 0
        %1355 = vmatpush1.bf16.xpose.msra.mxu0 0
        %1356 = vmatprep.subr.bf16.mxu0 0
        %1357 = vmatpush1.bf16.xpose.msra.mxu0 0
        %1358 = vmatprep.subr.bf16.mxu0 0
        %1359 = vmatpush1.bf16.xpose.msra.mxu0 0
        %1360 = vmatprep.mubr.bf16.mxu0 0
        %1361 = vmatmul.mubr.bf16.gmra.mrb[0].mxu0 %v1305
        %v1362 = vpop.f32.mrb[0].mxu0
        %v1363 = vadd.f32 0.0, %v1362
        %v1364 = vpop.f32.mrb[0].mxu0
        %v1365 = vpop.f32.mrb[0].mxu0
        %v1366 = vadd.f32 0.0, %v1365
        %v1367 = vpop.f32.mrb[0].mxu0
        %1368 = vmatprep.mubr.bf16.mxu0 0
        %1369 = vmatmul.mubr.bf16.gmra.mrb[0].mxu0 %v1308
        %v1370 = vpop.f32.mrb[0].mxu0
        %v1371 = vadd.f32 0.0, %v1370
        %v1372 = vpop.f32.mrb[0].mxu0
        %v1373 = vpop.f32.mrb[0].mxu0
        %v1374 = vadd.f32 0.0, %v1373
        %v1375 = vpop.f32.mrb[0].mxu0
        %1376 = vmatprep.mubr.bf16.mxu0 0
        %1377 = vmatmul.mubr.bf16.gmra.mrb[0].mxu0 %v1311
        %v1378 = vpop.f32.mrb[0].mxu0
        %v1379 = vadd.f32 0.0, %v1378
        %v1380 = vpop.f32.mrb[0].mxu0
        %v1381 = vpop.f32.mrb[0].mxu0
        %v1382 = vadd.f32 0.0, %v1381
        %v1383 = vpop.f32.mrb[0].mxu0
        %1384 = vmatprep.mubr.bf16.mxu0 0
        %1385 = vmatmul.mubr.bf16.gmra.mrb[0].mxu0 %v1314
        %v1386 = vpop.f32.mrb[0].mxu0
        %v1387 = vadd.f32 0.0, %v1386
        %v1388 = vpop.f32.mrb[0].mxu0
        %v1389 = vpop.f32.mrb[0].mxu0
        %v1390 = vadd.f32 0.0, %v1389
        %v1391 = vpop.f32.mrb[0].mxu0
        %1392 = vdwg.mxu0
        %v1393 = vsel %vm1194, 1, 0
        %v1394 = vsel %vm1195, 1, 0
        %v1395 = vsel %vm1196, 1, 0
        %v1396 = vsel %vm1197, 1, 0
        %v1397 = vsel %vm1198, 1, 0
        %v1398 = vsel %vm1199, 1, 0
        %v1399 = vsel %vm1200, 1, 0
        %v1400 = vsel %vm1201, 1, 0
        %vm1401 = vcmp.eq.s32.totalorder %v1393, 1
        %vm1402 = vcmp.eq.s32.totalorder %v1394, 1
        %vm1403 = vcmp.eq.s32.totalorder %v1395, 1
        %vm1404 = vcmp.eq.s32.totalorder %v1396, 1
        %vm1405 = vcmp.eq.s32.totalorder %v1397, 1
        %vm1406 = vcmp.eq.s32.totalorder %v1398, 1
        %vm1407 = vcmp.eq.s32.totalorder %v1399, 1
        %vm1408 = vcmp.eq.s32.totalorder %v1400, 1
        %v1409 = vsel %vm1401, %v1274, -inf
        %v1410 = vsel %vm1402, %v1277, -inf
        %v1411 = vsel %vm1403, %v1282, -inf
        %v1412 = vsel %vm1404, %v1285, -inf
        %v1413 = vsel %vm1405, %v1290, -inf
        %v1414 = vsel %vm1406, %v1293, -inf
        %v1415 = vsel %vm1407, %v1298, -inf
        %v1416 = vsel %vm1408, %v1301, -inf
        %v1417 = vsel %vm1401, %v1363, -inf
        %v1418 = vsel %vm1402, %v1366, -inf
        %v1419 = vsel %vm1403, %v1371, -inf
        %v1420 = vsel %vm1404, %v1374, -inf
        %v1421 = vsel %vm1405, %v1379, -inf
        %v1422 = vsel %vm1406, %v1382, -inf
        %v1423 = vsel %vm1407, %v1387, -inf
        %v1424 = vsel %vm1408, %v1390, -inf
        %v1425 = vsel %vm481, %v1409, -inf
        %1426 = vmax.xlane.f32.xlu0 %v1425
        %v1427 = vpop.xlane.xlu0 %1426
        %v1428 = vsel %vm481, %v1410, -inf
        %1429 = vmax.xlane.f32.xlu0 %v1428
        %v1430 = vpop.xlane.xlu0 %1429
        %v1431 = vsel %vm481, %v1411, -inf
        %1432 = vmax.xlane.f32.xlu0 %v1431
        %v1433 = vpop.xlane.xlu0 %1432
        %v1434 = vsel %vm481, %v1412, -inf
        %1435 = vmax.xlane.f32.xlu0 %v1434
        %v1436 = vpop.xlane.xlu0 %1435
        %v1437 = vsel %vm481, %v1413, -inf
        %1438 = vmax.xlane.f32.xlu0 %v1437
        %v1439 = vpop.xlane.xlu0 %1438
        %v1440 = vsel %vm481, %v1414, -inf
        %1441 = vmax.xlane.f32.xlu0 %v1440
        %v1442 = vpop.xlane.xlu0 %1441
        %v1443 = vsel %vm481, %v1415, -inf
        %1444 = vmax.xlane.f32.xlu0 %v1443
        %v1445 = vpop.xlane.xlu0 %1444
        %v1446 = vsel %vm481, %v1416, -inf
        %1447 = vmax.xlane.f32.xlu0 %v1446
        %v1448 = vpop.xlane.xlu0 %1447
        %v1449 = vsel %vm481, %v1417, -inf
        %1450 = vmax.xlane.f32.xlu0 %v1449
        %v1451 = vpop.xlane.xlu0 %1450
        %v1452 = vsel %vm481, %v1418, -inf
        %1453 = vmax.xlane.f32.xlu0 %v1452
        %v1454 = vpop.xlane.xlu0 %1453
        %v1455 = vsel %vm481, %v1419, -inf
        %1456 = vmax.xlane.f32.xlu0 %v1455
        %v1457 = vpop.xlane.xlu0 %1456
        %v1458 = vsel %vm481, %v1420, -inf
        %1459 = vmax.xlane.f32.xlu0 %v1458
        %v1460 = vpop.xlane.xlu0 %1459
        %v1461 = vsel %vm481, %v1421, -inf
        %1462 = vmax.xlane.f32.xlu0 %v1461
        %v1463 = vpop.xlane.xlu0 %1462
        %v1464 = vsel %vm481, %v1422, -inf
        %1465 = vmax.xlane.f32.xlu0 %v1464
        %v1466 = vpop.xlane.xlu0 %1465
        %v1467 = vsel %vm481, %v1423, -inf
        %1468 = vmax.xlane.f32.xlu0 %v1467
        %v1469 = vpop.xlane.xlu0 %1468
        %v1470 = vsel %vm481, %v1424, -inf
        %1471 = vmax.xlane.f32.xlu0 %v1470
        %v1472 = vpop.xlane.xlu0 %1471
        %v1473 = vsub.f32 %v1409, %v1427
        %v1474 = vsub.f32 %v1410, %v1430
        %v1475 = vsub.f32 %v1411, %v1433
        %v1476 = vsub.f32 %v1412, %v1436
        %v1477 = vsub.f32 %v1413, %v1439
        %v1478 = vsub.f32 %v1414, %v1442
        %v1479 = vsub.f32 %v1415, %v1445
        %v1480 = vsub.f32 %v1416, %v1448
        %v1481 = vsub.f32 %v1417, %v1451
        %v1482 = vsub.f32 %v1418, %v1454
        %v1483 = vsub.f32 %v1419, %v1457
        %v1484 = vsub.f32 %v1420, %v1460
        %v1485 = vsub.f32 %v1421, %v1463
        %v1486 = vsub.f32 %v1422, %v1466
        %v1487 = vsub.f32 %v1423, %v1469
        %v1488 = vsub.f32 %v1424, %v1472
        %v1489 = vmul.f32 %v1473, 1.442695
        %v1490 = vpow.pop %v1489
        %v1491 = vmul.f32 %v1474, 1.442695
        %v1492 = vpow.pop %v1491
        %v1493 = vmul.f32 %v1475, 1.442695
        %v1494 = vpow.pop %v1493
        %v1495 = vmul.f32 %v1476, 1.442695
        %v1496 = vpow.pop %v1495
        %v1497 = vmul.f32 %v1477, 1.442695
        %v1498 = vpow.pop %v1497
        %v1499 = vmul.f32 %v1478, 1.442695
        %v1500 = vpow.pop %v1499
        %v1501 = vmul.f32 %v1479, 1.442695
        %v1502 = vpow.pop %v1501
        %v1503 = vmul.f32 %v1480, 1.442695
        %v1504 = vpow.pop %v1503
        %v1505 = vmul.f32 %v1481, 1.442695
        %v1506 = vpow.pop %v1505
        %v1507 = vmul.f32 %v1482, 1.442695
        %v1508 = vpow.pop %v1507
        %v1509 = vmul.f32 %v1483, 1.442695
        %v1510 = vpow.pop %v1509
        %v1511 = vmul.f32 %v1484, 1.442695
        %v1512 = vpow.pop %v1511
        %v1513 = vmul.f32 %v1485, 1.442695
        %v1514 = vpow.pop %v1513
        %v1515 = vmul.f32 %v1486, 1.442695
        %v1516 = vpow.pop %v1515
        %v1517 = vmul.f32 %v1487, 1.442695
        %v1518 = vpow.pop %v1517
        %v1519 = vmul.f32 %v1488, 1.442695
        %v1520 = vpow.pop %v1519
        %v1521 = vsel %vm481, %v1490, 0.0
        %1522 = vadd.xlane.f32.xlu0 %v1521
        %v1523 = vpop.xlane.xlu0 %1522
        %v1524 = vsel %vm481, %v1492, 0.0
        %1525 = vadd.xlane.f32.xlu0 %v1524
        %v1526 = vpop.xlane.xlu0 %1525
        %v1527 = vsel %vm481, %v1494, 0.0
        %1528 = vadd.xlane.f32.xlu0 %v1527
        %v1529 = vpop.xlane.xlu0 %1528
        %v1530 = vsel %vm481, %v1496, 0.0
        %1531 = vadd.xlane.f32.xlu0 %v1530
        %v1532 = vpop.xlane.xlu0 %1531
        %v1533 = vsel %vm481, %v1498, 0.0
        %1534 = vadd.xlane.f32.xlu0 %v1533
        %v1535 = vpop.xlane.xlu0 %1534
        %v1536 = vsel %vm481, %v1500, 0.0
        %1537 = vadd.xlane.f32.xlu0 %v1536
        %v1538 = vpop.xlane.xlu0 %1537
        %v1539 = vsel %vm481, %v1502, 0.0
        %1540 = vadd.xlane.f32.xlu0 %v1539
        %v1541 = vpop.xlane.xlu0 %1540
        %v1542 = vsel %vm481, %v1504, 0.0
        %1543 = vadd.xlane.f32.xlu0 %v1542
        %v1544 = vpop.xlane.xlu0 %1543
        %v1545 = vsel %vm481, %v1506, 0.0
        %1546 = vadd.xlane.f32.xlu0 %v1545
        %v1547 = vpop.xlane.xlu0 %1546
        %v1548 = vsel %vm481, %v1508, 0.0
        %1549 = vadd.xlane.f32.xlu0 %v1548
        %v1550 = vpop.xlane.xlu0 %1549
        %v1551 = vsel %vm481, %v1510, 0.0
        %1552 = vadd.xlane.f32.xlu0 %v1551
        %v1553 = vpop.xlane.xlu0 %1552
        %v1554 = vsel %vm481, %v1512, 0.0
        %1555 = vadd.xlane.f32.xlu0 %v1554
        %v1556 = vpop.xlane.xlu0 %1555
        %v1557 = vsel %vm481, %v1514, 0.0
        %1558 = vadd.xlane.f32.xlu0 %v1557
        %v1559 = vpop.xlane.xlu0 %1558
        %v1560 = vsel %vm481, %v1516, 0.0
        %1561 = vadd.xlane.f32.xlu0 %v1560
        %v1562 = vpop.xlane.xlu0 %1561
        %v1563 = vsel %vm481, %v1518, 0.0
        %1564 = vadd.xlane.f32.xlu0 %v1563
        %v1565 = vpop.xlane.xlu0 %1564
        %v1566 = vsel %vm481, %v1520, 0.0
        %1567 = vadd.xlane.f32.xlu0 %v1566
        %v1568 = vpop.xlane.xlu0 %1567
        %v1569 = vrcp.pop %v1523
        %v1570 = vrcp.pop %v1526
        %v1571 = vrcp.pop %v1529
        %v1572 = vrcp.pop %v1532
        %v1573 = vrcp.pop %v1535
        %v1574 = vrcp.pop %v1538
        %v1575 = vrcp.pop %v1541
        %v1576 = vrcp.pop %v1544
        %v1577 = vrcp.pop %v1547
        %v1578 = vrcp.pop %v1550
        %v1579 = vrcp.pop %v1553
        %v1580 = vrcp.pop %v1556
        %v1581 = vrcp.pop %v1559
        %v1582 = vrcp.pop %v1562
        %v1583 = vrcp.pop %v1565
        %v1584 = vrcp.pop %v1568
        %v1585 = vmul.f32 %v1490, %v1569
        %v1586 = vmul.f32 %v1492, %v1570
        %v1587 = vmul.f32 %v1494, %v1571
        %v1588 = vmul.f32 %v1496, %v1572
        %v1589 = vmul.f32 %v1498, %v1573
        %v1590 = vmul.f32 %v1500, %v1574
        %v1591 = vmul.f32 %v1502, %v1575
        %v1592 = vmul.f32 %v1504, %v1576
        %v1593 = vmul.f32 %v1506, %v1577
        %v1594 = vmul.f32 %v1508, %v1578
        %v1595 = vmul.f32 %v1510, %v1579
        %v1596 = vmul.f32 %v1512, %v1580
        %v1597 = vmul.f32 %v1514, %v1581
        %v1598 = vmul.f32 %v1516, %v1582
        %v1599 = vmul.f32 %v1518, %v1583
        %v1600 = vmul.f32 %v1520, %v1584
        %v1601 = vpack.c.bf16 %v1586, %v1585
        %v1602 = vpack.c.bf16 %v1588, %v1587
        %v1603 = vpack.c.bf16 %v1590, %v1589
        %v1604 = vpack.c.bf16 %v1592, %v1591
        %v1605 = vpack.c.bf16 %v1594, %v1593
        %v1606 = vpack.c.bf16 %v1596, %v1595
        %v1607 = vpack.c.bf16 %v1598, %v1597
        %v1608 = vpack.c.bf16 %v1600, %v1599
        %v1610 = vsel %vm481, %v1601, 0
        %v1613 = vsel %vm481, %v1602, 0
        %v1616 = vsel %vm481, %v1603, 0
        %v1619 = vsel %vm481, %v1604, 0
        %1621 = vmatprep.subr.bf16.mxu0 0
        %1622 = vmatpush1.bf16.msra.mxu0 %v1167
        %1623 = vmatprep.subr.bf16.mxu0 0
        %1624 = vmatpush1.bf16.msra.mxu0 %v1169
        %1625 = vmatprep.subr.bf16.mxu0 0
        %1626 = vmatpush1.bf16.msra.mxu0 %v1171
        %1627 = vmatprep.subr.bf16.mxu0 0
        %1628 = vmatpush1.bf16.msra.mxu0 %v1173
        %1629 = vmatprep.subr.bf16.mxu0 0
        %1630 = vmatpush1.bf16.msra.mxu0 0
        %1631 = vmatprep.subr.bf16.mxu0 0
        %1632 = vmatpush1.bf16.msra.mxu0 0
        %1633 = vmatprep.subr.bf16.mxu0 0
        %1634 = vmatpush1.bf16.msra.mxu0 0
        %1635 = vmatprep.subr.bf16.mxu0 0
        %1636 = vmatpush1.bf16.msra.mxu0 0
        %1637 = vmatprep.subr.bf16.mxu0 0
        %1638 = vmatpush1.bf16.msra.mxu0 0
        %1639 = vmatprep.subr.bf16.mxu0 0
        %1640 = vmatpush1.bf16.msra.mxu0 0
        %1641 = vmatprep.subr.bf16.mxu0 0
        %1642 = vmatpush1.bf16.msra.mxu0 0
        %1643 = vmatprep.subr.bf16.mxu0 0
        %1644 = vmatpush1.bf16.msra.mxu0 0
        %1645 = vmatprep.subr.bf16.mxu0 0
        %1646 = vmatpush1.bf16.msra.mxu0 0
        %1647 = vmatprep.subr.bf16.mxu0 0
        %1648 = vmatpush1.bf16.msra.mxu0 0
        %1649 = vmatprep.subr.bf16.mxu0 0
        %1650 = vmatpush1.bf16.msra.mxu0 0
        %1651 = vmatprep.subr.bf16.mxu0 0
        %1652 = vmatpush1.bf16.msra.mxu0 0
        %1653 = vmatprep.mubr.bf16.mxu0 0
        %1654 = vmatmul.mubr.bf16.gmra.mrb[0].mxu0 %v1610
        %v1655 = vpop.f32.mrb[0].mxu0
        %v1656 = vadd.f32 0.0, %v1655
        %v1657 = vpop.f32.mrb[0].mxu0
        %v1658 = vpop.f32.mrb[0].mxu0
        %v1659 = vadd.f32 0.0, %v1658
        %v1660 = vpop.f32.mrb[0].mxu0
        %1661 = vmatprep.mubr.bf16.mxu0 0
        %1662 = vmatmul.mubr.bf16.gmra.mrb[0].mxu0 %v1613
        %v1663 = vpop.f32.mrb[0].mxu0
        %v1664 = vadd.f32 0.0, %v1663
        %v1665 = vpop.f32.mrb[0].mxu0
        %v1666 = vpop.f32.mrb[0].mxu0
        %v1667 = vadd.f32 0.0, %v1666
        %v1668 = vpop.f32.mrb[0].mxu0
        %1669 = vmatprep.mubr.bf16.mxu0 0
        %1670 = vmatmul.mubr.bf16.gmra.mrb[0].mxu0 %v1616
        %v1671 = vpop.f32.mrb[0].mxu0
        %v1672 = vadd.f32 0.0, %v1671
        %v1673 = vpop.f32.mrb[0].mxu0
        %v1674 = vpop.f32.mrb[0].mxu0
        %v1675 = vadd.f32 0.0, %v1674
        %v1676 = vpop.f32.mrb[0].mxu0
        %1677 = vmatprep.mubr.bf16.mxu0 0
        %1678 = vmatmul.mubr.bf16.gmra.mrb[0].mxu0 %v1619
        %v1679 = vpop.f32.mrb[0].mxu0
        %v1680 = vadd.f32 0.0, %v1679
        %v1681 = vpop.f32.mrb[0].mxu0
        %v1682 = vpop.f32.mrb[0].mxu0
        %v1683 = vadd.f32 0.0, %v1682
        %v1684 = vpop.f32.mrb[0].mxu0
        %1685 = vdwg.mxu0
        %v1687 = vsel %vm481, %v1605, 0
        %v1690 = vsel %vm481, %v1606, 0
        %v1693 = vsel %vm481, %v1607, 0
        %v1696 = vsel %vm481, %v1608, 0
        %1698 = vmatprep.subr.bf16.mxu0 0
        %1699 = vmatpush1.bf16.msra.mxu0 %v1175
        %1700 = vmatprep.subr.bf16.mxu0 0
        %1701 = vmatpush1.bf16.msra.mxu0 %v1177
        %1702 = vmatprep.subr.bf16.mxu0 0
        %1703 = vmatpush1.bf16.msra.mxu0 %v1179
        %1704 = vmatprep.subr.bf16.mxu0 0
        %1705 = vmatpush1.bf16.msra.mxu0 %v1181
        %1706 = vmatprep.subr.bf16.mxu0 0
        %1707 = vmatpush1.bf16.msra.mxu0 0
        %1708 = vmatprep.subr.bf16.mxu0 0
        %1709 = vmatpush1.bf16.msra.mxu0 0
        %1710 = vmatprep.subr.bf16.mxu0 0
        %1711 = vmatpush1.bf16.msra.mxu0 0
        %1712 = vmatprep.subr.bf16.mxu0 0
        %1713 = vmatpush1.bf16.msra.mxu0 0
        %1714 = vmatprep.subr.bf16.mxu0 0
        %1715 = vmatpush1.bf16.msra.mxu0 0
        %1716 = vmatprep.subr.bf16.mxu0 0
        %1717 = vmatpush1.bf16.msra.mxu0 0
        %1718 = vmatprep.subr.bf16.mxu0 0
        %1719 = vmatpush1.bf16.msra.mxu0 0
        %1720 = vmatprep.subr.bf16.mxu0 0
        %1721 = vmatpush1.bf16.msra.mxu0 0
        %1722 = vmatprep.subr.bf16.mxu0 0
        %1723 = vmatpush1.bf16.msra.mxu0 0
        %1724 = vmatprep.subr.bf16.mxu0 0
        %1725 = vmatpush1.bf16.msra.mxu0 0
        %1726 = vmatprep.subr.bf16.mxu0 0
        %1727 = vmatpush1.bf16.msra.mxu0 0
        %1728 = vmatprep.subr.bf16.mxu0 0
        %1729 = vmatpush1.bf16.msra.mxu0 0
        %1730 = vmatprep.mubr.bf16.mxu0 0
        %1731 = vmatmul.mubr.bf16.gmra.mrb[0].mxu0 %v1687
        %v1732 = vpop.f32.mrb[0].mxu0
        %v1733 = vadd.f32 0.0, %v1732
        %v1734 = vpop.f32.mrb[0].mxu0
        %v1735 = vpop.f32.mrb[0].mxu0
        %v1736 = vadd.f32 0.0, %v1735
        %v1737 = vpop.f32.mrb[0].mxu0
        %1738 = vmatprep.mubr.bf16.mxu0 0
        %1739 = vmatmul.mubr.bf16.gmra.mrb[0].mxu0 %v1690
        %v1740 = vpop.f32.mrb[0].mxu0
        %v1741 = vadd.f32 0.0, %v1740
        %v1742 = vpop.f32.mrb[0].mxu0
        %v1743 = vpop.f32.mrb[0].mxu0
        %v1744 = vadd.f32 0.0, %v1743
        %v1745 = vpop.f32.mrb[0].mxu0
        %1746 = vmatprep.mubr.bf16.mxu0 0
        %1747 = vmatmul.mubr.bf16.gmra.mrb[0].mxu0 %v1693
        %v1748 = vpop.f32.mrb[0].mxu0
        %v1749 = vadd.f32 0.0, %v1748
        %v1750 = vpop.f32.mrb[0].mxu0
        %v1751 = vpop.f32.mrb[0].mxu0
        %v1752 = vadd.f32 0.0, %v1751
        %v1753 = vpop.f32.mrb[0].mxu0
        %1754 = vmatprep.mubr.bf16.mxu0 0
        %1755 = vmatmul.mubr.bf16.gmra.mrb[0].mxu0 %v1696
        %v1756 = vpop.f32.mrb[0].mxu0
        %v1757 = vadd.f32 0.0, %v1756
        %v1758 = vpop.f32.mrb[0].mxu0
        %v1759 = vpop.f32.mrb[0].mxu0
        %v1760 = vadd.f32 0.0, %v1759
        %v1761 = vpop.f32.mrb[0].mxu0
        %1762 = vdwg.mxu0
        %v1763 = vpack.c.bf16 %v1659, %v1656
        %v1764 = vpack.c.bf16 %v1667, %v1664
        %v1765 = vpack.c.bf16 %v1675, %v1672
        %v1766 = vpack.c.bf16 %v1683, %v1680
        %v1767 = vpack.c.bf16 %v1736, %v1733
        %v1768 = vpack.c.bf16 %v1744, %v1741
        %v1769 = vpack.c.bf16 %v1752, %v1749
        %v1770 = vpack.c.bf16 %v1760, %v1757
        %v1771 = vld [vmem:[#allocation7] sm:$0xff]
        %v1772 = vld [vmem:[#allocation7 + $0x8] sm:$0xff]
        %v1773 = vld [vmem:[#allocation7 + $0x10] sm:$0xff]
        %v1774 = vld [vmem:[#allocation7 + $0x18] sm:$0xff]
        %v1775 = vld [vmem:[#allocation7 + $0x20] sm:$0xff]
        %v1776 = vld [vmem:[#allocation7 + $0x28] sm:$0xff]
        %v1783 = vunpack.c.l.b16 %v1771
        %v1784 = vunpack.c.h.b16 %v1771
        %v1785 = vunpack.c.l.b16 %v1772
        %v1786 = vunpack.c.h.b16 %v1772
        %v1787 = vunpack.c.l.b16 %v1773
        %v1788 = vunpack.c.h.b16 %v1773
        %v1789 = vunpack.c.l.b16 %v1774
        %v1790 = vunpack.c.h.b16 %v1774
        %v1791 = vunpack.c.l.b16 %v1775
        %v1792 = vunpack.c.h.b16 %v1775
        %v1793 = vunpack.c.l.b16 %v1776
        %v1794 = vunpack.c.h.b16 %v1776
        %v1795 = vpack.c.b16 %v1785, %v1783
        %v1796 = vpack.c.b16 %v1786, %v1784
        %v1797 = vpack.c.b16 %v1789, %v1787
        %v1798 = vpack.c.b16 %v1790, %v1788
        %v1799 = vpack.c.b16 %v1793, %v1791
        %v1800 = vpack.c.b16 %v1794, %v1792
        %v1808 = vsel %vm1214, %v1763, 0
        %v1811 = vsel %vm1214, %v1764, 0
        %v1814 = vsel %vm1214, %v1765, 0
        %v1817 = vsel %vm1214, %v1766, 0
        %v1820 = vsel %vm1214, %v1767, 0
        %v1823 = vsel %vm1214, %v1768, 0
        %v1826 = vsel %vm1214, %v1769, 0
        %v1829 = vsel %vm1214, %v1770, 0
        %1831 = vmatprep.subr.bf16.mxu0 %v1796
        %1832 = vmatpush1.bf16.msra.mxu0 %v1795
        %1833 = vmatprep.subr.bf16.mxu0 %v1798
        %1834 = vmatpush1.bf16.msra.mxu0 %v1797
        %1835 = vmatprep.subr.bf16.mxu0 %v1800
        %1836 = vmatpush1.bf16.msra.mxu0 %v1799
        %1837 = vmatprep.subr.bf16.mxu0 0
        %1838 = vmatpush1.bf16.msra.mxu0 0
        %1839 = vmatprep.subr.bf16.mxu0 0
        %1840 = vmatpush1.bf16.msra.mxu0 0
        %1841 = vmatprep.subr.bf16.mxu0 0
        %1842 = vmatpush1.bf16.msra.mxu0 0
        %1843 = vmatprep.subr.bf16.mxu0 0
        %1844 = vmatpush1.bf16.msra.mxu0 0
        %1845 = vmatprep.subr.bf16.mxu0 0
        %1846 = vmatpush1.bf16.msra.mxu0 0
        %1847 = vmatprep.subr.bf16.mxu0 0
        %1848 = vmatpush1.bf16.msra.mxu0 0
        %1849 = vmatprep.subr.bf16.mxu0 0
        %1850 = vmatpush1.bf16.msra.mxu0 0
        %1851 = vmatprep.subr.bf16.mxu0 0
        %1852 = vmatpush1.bf16.msra.mxu0 0
        %1853 = vmatprep.subr.bf16.mxu0 0
        %1854 = vmatpush1.bf16.msra.mxu0 0
        %1855 = vmatprep.subr.bf16.mxu0 0
        %1856 = vmatpush1.bf16.msra.mxu0 0
        %1857 = vmatprep.subr.bf16.mxu0 0
        %1858 = vmatpush1.bf16.msra.mxu0 0
        %1859 = vmatprep.subr.bf16.mxu0 0
        %1860 = vmatpush1.bf16.msra.mxu0 0
        %1861 = vmatprep.subr.bf16.mxu0 0
        %1862 = vmatpush1.bf16.msra.mxu0 0
        %1863 = vmatprep.mubr.bf16.mxu0 0
        %1864 = vmatmul.mubr.bf16.gmra.mrb[0].mxu0 %v1808
        %v1865 = vpop.f32.mrb[0].mxu0
        %v1866 = vadd.f32 0.0, %v1865
        %v1867 = vpop.f32.mrb[0].mxu0
        %v1868 = vadd.f32 0.0, %v1867
        %v1869 = vpop.f32.mrb[0].mxu0
        %v1870 = vadd.f32 0.0, %v1869
        %v1871 = vpop.f32.mrb[0].mxu0
        %v1872 = vadd.f32 0.0, %v1871
        %1873 = vmatprep.mubr.bf16.mxu0 0
        %1874 = vmatmul.mubr.bf16.gmra.mrb[0].mxu0 %v1811
        %v1875 = vpop.f32.mrb[0].mxu0
        %v1876 = vadd.f32 0.0, %v1875
        %v1877 = vpop.f32.mrb[0].mxu0
        %v1878 = vadd.f32 0.0, %v1877
        %v1879 = vpop.f32.mrb[0].mxu0
        %v1880 = vadd.f32 0.0, %v1879
        %v1881 = vpop.f32.mrb[0].mxu0
        %v1882 = vadd.f32 0.0, %v1881
        %1883 = vmatprep.mubr.bf16.mxu0 0
        %1884 = vmatmul.mubr.bf16.gmra.mrb[0].mxu0 %v1814
        %v1885 = vpop.f32.mrb[0].mxu0
        %v1886 = vadd.f32 0.0, %v1885
        %v1887 = vpop.f32.mrb[0].mxu0
        %v1888 = vadd.f32 0.0, %v1887
        %v1889 = vpop.f32.mrb[0].mxu0
        %v1890 = vadd.f32 0.0, %v1889
        %v1891 = vpop.f32.mrb[0].mxu0
        %v1892 = vadd.f32 0.0, %v1891
        %1893 = vmatprep.mubr.bf16.mxu0 0
        %1894 = vmatmul.mubr.bf16.gmra.mrb[0].mxu0 %v1817
        %v1895 = vpop.f32.mrb[0].mxu0
        %v1896 = vadd.f32 0.0, %v1895
        %v1897 = vpop.f32.mrb[0].mxu0
        %v1898 = vadd.f32 0.0, %v1897
        %v1899 = vpop.f32.mrb[0].mxu0
        %v1900 = vadd.f32 0.0, %v1899
        %v1901 = vpop.f32.mrb[0].mxu0
        %v1902 = vadd.f32 0.0, %v1901
        %1903 = vmatprep.mubr.bf16.mxu0 0
        %1904 = vmatmul.mubr.bf16.gmra.mrb[0].mxu0 %v1820
        %v1905 = vpop.f32.mrb[0].mxu0
        %v1906 = vadd.f32 0.0, %v1905
        %v1907 = vpop.f32.mrb[0].mxu0
        %v1908 = vadd.f32 0.0, %v1907
        %v1909 = vpop.f32.mrb[0].mxu0
        %v1910 = vadd.f32 0.0, %v1909
        %v1911 = vpop.f32.mrb[0].mxu0
        %v1912 = vadd.f32 0.0, %v1911
        %1913 = vmatprep.mubr.bf16.mxu0 0
        %1914 = vmatmul.mubr.bf16.gmra.mrb[0].mxu0 %v1823
        %v1915 = vpop.f32.mrb[0].mxu0
        %v1916 = vadd.f32 0.0, %v1915
        %v1917 = vpop.f32.mrb[0].mxu0
        %v1918 = vadd.f32 0.0, %v1917
        %v1919 = vpop.f32.mrb[0].mxu0
        %v1920 = vadd.f32 0.0, %v1919
        %v1921 = vpop.f32.mrb[0].mxu0
        %v1922 = vadd.f32 0.0, %v1921
        %1923 = vmatprep.mubr.bf16.mxu0 0
        %1924 = vmatmul.mubr.bf16.gmra.mrb[0].mxu0 %v1826
        %v1925 = vpop.f32.mrb[0].mxu0
        %v1926 = vadd.f32 0.0, %v1925
        %v1927 = vpop.f32.mrb[0].mxu0
        %v1928 = vadd.f32 0.0, %v1927
        %v1929 = vpop.f32.mrb[0].mxu0
        %v1930 = vadd.f32 0.0, %v1929
        %v1931 = vpop.f32.mrb[0].mxu0
        %v1932 = vadd.f32 0.0, %v1931
        %1933 = vmatprep.mubr.bf16.mxu0 0
        %1934 = vmatmul.mubr.bf16.gmra.mrb[0].mxu0 %v1829
        %v1935 = vpop.f32.mrb[0].mxu0
        %v1936 = vadd.f32 0.0, %v1935
        %v1937 = vpop.f32.mrb[0].mxu0
        %v1938 = vadd.f32 0.0, %v1937
        %v1939 = vpop.f32.mrb[0].mxu0
        %v1940 = vadd.f32 0.0, %v1939
        %v1941 = vpop.f32.mrb[0].mxu0
        %v1942 = vadd.f32 0.0, %v1941
        %1943 = vdwg.mxu0
        %v1944 = vadd.f32 %v1207, %v1866
        %v1945 = vadd.f32 %v1211, %v1868
        %v1946 = vadd.f32 %v1207, %v1870
        %v1947 = vadd.f32 %v1211, %v1872
        %v1948 = vadd.f32 %v1207, %v1876
        %v1949 = vadd.f32 %v1211, %v1878
        %v1950 = vadd.f32 %v1207, %v1880
        %v1951 = vadd.f32 %v1211, %v1882
        %v1952 = vadd.f32 %v1207, %v1886
        %v1953 = vadd.f32 %v1211, %v1888
        %v1954 = vadd.f32 %v1207, %v1890
        %v1955 = vadd.f32 %v1211, %v1892
        %v1956 = vadd.f32 %v1207, %v1896
        %v1957 = vadd.f32 %v1211, %v1898
        %v1958 = vadd.f32 %v1207, %v1900
        %v1959 = vadd.f32 %v1211, %v1902
        %v1960 = vadd.f32 %v1207, %v1906
        %v1961 = vadd.f32 %v1211, %v1908
        %v1962 = vadd.f32 %v1207, %v1910
        %v1963 = vadd.f32 %v1211, %v1912
        %v1964 = vadd.f32 %v1207, %v1916
        %v1965 = vadd.f32 %v1211, %v1918
        %v1966 = vadd.f32 %v1207, %v1920
        %v1967 = vadd.f32 %v1211, %v1922
        %v1968 = vadd.f32 %v1207, %v1926
        %v1969 = vadd.f32 %v1211, %v1928
        %v1970 = vadd.f32 %v1207, %v1930
        %v1971 = vadd.f32 %v1211, %v1932
        %v1972 = vadd.f32 %v1207, %v1936
        %v1973 = vadd.f32 %v1211, %v1938
        %v1974 = vadd.f32 %v1207, %v1940
        %v1975 = vadd.f32 %v1211, %v1942
        %1980 = vrot.lane.b32.xlu0 %v1135, 80
        %v1981 = vpop.permute.xlu0 %1980
        %1982 = vrot.lane.b32.xlu0 %v1137, 80
        %v1983 = vpop.permute.xlu0 %1982
        %1984 = vrot.lane.b32.xlu0 %v1139, 80
        %v1985 = vpop.permute.xlu0 %1984
        %1986 = vrot.lane.b32.xlu0 %v1141, 80
        %v1987 = vpop.permute.xlu0 %1986
        %1992 = vrot.lane.b32.xlu0 %v1151, 80
        %v1993 = vpop.permute.xlu0 %1992
        %1994 = vrot.lane.b32.xlu0 %v1153, 80
        %v1995 = vpop.permute.xlu0 %1994
        %1996 = vrot.lane.b32.xlu0 %v1155, 80
        %v1997 = vpop.permute.xlu0 %1996
        %1998 = vrot.lane.b32.xlu0 %v1157, 80
        %v1999 = vpop.permute.xlu0 %1998
        %v2001 = vsel %vm1214, %v1981, 0
        %v2004 = vsel %vm1214, %v1983, 0
        %v2007 = vsel %vm1214, %v1985, 0
        %v2010 = vsel %vm1214, %v1987, 0
        %v2013 = vsel %vm1214, %v1993, 0
        %v2016 = vsel %vm1214, %v1995, 0
        %v2019 = vsel %vm1214, %v1997, 0
        %v2022 = vsel %vm1214, %v1999, 0
        %2024 = vmatprep.subr.bf16.mxu0 0
        %2025 = vmatpush1.bf16.xpose.msra.mxu0 %v2013
        %2026 = vmatprep.subr.bf16.mxu0 0
        %2027 = vmatpush1.bf16.xpose.msra.mxu0 %v2016
        %2028 = vmatprep.subr.bf16.mxu0 0
        %2029 = vmatpush1.bf16.xpose.msra.mxu0 %v2019
        %2030 = vmatprep.subr.bf16.mxu0 0
        %2031 = vmatpush1.bf16.xpose.msra.mxu0 %v2022
        %2032 = vmatprep.subr.bf16.mxu0 0
        %2033 = vmatpush1.bf16.xpose.msra.mxu0 0
        %2034 = vmatprep.subr.bf16.mxu0 0
        %2035 = vmatpush1.bf16.xpose.msra.mxu0 0
        %2036 = vmatprep.subr.bf16.mxu0 0
        %2037 = vmatpush1.bf16.xpose.msra.mxu0 0
        %2038 = vmatprep.subr.bf16.mxu0 0
        %2039 = vmatpush1.bf16.xpose.msra.mxu0 0
        %2040 = vmatprep.subr.bf16.mxu0 0
        %2041 = vmatpush1.bf16.xpose.msra.mxu0 0
        %2042 = vmatprep.subr.bf16.mxu0 0
        %2043 = vmatpush1.bf16.xpose.msra.mxu0 0
        %2044 = vmatprep.subr.bf16.mxu0 0
        %2045 = vmatpush1.bf16.xpose.msra.mxu0 0
        %2046 = vmatprep.subr.bf16.mxu0 0
        %2047 = vmatpush1.bf16.xpose.msra.mxu0 0
        %2048 = vmatprep.subr.bf16.mxu0 0
        %2049 = vmatpush1.bf16.xpose.msra.mxu0 0
        %2050 = vmatprep.subr.bf16.mxu0 0
        %2051 = vmatpush1.bf16.xpose.msra.mxu0 0
        %2052 = vmatprep.subr.bf16.mxu0 0
        %2053 = vmatpush1.bf16.xpose.msra.mxu0 0
        %2054 = vmatprep.subr.bf16.mxu0 0
        %2055 = vmatpush1.bf16.xpose.msra.mxu0 0
        %2056 = vmatprep.mubr.bf16.mxu0 0
        %2057 = vmatmul.mubr.bf16.gmra.mrb[0].mxu0 %v2001
        %v2058 = vpop.f32.mrb[0].mxu0
        %v2059 = vadd.f32 0.0, %v2058
        %v2060 = vpop.f32.mrb[0].mxu0
        %v2061 = vpop.f32.mrb[0].mxu0
        %v2062 = vadd.f32 0.0, %v2061
        %v2063 = vpop.f32.mrb[0].mxu0
        %2064 = vmatprep.mubr.bf16.mxu0 0
        %2065 = vmatmul.mubr.bf16.gmra.mrb[0].mxu0 %v2004
        %v2066 = vpop.f32.mrb[0].mxu0
        %v2067 = vadd.f32 0.0, %v2066
        %v2068 = vpop.f32.mrb[0].mxu0
        %v2069 = vpop.f32.mrb[0].mxu0
        %v2070 = vadd.f32 0.0, %v2069
        %v2071 = vpop.f32.mrb[0].mxu0
        %2072 = vmatprep.mubr.bf16.mxu0 0
        %2073 = vmatmul.mubr.bf16.gmra.mrb[0].mxu0 %v2007
        %v2074 = vpop.f32.mrb[0].mxu0
        %v2075 = vadd.f32 0.0, %v2074
        %v2076 = vpop.f32.mrb[0].mxu0
        %v2077 = vpop.f32.mrb[0].mxu0
        %v2078 = vadd.f32 0.0, %v2077
        %v2079 = vpop.f32.mrb[0].mxu0
        %2080 = vmatprep.mubr.bf16.mxu0 0
        %2081 = vmatmul.mubr.bf16.gmra.mrb[0].mxu0 %v2010
        %v2082 = vpop.f32.mrb[0].mxu0
        %v2083 = vadd.f32 0.0, %v2082
        %v2084 = vpop.f32.mrb[0].mxu0
        %v2085 = vpop.f32.mrb[0].mxu0
        %v2086 = vadd.f32 0.0, %v2085
        %v2087 = vpop.f32.mrb[0].mxu0
        %2088 = vdwg.mxu0
        %2093 = vrot.lane.b32.xlu0 %v1143, 80
        %v2094 = vpop.permute.xlu0 %2093
        %2095 = vrot.lane.b32.xlu0 %v1145, 80
        %v2096 = vpop.permute.xlu0 %2095
        %2097 = vrot.lane.b32.xlu0 %v1147, 80
        %v2098 = vpop.permute.xlu0 %2097
        %2099 = vrot.lane.b32.xlu0 %v1149, 80
        %v2100 = vpop.permute.xlu0 %2099
        %2105 = vrot.lane.b32.xlu0 %v1159, 80
        %v2106 = vpop.permute.xlu0 %2105
        %2107 = vrot.lane.b32.xlu0 %v1161, 80
        %v2108 = vpop.permute.xlu0 %2107
        %2109 = vrot.lane.b32.xlu0 %v1163, 80
        %v2110 = vpop.permute.xlu0 %2109
        %2111 = vrot.lane.b32.xlu0 %v1165, 80
        %v2112 = vpop.permute.xlu0 %2111
        %v2114 = vsel %vm1214, %v2094, 0
        %v2117 = vsel %vm1214, %v2096, 0
        %v2120 = vsel %vm1214, %v2098, 0
        %v2123 = vsel %vm1214, %v2100, 0
        %v2126 = vsel %vm1214, %v2106, 0
        %v2129 = vsel %vm1214, %v2108, 0
        %v2132 = vsel %vm1214, %v2110, 0
        %v2135 = vsel %vm1214, %v2112, 0
        %2137 = vmatprep.subr.bf16.mxu0 0
        %2138 = vmatpush1.bf16.xpose.msra.mxu0 %v2126
        %2139 = vmatprep.subr.bf16.mxu0 0
        %2140 = vmatpush1.bf16.xpose.msra.mxu0 %v2129
        %2141 = vmatprep.subr.bf16.mxu0 0
        %2142 = vmatpush1.bf16.xpose.msra.mxu0 %v2132
        %2143 = vmatprep.subr.bf16.mxu0 0
        %2144 = vmatpush1.bf16.xpose.msra.mxu0 %v2135
        %2145 = vmatprep.subr.bf16.mxu0 0
        %2146 = vmatpush1.bf16.xpose.msra.mxu0 0
        %2147 = vmatprep.subr.bf16.mxu0 0
        %2148 = vmatpush1.bf16.xpose.msra.mxu0 0
        %2149 = vmatprep.subr.bf16.mxu0 0
        %2150 = vmatpush1.bf16.xpose.msra.mxu0 0
        %2151 = vmatprep.subr.bf16.mxu0 0
        %2152 = vmatpush1.bf16.xpose.msra.mxu0 0
        %2153 = vmatprep.subr.bf16.mxu0 0
        %2154 = vmatpush1.bf16.xpose.msra.mxu0 0
        %2155 = vmatprep.subr.bf16.mxu0 0
        %2156 = vmatpush1.bf16.xpose.msra.mxu0 0
        %2157 = vmatprep.subr.bf16.mxu0 0
        %2158 = vmatpush1.bf16.xpose.msra.mxu0 0
        %2159 = vmatprep.subr.bf16.mxu0 0
        %2160 = vmatpush1.bf16.xpose.msra.mxu0 0
        %2161 = vmatprep.subr.bf16.mxu0 0
        %2162 = vmatpush1.bf16.xpose.msra.mxu0 0
        %2163 = vmatprep.subr.bf16.mxu0 0
        %2164 = vmatpush1.bf16.xpose.msra.mxu0 0
        %2165 = vmatprep.subr.bf16.mxu0 0
        %2166 = vmatpush1.bf16.xpose.msra.mxu0 0
        %2167 = vmatprep.subr.bf16.mxu0 0
        %2168 = vmatpush1.bf16.xpose.msra.mxu0 0
        %2169 = vmatprep.mubr.bf16.mxu0 0
        %2170 = vmatmul.mubr.bf16.gmra.mrb[0].mxu0 %v2114
        %v2171 = vpop.f32.mrb[0].mxu0
        %v2172 = vadd.f32 0.0, %v2171
        %v2173 = vpop.f32.mrb[0].mxu0
        %v2174 = vpop.f32.mrb[0].mxu0
        %v2175 = vadd.f32 0.0, %v2174
        %v2176 = vpop.f32.mrb[0].mxu0
        %2177 = vmatprep.mubr.bf16.mxu0 0
        %2178 = vmatmul.mubr.bf16.gmra.mrb[0].mxu0 %v2117
        %v2179 = vpop.f32.mrb[0].mxu0
        %v2180 = vadd.f32 0.0, %v2179
        %v2181 = vpop.f32.mrb[0].mxu0
        %v2182 = vpop.f32.mrb[0].mxu0
        %v2183 = vadd.f32 0.0, %v2182
        %v2184 = vpop.f32.mrb[0].mxu0
        %2185 = vmatprep.mubr.bf16.mxu0 0
        %2186 = vmatmul.mubr.bf16.gmra.mrb[0].mxu0 %v2120
        %v2187 = vpop.f32.mrb[0].mxu0
        %v2188 = vadd.f32 0.0, %v2187
        %v2189 = vpop.f32.mrb[0].mxu0
        %v2190 = vpop.f32.mrb[0].mxu0
        %v2191 = vadd.f32 0.0, %v2190
        %v2192 = vpop.f32.mrb[0].mxu0
        %2193 = vmatprep.mubr.bf16.mxu0 0
        %2194 = vmatmul.mubr.bf16.gmra.mrb[0].mxu0 %v2123
        %v2195 = vpop.f32.mrb[0].mxu0
        %v2196 = vadd.f32 0.0, %v2195
        %v2197 = vpop.f32.mrb[0].mxu0
        %v2198 = vpop.f32.mrb[0].mxu0
        %v2199 = vadd.f32 0.0, %v2198
        %v2200 = vpop.f32.mrb[0].mxu0
        %2201 = vdwg.mxu0
        %v2202 = vsel %vm1401, %v2059, -inf
        %v2203 = vsel %vm1402, %v2062, -inf
        %v2204 = vsel %vm1403, %v2067, -inf
        %v2205 = vsel %vm1404, %v2070, -inf
        %v2206 = vsel %vm1405, %v2075, -inf
        %v2207 = vsel %vm1406, %v2078, -inf
        %v2208 = vsel %vm1407, %v2083, -inf
        %v2209 = vsel %vm1408, %v2086, -inf
        %v2210 = vsel %vm1401, %v2172, -inf
        %v2211 = vsel %vm1402, %v2175, -inf
        %v2212 = vsel %vm1403, %v2180, -inf
        %v2213 = vsel %vm1404, %v2183, -inf
        %v2214 = vsel %vm1405, %v2188, -inf
        %v2215 = vsel %vm1406, %v2191, -inf
        %v2216 = vsel %vm1407, %v2196, -inf
        %v2217 = vsel %vm1408, %v2199, -inf
        %v2218 = vsel %vm481, %v2202, -inf
        %2219 = vmax.xlane.f32.xlu0 %v2218
        %v2220 = vpop.xlane.xlu0 %2219
        %v2221 = vsel %vm481, %v2203, -inf
        %2222 = vmax.xlane.f32.xlu0 %v2221
        %v2223 = vpop.xlane.xlu0 %2222
        %v2224 = vsel %vm481, %v2204, -inf
        %2225 = vmax.xlane.f32.xlu0 %v2224
        %v2226 = vpop.xlane.xlu0 %2225
        %v2227 = vsel %vm481, %v2205, -inf
        %2228 = vmax.xlane.f32.xlu0 %v2227
        %v2229 = vpop.xlane.xlu0 %2228
        %v2230 = vsel %vm481, %v2206, -inf
        %2231 = vmax.xlane.f32.xlu0 %v2230
        %v2232 = vpop.xlane.xlu0 %2231
        %v2233 = vsel %vm481, %v2207, -inf
        %2234 = vmax.xlane.f32.xlu0 %v2233
        %v2235 = vpop.xlane.xlu0 %2234
        %v2236 = vsel %vm481, %v2208, -inf
        %2237 = vmax.xlane.f32.xlu0 %v2236
        %v2238 = vpop.xlane.xlu0 %2237
        %v2239 = vsel %vm481, %v2209, -inf
        %2240 = vmax.xlane.f32.xlu0 %v2239
        %v2241 = vpop.xlane.xlu0 %2240
        %v2242 = vsel %vm481, %v2210, -inf
        %2243 = vmax.xlane.f32.xlu0 %v2242
        %v2244 = vpop.xlane.xlu0 %2243
        %v2245 = vsel %vm481, %v2211, -inf
        %2246 = vmax.xlane.f32.xlu0 %v2245
        %v2247 = vpop.xlane.xlu0 %2246
        %v2248 = vsel %vm481, %v2212, -inf
        %2249 = vmax.xlane.f32.xlu0 %v2248
        %v2250 = vpop.xlane.xlu0 %2249
        %v2251 = vsel %vm481, %v2213, -inf
        %2252 = vmax.xlane.f32.xlu0 %v2251
        %v2253 = vpop.xlane.xlu0 %2252
        %v2254 = vsel %vm481, %v2214, -inf
        %2255 = vmax.xlane.f32.xlu0 %v2254
        %v2256 = vpop.xlane.xlu0 %2255
        %v2257 = vsel %vm481, %v2215, -inf
        %2258 = vmax.xlane.f32.xlu0 %v2257
        %v2259 = vpop.xlane.xlu0 %2258
        %v2260 = vsel %vm481, %v2216, -inf
        %2261 = vmax.xlane.f32.xlu0 %v2260
        %v2262 = vpop.xlane.xlu0 %2261
        %v2263 = vsel %vm481, %v2217, -inf
        %2264 = vmax.xlane.f32.xlu0 %v2263
        %v2265 = vpop.xlane.xlu0 %2264
        %v2266 = vsub.f32 %v2202, %v2220
        %v2267 = vsub.f32 %v2203, %v2223
        %v2268 = vsub.f32 %v2204, %v2226
        %v2269 = vsub.f32 %v2205, %v2229
        %v2270 = vsub.f32 %v2206, %v2232
        %v2271 = vsub.f32 %v2207, %v2235
        %v2272 = vsub.f32 %v2208, %v2238
        %v2273 = vsub.f32 %v2209, %v2241
        %v2274 = vsub.f32 %v2210, %v2244
        %v2275 = vsub.f32 %v2211, %v2247
        %v2276 = vsub.f32 %v2212, %v2250
        %v2277 = vsub.f32 %v2213, %v2253
        %v2278 = vsub.f32 %v2214, %v2256
        %v2279 = vsub.f32 %v2215, %v2259
        %v2280 = vsub.f32 %v2216, %v2262
        %v2281 = vsub.f32 %v2217, %v2265
        %v2282 = vmul.f32 %v2266, 1.442695
        %v2283 = vpow.pop %v2282
        %v2284 = vmul.f32 %v2267, 1.442695
        %v2285 = vpow.pop %v2284
        %v2286 = vmul.f32 %v2268, 1.442695
        %v2287 = vpow.pop %v2286
        %v2288 = vmul.f32 %v2269, 1.442695
        %v2289 = vpow.pop %v2288
        %v2290 = vmul.f32 %v2270, 1.442695
        %v2291 = vpow.pop %v2290
        %v2292 = vmul.f32 %v2271, 1.442695
        %v2293 = vpow.pop %v2292
        %v2294 = vmul.f32 %v2272, 1.442695
        %v2295 = vpow.pop %v2294
        %v2296 = vmul.f32 %v2273, 1.442695
        %v2297 = vpow.pop %v2296
        %v2298 = vmul.f32 %v2274, 1.442695
        %v2299 = vpow.pop %v2298
        %v2300 = vmul.f32 %v2275, 1.442695
        %v2301 = vpow.pop %v2300
        %v2302 = vmul.f32 %v2276, 1.442695
        %v2303 = vpow.pop %v2302
        %v2304 = vmul.f32 %v2277, 1.442695
        %v2305 = vpow.pop %v2304
        %v2306 = vmul.f32 %v2278, 1.442695
        %v2307 = vpow.pop %v2306
        %v2308 = vmul.f32 %v2279, 1.442695
        %v2309 = vpow.pop %v2308
        %v2310 = vmul.f32 %v2280, 1.442695
        %v2311 = vpow.pop %v2310
        %v2312 = vmul.f32 %v2281, 1.442695
        %v2313 = vpow.pop %v2312
        %v2314 = vsel %vm481, %v2283, 0.0
        %2315 = vadd.xlane.f32.xlu0 %v2314
        %v2316 = vpop.xlane.xlu0 %2315
        %v2317 = vsel %vm481, %v2285, 0.0
        %2318 = vadd.xlane.f32.xlu0 %v2317
        %v2319 = vpop.xlane.xlu0 %2318
        %v2320 = vsel %vm481, %v2287, 0.0
        %2321 = vadd.xlane.f32.xlu0 %v2320
        %v2322 = vpop.xlane.xlu0 %2321
        %v2323 = vsel %vm481, %v2289, 0.0
        %2324 = vadd.xlane.f32.xlu0 %v2323
        %v2325 = vpop.xlane.xlu0 %2324
        %v2326 = vsel %vm481, %v2291, 0.0
        %2327 = vadd.xlane.f32.xlu0 %v2326
        %v2328 = vpop.xlane.xlu0 %2327
        %v2329 = vsel %vm481, %v2293, 0.0
        %2330 = vadd.xlane.f32.xlu0 %v2329
        %v2331 = vpop.xlane.xlu0 %2330
        %v2332 = vsel %vm481, %v2295, 0.0
        %2333 = vadd.xlane.f32.xlu0 %v2332
        %v2334 = vpop.xlane.xlu0 %2333
        %v2335 = vsel %vm481, %v2297, 0.0
        %2336 = vadd.xlane.f32.xlu0 %v2335
        %v2337 = vpop.xlane.xlu0 %2336
        %v2338 = vsel %vm481, %v2299, 0.0
        %2339 = vadd.xlane.f32.xlu0 %v2338
        %v2340 = vpop.xlane.xlu0 %2339
        %v2341 = vsel %vm481, %v2301, 0.0
        %2342 = vadd.xlane.f32.xlu0 %v2341
        %v2343 = vpop.xlane.xlu0 %2342
        %v2344 = vsel %vm481, %v2303, 0.0
        %2345 = vadd.xlane.f32.xlu0 %v2344
        %v2346 = vpop.xlane.xlu0 %2345
        %v2347 = vsel %vm481, %v2305, 0.0
        %2348 = vadd.xlane.f32.xlu0 %v2347
        %v2349 = vpop.xlane.xlu0 %2348
        %v2350 = vsel %vm481, %v2307, 0.0
        %2351 = vadd.xlane.f32.xlu0 %v2350
        %v2352 = vpop.xlane.xlu0 %2351
        %v2353 = vsel %vm481, %v2309, 0.0
        %2354 = vadd.xlane.f32.xlu0 %v2353
        %v2355 = vpop.xlane.xlu0 %2354
        %v2356 = vsel %vm481, %v2311, 0.0
        %2357 = vadd.xlane.f32.xlu0 %v2356
        %v2358 = vpop.xlane.xlu0 %2357
        %v2359 = vsel %vm481, %v2313, 0.0
        %2360 = vadd.xlane.f32.xlu0 %v2359
        %v2361 = vpop.xlane.xlu0 %2360
        %v2362 = vrcp.pop %v2316
        %v2363 = vrcp.pop %v2319
        %v2364 = vrcp.pop %v2322
        %v2365 = vrcp.pop %v2325
        %v2366 = vrcp.pop %v2328
        %v2367 = vrcp.pop %v2331
        %v2368 = vrcp.pop %v2334
        %v2369 = vrcp.pop %v2337
        %v2370 = vrcp.pop %v2340
        %v2371 = vrcp.pop %v2343
        %v2372 = vrcp.pop %v2346
        %v2373 = vrcp.pop %v2349
        %v2374 = vrcp.pop %v2352
        %v2375 = vrcp.pop %v2355
        %v2376 = vrcp.pop %v2358
        %v2377 = vrcp.pop %v2361
        %v2378 = vmul.f32 %v2283, %v2362
        %v2379 = vmul.f32 %v2285, %v2363
        %v2380 = vmul.f32 %v2287, %v2364
        %v2381 = vmul.f32 %v2289, %v2365
        %v2382 = vmul.f32 %v2291, %v2366
        %v2383 = vmul.f32 %v2293, %v2367
        %v2384 = vmul.f32 %v2295, %v2368
        %v2385 = vmul.f32 %v2297, %v2369
        %v2386 = vmul.f32 %v2299, %v2370
        %v2387 = vmul.f32 %v2301, %v2371
        %v2388 = vmul.f32 %v2303, %v2372
        %v2389 = vmul.f32 %v2305, %v2373
        %v2390 = vmul.f32 %v2307, %v2374
        %v2391 = vmul.f32 %v2309, %v2375
        %v2392 = vmul.f32 %v2311, %v2376
        %v2393 = vmul.f32 %v2313, %v2377
        %v2394 = vpack.c.bf16 %v2379, %v2378
        %v2395 = vpack.c.bf16 %v2381, %v2380
        %v2396 = vpack.c.bf16 %v2383, %v2382
        %v2397 = vpack.c.bf16 %v2385, %v2384
        %v2398 = vpack.c.bf16 %v2387, %v2386
        %v2399 = vpack.c.bf16 %v2389, %v2388
        %v2400 = vpack.c.bf16 %v2391, %v2390
        %v2401 = vpack.c.bf16 %v2393, %v2392
        %2406 = vrot.lane.b32.xlu0 %v1167, 80
        %v2407 = vpop.permute.xlu0 %2406
        %2408 = vrot.lane.b32.xlu0 %v1169, 80
        %v2409 = vpop.permute.xlu0 %2408
        %2410 = vrot.lane.b32.xlu0 %v1171, 80
        %v2411 = vpop.permute.xlu0 %2410
        %2412 = vrot.lane.b32.xlu0 %v1173, 80
        %v2413 = vpop.permute.xlu0 %2412
        %v2419 = vsel %vm481, %v2394, 0
        %v2422 = vsel %vm481, %v2395, 0
        %v2425 = vsel %vm481, %v2396, 0
        %v2428 = vsel %vm481, %v2397, 0
        %2430 = vmatprep.subr.bf16.mxu0 0
        %2431 = vmatpush1.bf16.msra.mxu0 %v2407
        %2432 = vmatprep.subr.bf16.mxu0 0
        %2433 = vmatpush1.bf16.msra.mxu0 %v2409
        %2434 = vmatprep.subr.bf16.mxu0 0
        %2435 = vmatpush1.bf16.msra.mxu0 %v2411
        %2436 = vmatprep.subr.bf16.mxu0 0
        %2437 = vmatpush1.bf16.msra.mxu0 %v2413
        %2438 = vmatprep.subr.bf16.mxu0 0
        %2439 = vmatpush1.bf16.msra.mxu0 0
        %2440 = vmatprep.subr.bf16.mxu0 0
        %2441 = vmatpush1.bf16.msra.mxu0 0
        %2442 = vmatprep.subr.bf16.mxu0 0
        %2443 = vmatpush1.bf16.msra.mxu0 0
        %2444 = vmatprep.subr.bf16.mxu0 0
        %2445 = vmatpush1.bf16.msra.mxu0 0
        %2446 = vmatprep.subr.bf16.mxu0 0
        %2447 = vmatpush1.bf16.msra.mxu0 0
        %2448 = vmatprep.subr.bf16.mxu0 0
        %2449 = vmatpush1.bf16.msra.mxu0 0
        %2450 = vmatprep.subr.bf16.mxu0 0
        %2451 = vmatpush1.bf16.msra.mxu0 0
        %2452 = vmatprep.subr.bf16.mxu0 0
        %2453 = vmatpush1.bf16.msra.mxu0 0
        %2454 = vmatprep.subr.bf16.mxu0 0
        %2455 = vmatpush1.bf16.msra.mxu0 0
        %2456 = vmatprep.subr.bf16.mxu0 0
        %2457 = vmatpush1.bf16.msra.mxu0 0
        %2458 = vmatprep.subr.bf16.mxu0 0
        %2459 = vmatpush1.bf16.msra.mxu0 0
        %2460 = vmatprep.subr.bf16.mxu0 0
        %2461 = vmatpush1.bf16.msra.mxu0 0
        %2462 = vmatprep.mubr.bf16.mxu0 0
        %2463 = vmatmul.mubr.bf16.gmra.mrb[0].mxu0 %v2419
        %v2464 = vpop.f32.mrb[0].mxu0
        %v2465 = vadd.f32 0.0, %v2464
        %v2466 = vpop.f32.mrb[0].mxu0
        %v2467 = vpop.f32.mrb[0].mxu0
        %v2468 = vadd.f32 0.0, %v2467
        %v2469 = vpop.f32.mrb[0].mxu0
        %2470 = vmatprep.mubr.bf16.mxu0 0
        %2471 = vmatmul.mubr.bf16.gmra.mrb[0].mxu0 %v2422
        %v2472 = vpop.f32.mrb[0].mxu0
        %v2473 = vadd.f32 0.0, %v2472
        %v2474 = vpop.f32.mrb[0].mxu0
        %v2475 = vpop.f32.mrb[0].mxu0
        %v2476 = vadd.f32 0.0, %v2475
        %v2477 = vpop.f32.mrb[0].mxu0
        %2478 = vmatprep.mubr.bf16.mxu0 0
        %2479 = vmatmul.mubr.bf16.gmra.mrb[0].mxu0 %v2425
        %v2480 = vpop.f32.mrb[0].mxu0
        %v2481 = vadd.f32 0.0, %v2480
        %v2482 = vpop.f32.mrb[0].mxu0
        %v2483 = vpop.f32.mrb[0].mxu0
        %v2484 = vadd.f32 0.0, %v2483
        %v2485 = vpop.f32.mrb[0].mxu0
        %2486 = vmatprep.mubr.bf16.mxu0 0
        %2487 = vmatmul.mubr.bf16.gmra.mrb[0].mxu0 %v2428
        %v2488 = vpop.f32.mrb[0].mxu0
        %v2489 = vadd.f32 0.0, %v2488
        %v2490 = vpop.f32.mrb[0].mxu0
        %v2491 = vpop.f32.mrb[0].mxu0
        %v2492 = vadd.f32 0.0, %v2491
        %v2493 = vpop.f32.mrb[0].mxu0
        %2494 = vdwg.mxu0
        %2499 = vrot.lane.b32.xlu0 %v1175, 80
        %v2500 = vpop.permute.xlu0 %2499
        %2501 = vrot.lane.b32.xlu0 %v1177, 80
        %v2502 = vpop.permute.xlu0 %2501
        %2503 = vrot.lane.b32.xlu0 %v1179, 80
        %v2504 = vpop.permute.xlu0 %2503
        %2505 = vrot.lane.b32.xlu0 %v1181, 80
        %v2506 = vpop.permute.xlu0 %2505
        %v2512 = vsel %vm481, %v2398, 0
        %v2515 = vsel %vm481, %v2399, 0
        %v2518 = vsel %vm481, %v2400, 0
        %v2521 = vsel %vm481, %v2401, 0
        %2523 = vmatprep.subr.bf16.mxu0 0
        %2524 = vmatpush1.bf16.msra.mxu0 %v2500
        %2525 = vmatprep.subr.bf16.mxu0 0
        %2526 = vmatpush1.bf16.msra.mxu0 %v2502
        %2527 = vmatprep.subr.bf16.mxu0 0
        %2528 = vmatpush1.bf16.msra.mxu0 %v2504
        %2529 = vmatprep.subr.bf16.mxu0 0
        %2530 = vmatpush1.bf16.msra.mxu0 %v2506
        %2531 = vmatprep.subr.bf16.mxu0 0
        %2532 = vmatpush1.bf16.msra.mxu0 0
        %2533 = vmatprep.subr.bf16.mxu0 0
        %2534 = vmatpush1.bf16.msra.mxu0 0
        %2535 = vmatprep.subr.bf16.mxu0 0
        %2536 = vmatpush1.bf16.msra.mxu0 0
        %2537 = vmatprep.subr.bf16.mxu0 0
        %2538 = vmatpush1.bf16.msra.mxu0 0
        %2539 = vmatprep.subr.bf16.mxu0 0
        %2540 = vmatpush1.bf16.msra.mxu0 0
        %2541 = vmatprep.subr.bf16.mxu0 0
        %2542 = vmatpush1.bf16.msra.mxu0 0
        %2543 = vmatprep.subr.bf16.mxu0 0
        %2544 = vmatpush1.bf16.msra.mxu0 0
        %2545 = vmatprep.subr.bf16.mxu0 0
        %2546 = vmatpush1.bf16.msra.mxu0 0
        %2547 = vmatprep.subr.bf16.mxu0 0
        %2548 = vmatpush1.bf16.msra.mxu0 0
        %2549 = vmatprep.subr.bf16.mxu0 0
        %2550 = vmatpush1.bf16.msra.mxu0 0
        %2551 = vmatprep.subr.bf16.mxu0 0
        %2552 = vmatpush1.bf16.msra.mxu0 0
        %2553 = vmatprep.subr.bf16.mxu0 0
        %2554 = vmatpush1.bf16.msra.mxu0 0
        %2555 = vmatprep.mubr.bf16.mxu0 0
        %2556 = vmatmul.mubr.bf16.gmra.mrb[0].mxu0 %v2512
        %v2557 = vpop.f32.mrb[0].mxu0
        %v2558 = vadd.f32 0.0, %v2557
        %v2559 = vpop.f32.mrb[0].mxu0
        %v2560 = vpop.f32.mrb[0].mxu0
        %v2561 = vadd.f32 0.0, %v2560
        %v2562 = vpop.f32.mrb[0].mxu0
        %2563 = vmatprep.mubr.bf16.mxu0 0
        %2564 = vmatmul.mubr.bf16.gmra.mrb[0].mxu0 %v2515
        %v2565 = vpop.f32.mrb[0].mxu0
        %v2566 = vadd.f32 0.0, %v2565
        %v2567 = vpop.f32.mrb[0].mxu0
        %v2568 = vpop.f32.mrb[0].mxu0
        %v2569 = vadd.f32 0.0, %v2568
        %v2570 = vpop.f32.mrb[0].mxu0
        %2571 = vmatprep.mubr.bf16.mxu0 0
        %2572 = vmatmul.mubr.bf16.gmra.mrb[0].mxu0 %v2518
        %v2573 = vpop.f32.mrb[0].mxu0
        %v2574 = vadd.f32 0.0, %v2573
        %v2575 = vpop.f32.mrb[0].mxu0
        %v2576 = vpop.f32.mrb[0].mxu0
        %v2577 = vadd.f32 0.0, %v2576
        %v2578 = vpop.f32.mrb[0].mxu0
        %2579 = vmatprep.mubr.bf16.mxu0 0
        %2580 = vmatmul.mubr.bf16.gmra.mrb[0].mxu0 %v2521
        %v2581 = vpop.f32.mrb[0].mxu0
        %v2582 = vadd.f32 0.0, %v2581
        %v2583 = vpop.f32.mrb[0].mxu0
        %v2584 = vpop.f32.mrb[0].mxu0
        %v2585 = vadd.f32 0.0, %v2584
        %v2586 = vpop.f32.mrb[0].mxu0
        %2587 = vdwg.mxu0
        %v2588 = vpack.c.bf16 %v2468, %v2465
        %v2589 = vpack.c.bf16 %v2476, %v2473
        %v2590 = vpack.c.bf16 %v2484, %v2481
        %v2591 = vpack.c.bf16 %v2492, %v2489
        %v2592 = vpack.c.bf16 %v2561, %v2558
        %v2593 = vpack.c.bf16 %v2569, %v2566
        %v2594 = vpack.c.bf16 %v2577, %v2574
        %v2595 = vpack.c.bf16 %v2585, %v2582
        %v2596 = vld [vmem:[#allocation7 + $0x30] sm:$0xff]
        %v2597 = vld [vmem:[#allocation7 + $0x38] sm:$0xff]
        %v2598 = vld [vmem:[#allocation7 + $0x40] sm:$0xff]
        %v2599 = vld [vmem:[#allocation7 + $0x48] sm:$0xff]
        %v2600 = vld [vmem:[#allocation7 + $0x50] sm:$0xff]
        %v2601 = vld [vmem:[#allocation7 + $0x58] sm:$0xff]
        %v2608 = vunpack.c.l.b16 %v2596
        %v2609 = vunpack.c.h.b16 %v2596
        %v2610 = vunpack.c.l.b16 %v2597
        %v2611 = vunpack.c.h.b16 %v2597
        %v2612 = vunpack.c.l.b16 %v2598
        %v2613 = vunpack.c.h.b16 %v2598
        %v2614 = vunpack.c.l.b16 %v2599
        %v2615 = vunpack.c.h.b16 %v2599
        %v2616 = vunpack.c.l.b16 %v2600
        %v2617 = vunpack.c.h.b16 %v2600
        %v2618 = vunpack.c.l.b16 %v2601
        %v2619 = vunpack.c.h.b16 %v2601
        %v2620 = vpack.c.b16 %v2610, %v2608
        %v2621 = vpack.c.b16 %v2611, %v2609
        %v2622 = vpack.c.b16 %v2614, %v2612
        %v2623 = vpack.c.b16 %v2615, %v2613
        %v2624 = vpack.c.b16 %v2618, %v2616
        %v2625 = vpack.c.b16 %v2619, %v2617
        %v2633 = vsel %vm1214, %v2588, 0
        %v2636 = vsel %vm1214, %v2589, 0
        %v2639 = vsel %vm1214, %v2590, 0
        %v2642 = vsel %vm1214, %v2591, 0
        %v2645 = vsel %vm1214, %v2592, 0
        %v2648 = vsel %vm1214, %v2593, 0
        %v2651 = vsel %vm1214, %v2594, 0
        %v2654 = vsel %vm1214, %v2595, 0
        %2656 = vmatprep.subr.bf16.mxu0 %v2621
        %2657 = vmatpush1.bf16.msra.mxu0 %v2620
        %2658 = vmatprep.subr.bf16.mxu0 %v2623
        %2659 = vmatpush1.bf16.msra.mxu0 %v2622
        %2660 = vmatprep.subr.bf16.mxu0 %v2625
        %2661 = vmatpush1.bf16.msra.mxu0 %v2624
        %2662 = vmatprep.subr.bf16.mxu0 0
        %2663 = vmatpush1.bf16.msra.mxu0 0
        %2664 = vmatprep.subr.bf16.mxu0 0
        %2665 = vmatpush1.bf16.msra.mxu0 0
        %2666 = vmatprep.subr.bf16.mxu0 0
        %2667 = vmatpush1.bf16.msra.mxu0 0
        %2668 = vmatprep.subr.bf16.mxu0 0
        %2669 = vmatpush1.bf16.msra.mxu0 0
        %2670 = vmatprep.subr.bf16.mxu0 0
        %2671 = vmatpush1.bf16.msra.mxu0 0
        %2672 = vmatprep.subr.bf16.mxu0 0
        %2673 = vmatpush1.bf16.msra.mxu0 0
        %2674 = vmatprep.subr.bf16.mxu0 0
        %2675 = vmatpush1.bf16.msra.mxu0 0
        %2676 = vmatprep.subr.bf16.mxu0 0
        %2677 = vmatpush1.bf16.msra.mxu0 0
        %2678 = vmatprep.subr.bf16.mxu0 0
        %2679 = vmatpush1.bf16.msra.mxu0 0
        %2680 = vmatprep.subr.bf16.mxu0 0
        %2681 = vmatpush1.bf16.msra.mxu0 0
        %2682 = vmatprep.subr.bf16.mxu0 0
        %2683 = vmatpush1.bf16.msra.mxu0 0
        %2684 = vmatprep.subr.bf16.mxu0 0
        %2685 = vmatpush1.bf16.msra.mxu0 0
        %2686 = vmatprep.subr.bf16.mxu0 0
        %2687 = vmatpush1.bf16.msra.mxu0 0
        %2688 = vmatprep.mubr.bf16.mxu0 0
        %2689 = vmatmul.mubr.bf16.gmra.mrb[0].mxu0 %v2633
        %v2690 = vpop.f32.mrb[0].mxu0
        %v2691 = vadd.f32 0.0, %v2690
        %v2692 = vpop.f32.mrb[0].mxu0
        %v2693 = vadd.f32 0.0, %v2692
        %v2694 = vpop.f32.mrb[0].mxu0
        %v2695 = vadd.f32 0.0, %v2694
        %v2696 = vpop.f32.mrb[0].mxu0
        %v2697 = vadd.f32 0.0, %v2696
        %2698 = vmatprep.mubr.bf16.mxu0 0
        %2699 = vmatmul.mubr.bf16.gmra.mrb[0].mxu0 %v2636
        %v2700 = vpop.f32.mrb[0].mxu0
        %v2701 = vadd.f32 0.0, %v2700
        %v2702 = vpop.f32.mrb[0].mxu0
        %v2703 = vadd.f32 0.0, %v2702
        %v2704 = vpop.f32.mrb[0].mxu0
        %v2705 = vadd.f32 0.0, %v2704
        %v2706 = vpop.f32.mrb[0].mxu0
        %v2707 = vadd.f32 0.0, %v2706
        %2708 = vmatprep.mubr.bf16.mxu0 0
        %2709 = vmatmul.mubr.bf16.gmra.mrb[0].mxu0 %v2639
        %v2710 = vpop.f32.mrb[0].mxu0
        %v2711 = vadd.f32 0.0, %v2710
        %v2712 = vpop.f32.mrb[0].mxu0
        %v2713 = vadd.f32 0.0, %v2712
        %v2714 = vpop.f32.mrb[0].mxu0
        %v2715 = vadd.f32 0.0, %v2714
        %v2716 = vpop.f32.mrb[0].mxu0
        %v2717 = vadd.f32 0.0, %v2716
        %2718 = vmatprep.mubr.bf16.mxu0 0
        %2719 = vmatmul.mubr.bf16.gmra.mrb[0].mxu0 %v2642
        %v2720 = vpop.f32.mrb[0].mxu0
        %v2721 = vadd.f32 0.0, %v2720
        %v2722 = vpop.f32.mrb[0].mxu0
        %v2723 = vadd.f32 0.0, %v2722
        %v2724 = vpop.f32.mrb[0].mxu0
        %v2725 = vadd.f32 0.0, %v2724
        %v2726 = vpop.f32.mrb[0].mxu0
        %v2727 = vadd.f32 0.0, %v2726
        %2728 = vmatprep.mubr.bf16.mxu0 0
        %2729 = vmatmul.mubr.bf16.gmra.mrb[0].mxu0 %v2645
        %v2730 = vpop.f32.mrb[0].mxu0
        %v2731 = vadd.f32 0.0, %v2730
        %v2732 = vpop.f32.mrb[0].mxu0
        %v2733 = vadd.f32 0.0, %v2732
        %v2734 = vpop.f32.mrb[0].mxu0
        %v2735 = vadd.f32 0.0, %v2734
        %v2736 = vpop.f32.mrb[0].mxu0
        %v2737 = vadd.f32 0.0, %v2736
        %2738 = vmatprep.mubr.bf16.mxu0 0
        %2739 = vmatmul.mubr.bf16.gmra.mrb[0].mxu0 %v2648
        %v2740 = vpop.f32.mrb[0].mxu0
        %v2741 = vadd.f32 0.0, %v2740
        %v2742 = vpop.f32.mrb[0].mxu0
        %v2743 = vadd.f32 0.0, %v2742
        %v2744 = vpop.f32.mrb[0].mxu0
        %v2745 = vadd.f32 0.0, %v2744
        %v2746 = vpop.f32.mrb[0].mxu0
        %v2747 = vadd.f32 0.0, %v2746
        %2748 = vmatprep.mubr.bf16.mxu0 0
        %2749 = vmatmul.mubr.bf16.gmra.mrb[0].mxu0 %v2651
        %v2750 = vpop.f32.mrb[0].mxu0
        %v2751 = vadd.f32 0.0, %v2750
        %v2752 = vpop.f32.mrb[0].mxu0
        %v2753 = vadd.f32 0.0, %v2752
        %v2754 = vpop.f32.mrb[0].mxu0
        %v2755 = vadd.f32 0.0, %v2754
        %v2756 = vpop.f32.mrb[0].mxu0
        %v2757 = vadd.f32 0.0, %v2756
        %2758 = vmatprep.mubr.bf16.mxu0 0
        %2759 = vmatmul.mubr.bf16.gmra.mrb[0].mxu0 %v2654
        %v2760 = vpop.f32.mrb[0].mxu0
        %v2761 = vadd.f32 0.0, %v2760
        %v2762 = vpop.f32.mrb[0].mxu0
        %v2763 = vadd.f32 0.0, %v2762
        %v2764 = vpop.f32.mrb[0].mxu0
        %v2765 = vadd.f32 0.0, %v2764
        %v2766 = vpop.f32.mrb[0].mxu0
        %v2767 = vadd.f32 0.0, %v2766
        %2768 = vdwg.mxu0
        %v2769 = vadd.f32 %v1944, %v2691
        %v2770 = vadd.f32 %v1945, %v2693
        %v2771 = vadd.f32 %v1946, %v2695
        %v2772 = vadd.f32 %v1947, %v2697
        %v2773 = vadd.f32 %v1948, %v2701
        %v2774 = vadd.f32 %v1949, %v2703
        %v2775 = vadd.f32 %v1950, %v2705
        %v2776 = vadd.f32 %v1951, %v2707
        %v2777 = vadd.f32 %v1952, %v2711
        %v2778 = vadd.f32 %v1953, %v2713
        %v2779 = vadd.f32 %v1954, %v2715
        %v2780 = vadd.f32 %v1955, %v2717
        %v2781 = vadd.f32 %v1956, %v2721
        %v2782 = vadd.f32 %v1957, %v2723
        %v2783 = vadd.f32 %v1958, %v2725
        %v2784 = vadd.f32 %v1959, %v2727
        %v2785 = vadd.f32 %v1960, %v2731
        %v2786 = vadd.f32 %v1961, %v2733
        %v2787 = vadd.f32 %v1962, %v2735
        %v2788 = vadd.f32 %v1963, %v2737
        %v2789 = vadd.f32 %v1964, %v2741
        %v2790 = vadd.f32 %v1965, %v2743
        %v2791 = vadd.f32 %v1966, %v2745
        %v2792 = vadd.f32 %v1967, %v2747
        %v2793 = vadd.f32 %v1968, %v2751
        %v2794 = vadd.f32 %v1969, %v2753
        %v2795 = vadd.f32 %v1970, %v2755
        %v2796 = vadd.f32 %v1971, %v2757
        %v2797 = vadd.f32 %v1972, %v2761
        %v2798 = vadd.f32 %v1973, %v2763
        %v2799 = vadd.f32 %v1974, %v2765
        %v2800 = vadd.f32 %v1975, %v2767
        %2805 = vrot.lane.b32.xlu0 %v1135, 32
        %v2806 = vpop.permute.xlu0 %2805
        %2807 = vrot.lane.b32.xlu0 %v1136, 32
        %v2808 = vpop.permute.xlu0 %2807
        %2809 = vrot.lane.b32.xlu0 %v1137, 32
        %v2810 = vpop.permute.xlu0 %2809
        %2811 = vrot.lane.b32.xlu0 %v1138, 32
        %v2812 = vpop.permute.xlu0 %2811
        %2813 = vrot.lane.b32.xlu0 %v1139, 32
        %v2814 = vpop.permute.xlu0 %2813
        %2815 = vrot.lane.b32.xlu0 %v1140, 32
        %v2816 = vpop.permute.xlu0 %2815
        %2817 = vrot.lane.b32.xlu0 %v1141, 32
        %v2818 = vpop.permute.xlu0 %2817
        %2819 = vrot.lane.b32.xlu0 %v1142, 32
        %v2820 = vpop.permute.xlu0 %2819
        %vm2821 = vcmask 261120
        %v2822 = vsel %vm2821, %v2806, %v2808
        %v2823 = vsel %vm2821, %v2810, %v2812
        %v2824 = vsel %vm2821, %v2814, %v2816
        %v2825 = vsel %vm2821, %v2818, %v2820
        %2830 = vrot.lane.b32.xlu0 %v1151, 32
        %v2831 = vpop.permute.xlu0 %2830
        %2832 = vrot.lane.b32.xlu0 %v1152, 32
        %v2833 = vpop.permute.xlu0 %2832
        %2834 = vrot.lane.b32.xlu0 %v1153, 32
        %v2835 = vpop.permute.xlu0 %2834
        %2836 = vrot.lane.b32.xlu0 %v1154, 32
        %v2837 = vpop.permute.xlu0 %2836
        %2838 = vrot.lane.b32.xlu0 %v1155, 32
        %v2839 = vpop.permute.xlu0 %2838
        %2840 = vrot.lane.b32.xlu0 %v1156, 32
        %v2841 = vpop.permute.xlu0 %2840
        %2842 = vrot.lane.b32.xlu0 %v1157, 32
        %v2843 = vpop.permute.xlu0 %2842
        %2844 = vrot.lane.b32.xlu0 %v1158, 32
        %v2845 = vpop.permute.xlu0 %2844
        %v2846 = vsel %vm2821, %v2831, %v2833
        %v2847 = vsel %vm2821, %v2835, %v2837
        %v2848 = vsel %vm2821, %v2839, %v2841
        %v2849 = vsel %vm2821, %v2843, %v2845
        %v2851 = vsel %vm1214, %v2822, 0
        %v2854 = vsel %vm1214, %v2823, 0
        %v2857 = vsel %vm1214, %v2824, 0
        %v2860 = vsel %vm1214, %v2825, 0
        %v2863 = vsel %vm1214, %v2846, 0
        %v2866 = vsel %vm1214, %v2847, 0
        %v2869 = vsel %vm1214, %v2848, 0
        %v2872 = vsel %vm1214, %v2849, 0
        %2874 = vmatprep.subr.bf16.mxu0 0
        %2875 = vmatpush1.bf16.xpose.msra.mxu0 %v2863
        %2876 = vmatprep.subr.bf16.mxu0 0
        %2877 = vmatpush1.bf16.xpose.msra.mxu0 %v2866
        %2878 = vmatprep.subr.bf16.mxu0 0
        %2879 = vmatpush1.bf16.xpose.msra.mxu0 %v2869
        %2880 = vmatprep.subr.bf16.mxu0 0
        %2881 = vmatpush1.bf16.xpose.msra.mxu0 %v2872
        %2882 = vmatprep.subr.bf16.mxu0 0
        %2883 = vmatpush1.bf16.xpose.msra.mxu0 0
        %2884 = vmatprep.subr.bf16.mxu0 0
        %2885 = vmatpush1.bf16.xpose.msra.mxu0 0
        %2886 = vmatprep.subr.bf16.mxu0 0
        %2887 = vmatpush1.bf16.xpose.msra.mxu0 0
        %2888 = vmatprep.subr.bf16.mxu0 0
        %2889 = vmatpush1.bf16.xpose.msra.mxu0 0
        %2890 = vmatprep.subr.bf16.mxu0 0
        %2891 = vmatpush1.bf16.xpose.msra.mxu0 0
        %2892 = vmatprep.subr.bf16.mxu0 0
        %2893 = vmatpush1.bf16.xpose.msra.mxu0 0
        %2894 = vmatprep.subr.bf16.mxu0 0
        %2895 = vmatpush1.bf16.xpose.msra.mxu0 0
        %2896 = vmatprep.subr.bf16.mxu0 0
        %2897 = vmatpush1.bf16.xpose.msra.mxu0 0
        %2898 = vmatprep.subr.bf16.mxu0 0
        %2899 = vmatpush1.bf16.xpose.msra.mxu0 0
        %2900 = vmatprep.subr.bf16.mxu0 0
        %2901 = vmatpush1.bf16.xpose.msra.mxu0 0
        %2902 = vmatprep.subr.bf16.mxu0 0
        %2903 = vmatpush1.bf16.xpose.msra.mxu0 0
        %2904 = vmatprep.subr.bf16.mxu0 0
        %2905 = vmatpush1.bf16.xpose.msra.mxu0 0
        %2906 = vmatprep.mubr.bf16.mxu0 0
        %2907 = vmatmul.mubr.bf16.gmra.mrb[0].mxu0 %v2851
        %v2908 = vpop.f32.mrb[0].mxu0
        %v2909 = vadd.f32 0.0, %v2908
        %v2910 = vpop.f32.mrb[0].mxu0
        %v2911 = vpop.f32.mrb[0].mxu0
        %v2912 = vadd.f32 0.0, %v2911
        %v2913 = vpop.f32.mrb[0].mxu0
        %2914 = vmatprep.mubr.bf16.mxu0 0
        %2915 = vmatmul.mubr.bf16.gmra.mrb[0].mxu0 %v2854
        %v2916 = vpop.f32.mrb[0].mxu0
        %v2917 = vadd.f32 0.0, %v2916
        %v2918 = vpop.f32.mrb[0].mxu0
        %v2919 = vpop.f32.mrb[0].mxu0
        %v2920 = vadd.f32 0.0, %v2919
        %v2921 = vpop.f32.mrb[0].mxu0
        %2922 = vmatprep.mubr.bf16.mxu0 0
        %2923 = vmatmul.mubr.bf16.gmra.mrb[0].mxu0 %v2857
        %v2924 = vpop.f32.mrb[0].mxu0
        %v2925 = vadd.f32 0.0, %v2924
        %v2926 = vpop.f32.mrb[0].mxu0
        %v2927 = vpop.f32.mrb[0].mxu0
        %v2928 = vadd.f32 0.0, %v2927
        %v2929 = vpop.f32.mrb[0].mxu0
        %2930 = vmatprep.mubr.bf16.mxu0 0
        %2931 = vmatmul.mubr.bf16.gmra.mrb[0].mxu0 %v2860
        %v2932 = vpop.f32.mrb[0].mxu0
        %v2933 = vadd.f32 0.0, %v2932
        %v2934 = vpop.f32.mrb[0].mxu0
        %v2935 = vpop.f32.mrb[0].mxu0
        %v2936 = vadd.f32 0.0, %v2935
        %v2937 = vpop.f32.mrb[0].mxu0
        %2938 = vdwg.mxu0
        %2943 = vrot.lane.b32.xlu0 %v1143, 32
        %v2944 = vpop.permute.xlu0 %2943
        %2945 = vrot.lane.b32.xlu0 %v1144, 32
        %v2946 = vpop.permute.xlu0 %2945
        %2947 = vrot.lane.b32.xlu0 %v1145, 32
        %v2948 = vpop.permute.xlu0 %2947
        %2949 = vrot.lane.b32.xlu0 %v1146, 32
        %v2950 = vpop.permute.xlu0 %2949
        %2951 = vrot.lane.b32.xlu0 %v1147, 32
        %v2952 = vpop.permute.xlu0 %2951
        %2953 = vrot.lane.b32.xlu0 %v1148, 32
        %v2954 = vpop.permute.xlu0 %2953
        %2955 = vrot.lane.b32.xlu0 %v1149, 32
        %v2956 = vpop.permute.xlu0 %2955
        %2957 = vrot.lane.b32.xlu0 %v1150, 32
        %v2958 = vpop.permute.xlu0 %2957
        %v2959 = vsel %vm2821, %v2944, %v2946
        %v2960 = vsel %vm2821, %v2948, %v2950
        %v2961 = vsel %vm2821, %v2952, %v2954
        %v2962 = vsel %vm2821, %v2956, %v2958
        %2967 = vrot.lane.b32.xlu0 %v1159, 32
        %v2968 = vpop.permute.xlu0 %2967
        %2969 = vrot.lane.b32.xlu0 %v1160, 32
        %v2970 = vpop.permute.xlu0 %2969
        %2971 = vrot.lane.b32.xlu0 %v1161, 32
        %v2972 = vpop.permute.xlu0 %2971
        %2973 = vrot.lane.b32.xlu0 %v1162, 32
        %v2974 = vpop.permute.xlu0 %2973
        %2975 = vrot.lane.b32.xlu0 %v1163, 32
        %v2976 = vpop.permute.xlu0 %2975
        %2977 = vrot.lane.b32.xlu0 %v1164, 32
        %v2978 = vpop.permute.xlu0 %2977
        %2979 = vrot.lane.b32.xlu0 %v1165, 32
        %v2980 = vpop.permute.xlu0 %2979
        %2981 = vrot.lane.b32.xlu0 %v1166, 32
        %v2982 = vpop.permute.xlu0 %2981
        %v2983 = vsel %vm2821, %v2968, %v2970
        %v2984 = vsel %vm2821, %v2972, %v2974
        %v2985 = vsel %vm2821, %v2976, %v2978
        %v2986 = vsel %vm2821, %v2980, %v2982
        %v2988 = vsel %vm1214, %v2959, 0
        %v2991 = vsel %vm1214, %v2960, 0
        %v2994 = vsel %vm1214, %v2961, 0
        %v2997 = vsel %vm1214, %v2962, 0
        %v3000 = vsel %vm1214, %v2983, 0
        %v3003 = vsel %vm1214, %v2984, 0
        %v3006 = vsel %vm1214, %v2985, 0
        %v3009 = vsel %vm1214, %v2986, 0
        %3011 = vmatprep.subr.bf16.mxu0 0
        %3012 = vmatpush1.bf16.xpose.msra.mxu0 %v3000
        %3013 = vmatprep.subr.bf16.mxu0 0
        %3014 = vmatpush1.bf16.xpose.msra.mxu0 %v3003
        %3015 = vmatprep.subr.bf16.mxu0 0
        %3016 = vmatpush1.bf16.xpose.msra.mxu0 %v3006
        %3017 = vmatprep.subr.bf16.mxu0 0
        %3018 = vmatpush1.bf16.xpose.msra.mxu0 %v3009
        %3019 = vmatprep.subr.bf16.mxu0 0
        %3020 = vmatpush1.bf16.xpose.msra.mxu0 0
        %3021 = vmatprep.subr.bf16.mxu0 0
        %3022 = vmatpush1.bf16.xpose.msra.mxu0 0
        %3023 = vmatprep.subr.bf16.mxu0 0
        %3024 = vmatpush1.bf16.xpose.msra.mxu0 0
        %3025 = vmatprep.subr.bf16.mxu0 0
        %3026 = vmatpush1.bf16.xpose.msra.mxu0 0
        %3027 = vmatprep.subr.bf16.mxu0 0
        %3028 = vmatpush1.bf16.xpose.msra.mxu0 0
        %3029 = vmatprep.subr.bf16.mxu0 0
        %3030 = vmatpush1.bf16.xpose.msra.mxu0 0
        %3031 = vmatprep.subr.bf16.mxu0 0
        %3032 = vmatpush1.bf16.xpose.msra.mxu0 0
        %3033 = vmatprep.subr.bf16.mxu0 0
        %3034 = vmatpush1.bf16.xpose.msra.mxu0 0
        %3035 = vmatprep.subr.bf16.mxu0 0
        %3036 = vmatpush1.bf16.xpose.msra.mxu0 0
        %3037 = vmatprep.subr.bf16.mxu0 0
        %3038 = vmatpush1.bf16.xpose.msra.mxu0 0
        %3039 = vmatprep.subr.bf16.mxu0 0
        %3040 = vmatpush1.bf16.xpose.msra.mxu0 0
        %3041 = vmatprep.subr.bf16.mxu0 0
        %3042 = vmatpush1.bf16.xpose.msra.mxu0 0
        %3043 = vmatprep.mubr.bf16.mxu0 0
        %3044 = vmatmul.mubr.bf16.gmra.mrb[0].mxu0 %v2988
        %v3045 = vpop.f32.mrb[0].mxu0
        %v3046 = vadd.f32 0.0, %v3045
        %v3047 = vpop.f32.mrb[0].mxu0
        %v3048 = vpop.f32.mrb[0].mxu0
        %v3049 = vadd.f32 0.0, %v3048
        %v3050 = vpop.f32.mrb[0].mxu0
        %3051 = vmatprep.mubr.bf16.mxu0 0
        %3052 = vmatmul.mubr.bf16.gmra.mrb[0].mxu0 %v2991
        %v3053 = vpop.f32.mrb[0].mxu0
        %v3054 = vadd.f32 0.0, %v3053
        %v3055 = vpop.f32.mrb[0].mxu0
        %v3056 = vpop.f32.mrb[0].mxu0
        %v3057 = vadd.f32 0.0, %v3056
        %v3058 = vpop.f32.mrb[0].mxu0
        %3059 = vmatprep.mubr.bf16.mxu0 0
        %3060 = vmatmul.mubr.bf16.gmra.mrb[0].mxu0 %v2994
        %v3061 = vpop.f32.mrb[0].mxu0
        %v3062 = vadd.f32 0.0, %v3061
        %v3063 = vpop.f32.mrb[0].mxu0
        %v3064 = vpop.f32.mrb[0].mxu0
        %v3065 = vadd.f32 0.0, %v3064
        %v3066 = vpop.f32.mrb[0].mxu0
        %3067 = vmatprep.mubr.bf16.mxu0 0
        %3068 = vmatmul.mubr.bf16.gmra.mrb[0].mxu0 %v2997
        %v3069 = vpop.f32.mrb[0].mxu0
        %v3070 = vadd.f32 0.0, %v3069
        %v3071 = vpop.f32.mrb[0].mxu0
        %v3072 = vpop.f32.mrb[0].mxu0
        %v3073 = vadd.f32 0.0, %v3072
        %v3074 = vpop.f32.mrb[0].mxu0
        %3075 = vdwg.mxu0
        %v3076 = vsel %vm1401, %v2909, -inf
        %v3077 = vsel %vm1402, %v2912, -inf
        %v3078 = vsel %vm1403, %v2917, -inf
        %v3079 = vsel %vm1404, %v2920, -inf
        %v3080 = vsel %vm1405, %v2925, -inf
        %v3081 = vsel %vm1406, %v2928, -inf
        %v3082 = vsel %vm1407, %v2933, -inf
        %v3083 = vsel %vm1408, %v2936, -inf
        %v3084 = vsel %vm1401, %v3046, -inf
        %v3085 = vsel %vm1402, %v3049, -inf
        %v3086 = vsel %vm1403, %v3054, -inf
        %v3087 = vsel %vm1404, %v3057, -inf
        %v3088 = vsel %vm1405, %v3062, -inf
        %v3089 = vsel %vm1406, %v3065, -inf
        %v3090 = vsel %vm1407, %v3070, -inf
        %v3091 = vsel %vm1408, %v3073, -inf
        %v3092 = vsel %vm481, %v3076, -inf
        %3093 = vmax.xlane.f32.xlu0 %v3092
        %v3094 = vpop.xlane.xlu0 %3093
        %v3095 = vsel %vm481, %v3077, -inf
        %3096 = vmax.xlane.f32.xlu0 %v3095
        %v3097 = vpop.xlane.xlu0 %3096
        %v3098 = vsel %vm481, %v3078, -inf
        %3099 = vmax.xlane.f32.xlu0 %v3098
        %v3100 = vpop.xlane.xlu0 %3099
        %v3101 = vsel %vm481, %v3079, -inf
        %3102 = vmax.xlane.f32.xlu0 %v3101
        %v3103 = vpop.xlane.xlu0 %3102
        %v3104 = vsel %vm481, %v3080, -inf
        %3105 = vmax.xlane.f32.xlu0 %v3104
        %v3106 = vpop.xlane.xlu0 %3105
        %v3107 = vsel %vm481, %v3081, -inf
        %3108 = vmax.xlane.f32.xlu0 %v3107
        %v3109 = vpop.xlane.xlu0 %3108
        %v3110 = vsel %vm481, %v3082, -inf
        %3111 = vmax.xlane.f32.xlu0 %v3110
        %v3112 = vpop.xlane.xlu0 %3111
        %v3113 = vsel %vm481, %v3083, -inf
        %3114 = vmax.xlane.f32.xlu0 %v3113
        %v3115 = vpop.xlane.xlu0 %3114
        %v3116 = vsel %vm481, %v3084, -inf
        %3117 = vmax.xlane.f32.xlu0 %v3116
        %v3118 = vpop.xlane.xlu0 %3117
        %v3119 = vsel %vm481, %v3085, -inf
        %3120 = vmax.xlane.f32.xlu0 %v3119
        %v3121 = vpop.xlane.xlu0 %3120
        %v3122 = vsel %vm481, %v3086, -inf
        %3123 = vmax.xlane.f32.xlu0 %v3122
        %v3124 = vpop.xlane.xlu0 %3123
        %v3125 = vsel %vm481, %v3087, -inf
        %3126 = vmax.xlane.f32.xlu0 %v3125
        %v3127 = vpop.xlane.xlu0 %3126
        %v3128 = vsel %vm481, %v3088, -inf
        %3129 = vmax.xlane.f32.xlu0 %v3128
        %v3130 = vpop.xlane.xlu0 %3129
        %v3131 = vsel %vm481, %v3089, -inf
        %3132 = vmax.xlane.f32.xlu0 %v3131
        %v3133 = vpop.xlane.xlu0 %3132
        %v3134 = vsel %vm481, %v3090, -inf
        %3135 = vmax.xlane.f32.xlu0 %v3134
        %v3136 = vpop.xlane.xlu0 %3135
        %v3137 = vsel %vm481, %v3091, -inf
        %3138 = vmax.xlane.f32.xlu0 %v3137
        %v3139 = vpop.xlane.xlu0 %3138
        %v3140 = vsub.f32 %v3076, %v3094
        %v3141 = vsub.f32 %v3077, %v3097
        %v3142 = vsub.f32 %v3078, %v3100
        %v3143 = vsub.f32 %v3079, %v3103
        %v3144 = vsub.f32 %v3080, %v3106
        %v3145 = vsub.f32 %v3081, %v3109
        %v3146 = vsub.f32 %v3082, %v3112
        %v3147 = vsub.f32 %v3083, %v3115
        %v3148 = vsub.f32 %v3084, %v3118
        %v3149 = vsub.f32 %v3085, %v3121
        %v3150 = vsub.f32 %v3086, %v3124
        %v3151 = vsub.f32 %v3087, %v3127
        %v3152 = vsub.f32 %v3088, %v3130
        %v3153 = vsub.f32 %v3089, %v3133
        %v3154 = vsub.f32 %v3090, %v3136
        %v3155 = vsub.f32 %v3091, %v3139
        %v3156 = vmul.f32 %v3140, 1.442695
        %v3157 = vpow.pop %v3156
        %v3158 = vmul.f32 %v3141, 1.442695
        %v3159 = vpow.pop %v3158
        %v3160 = vmul.f32 %v3142, 1.442695
        %v3161 = vpow.pop %v3160
        %v3162 = vmul.f32 %v3143, 1.442695
        %v3163 = vpow.pop %v3162
        %v3164 = vmul.f32 %v3144, 1.442695
        %v3165 = vpow.pop %v3164
        %v3166 = vmul.f32 %v3145, 1.442695
        %v3167 = vpow.pop %v3166
        %v3168 = vmul.f32 %v3146, 1.442695
        %v3169 = vpow.pop %v3168
        %v3170 = vmul.f32 %v3147, 1.442695
        %v3171 = vpow.pop %v3170
        %v3172 = vmul.f32 %v3148, 1.442695
        %v3173 = vpow.pop %v3172
        %v3174 = vmul.f32 %v3149, 1.442695
        %v3175 = vpow.pop %v3174
        %v3176 = vmul.f32 %v3150, 1.442695
        %v3177 = vpow.pop %v3176
        %v3178 = vmul.f32 %v3151, 1.442695
        %v3179 = vpow.pop %v3178
        %v3180 = vmul.f32 %v3152, 1.442695
        %v3181 = vpow.pop %v3180
        %v3182 = vmul.f32 %v3153, 1.442695
        %v3183 = vpow.pop %v3182
        %v3184 = vmul.f32 %v3154, 1.442695
        %v3185 = vpow.pop %v3184
        %v3186 = vmul.f32 %v3155, 1.442695
        %v3187 = vpow.pop %v3186
        %v3188 = vsel %vm481, %v3157, 0.0
        %3189 = vadd.xlane.f32.xlu0 %v3188
        %v3190 = vpop.xlane.xlu0 %3189
        %v3191 = vsel %vm481, %v3159, 0.0
        %3192 = vadd.xlane.f32.xlu0 %v3191
        %v3193 = vpop.xlane.xlu0 %3192
        %v3194 = vsel %vm481, %v3161, 0.0
        %3195 = vadd.xlane.f32.xlu0 %v3194
        %v3196 = vpop.xlane.xlu0 %3195
        %v3197 = vsel %vm481, %v3163, 0.0
        %3198 = vadd.xlane.f32.xlu0 %v3197
        %v3199 = vpop.xlane.xlu0 %3198
        %v3200 = vsel %vm481, %v3165, 0.0
        %3201 = vadd.xlane.f32.xlu0 %v3200
        %v3202 = vpop.xlane.xlu0 %3201
        %v3203 = vsel %vm481, %v3167, 0.0
        %3204 = vadd.xlane.f32.xlu0 %v3203
        %v3205 = vpop.xlane.xlu0 %3204
        %v3206 = vsel %vm481, %v3169, 0.0
        %3207 = vadd.xlane.f32.xlu0 %v3206
        %v3208 = vpop.xlane.xlu0 %3207
        %v3209 = vsel %vm481, %v3171, 0.0
        %3210 = vadd.xlane.f32.xlu0 %v3209
        %v3211 = vpop.xlane.xlu0 %3210
        %v3212 = vsel %vm481, %v3173, 0.0
        %3213 = vadd.xlane.f32.xlu0 %v3212
        %v3214 = vpop.xlane.xlu0 %3213
        %v3215 = vsel %vm481, %v3175, 0.0
        %3216 = vadd.xlane.f32.xlu0 %v3215
        %v3217 = vpop.xlane.xlu0 %3216
        %v3218 = vsel %vm481, %v3177, 0.0
        %3219 = vadd.xlane.f32.xlu0 %v3218
        %v3220 = vpop.xlane.xlu0 %3219
        %v3221 = vsel %vm481, %v3179, 0.0
        %3222 = vadd.xlane.f32.xlu0 %v3221
        %v3223 = vpop.xlane.xlu0 %3222
        %v3224 = vsel %vm481, %v3181, 0.0
        %3225 = vadd.xlane.f32.xlu0 %v3224
        %v3226 = vpop.xlane.xlu0 %3225
        %v3227 = vsel %vm481, %v3183, 0.0
        %3228 = vadd.xlane.f32.xlu0 %v3227
        %v3229 = vpop.xlane.xlu0 %3228
        %v3230 = vsel %vm481, %v3185, 0.0
        %3231 = vadd.xlane.f32.xlu0 %v3230
        %v3232 = vpop.xlane.xlu0 %3231
        %v3233 = vsel %vm481, %v3187, 0.0
        %3234 = vadd.xlane.f32.xlu0 %v3233
        %v3235 = vpop.xlane.xlu0 %3234
        %v3236 = vrcp.pop %v3190
        %v3237 = vrcp.pop %v3193
        %v3238 = vrcp.pop %v3196
        %v3239 = vrcp.pop %v3199
        %v3240 = vrcp.pop %v3202
        %v3241 = vrcp.pop %v3205
        %v3242 = vrcp.pop %v3208
        %v3243 = vrcp.pop %v3211
        %v3244 = vrcp.pop %v3214
        %v3245 = vrcp.pop %v3217
        %v3246 = vrcp.pop %v3220
        %v3247 = vrcp.pop %v3223
        %v3248 = vrcp.pop %v3226
        %v3249 = vrcp.pop %v3229
        %v3250 = vrcp.pop %v3232
        %v3251 = vrcp.pop %v3235
        %v3252 = vmul.f32 %v3157, %v3236
        %v3253 = vmul.f32 %v3159, %v3237
        %v3254 = vmul.f32 %v3161, %v3238
        %v3255 = vmul.f32 %v3163, %v3239
        %v3256 = vmul.f32 %v3165, %v3240
        %v3257 = vmul.f32 %v3167, %v3241
        %v3258 = vmul.f32 %v3169, %v3242
        %v3259 = vmul.f32 %v3171, %v3243
        %v3260 = vmul.f32 %v3173, %v3244
        %v3261 = vmul.f32 %v3175, %v3245
        %v3262 = vmul.f32 %v3177, %v3246
        %v3263 = vmul.f32 %v3179, %v3247
        %v3264 = vmul.f32 %v3181, %v3248
        %v3265 = vmul.f32 %v3183, %v3249
        %v3266 = vmul.f32 %v3185, %v3250
        %v3267 = vmul.f32 %v3187, %v3251
        %v3268 = vpack.c.bf16 %v3253, %v3252
        %v3269 = vpack.c.bf16 %v3255, %v3254
        %v3270 = vpack.c.bf16 %v3257, %v3256
        %v3271 = vpack.c.bf16 %v3259, %v3258
        %v3272 = vpack.c.bf16 %v3261, %v3260
        %v3273 = vpack.c.bf16 %v3263, %v3262
        %v3274 = vpack.c.bf16 %v3265, %v3264
        %v3275 = vpack.c.bf16 %v3267, %v3266
        %3280 = vrot.lane.b32.xlu0 %v1167, 32
        %v3281 = vpop.permute.xlu0 %3280
        %3282 = vrot.lane.b32.xlu0 %v1168, 32
        %v3283 = vpop.permute.xlu0 %3282
        %3284 = vrot.lane.b32.xlu0 %v1169, 32
        %v3285 = vpop.permute.xlu0 %3284
        %3286 = vrot.lane.b32.xlu0 %v1170, 32
        %v3287 = vpop.permute.xlu0 %3286
        %3288 = vrot.lane.b32.xlu0 %v1171, 32
        %v3289 = vpop.permute.xlu0 %3288
        %3290 = vrot.lane.b32.xlu0 %v1172, 32
        %v3291 = vpop.permute.xlu0 %3290
        %3292 = vrot.lane.b32.xlu0 %v1173, 32
        %v3293 = vpop.permute.xlu0 %3292
        %3294 = vrot.lane.b32.xlu0 %v1174, 32
        %v3295 = vpop.permute.xlu0 %3294
        %v3296 = vsel %vm2821, %v3281, %v3283
        %v3297 = vsel %vm2821, %v3285, %v3287
        %v3298 = vsel %vm2821, %v3289, %v3291
        %v3299 = vsel %vm2821, %v3293, %v3295
        %v3305 = vsel %vm481, %v3268, 0
        %v3308 = vsel %vm481, %v3269, 0
        %v3311 = vsel %vm481, %v3270, 0
        %v3314 = vsel %vm481, %v3271, 0
        %3316 = vmatprep.subr.bf16.mxu0 0
        %3317 = vmatpush1.bf16.msra.mxu0 %v3296
        %3318 = vmatprep.subr.bf16.mxu0 0
        %3319 = vmatpush1.bf16.msra.mxu0 %v3297
        %3320 = vmatprep.subr.bf16.mxu0 0
        %3321 = vmatpush1.bf16.msra.mxu0 %v3298
        %3322 = vmatprep.subr.bf16.mxu0 0
        %3323 = vmatpush1.bf16.msra.mxu0 %v3299
        %3324 = vmatprep.subr.bf16.mxu0 0
        %3325 = vmatpush1.bf16.msra.mxu0 0
        %3326 = vmatprep.subr.bf16.mxu0 0
        %3327 = vmatpush1.bf16.msra.mxu0 0
        %3328 = vmatprep.subr.bf16.mxu0 0
        %3329 = vmatpush1.bf16.msra.mxu0 0
        %3330 = vmatprep.subr.bf16.mxu0 0
        %3331 = vmatpush1.bf16.msra.mxu0 0
        %3332 = vmatprep.subr.bf16.mxu0 0
        %3333 = vmatpush1.bf16.msra.mxu0 0
        %3334 = vmatprep.subr.bf16.mxu0 0
        %3335 = vmatpush1.bf16.msra.mxu0 0
        %3336 = vmatprep.subr.bf16.mxu0 0
        %3337 = vmatpush1.bf16.msra.mxu0 0
        %3338 = vmatprep.subr.bf16.mxu0 0
        %3339 = vmatpush1.bf16.msra.mxu0 0
        %3340 = vmatprep.subr.bf16.mxu0 0
        %3341 = vmatpush1.bf16.msra.mxu0 0
        %3342 = vmatprep.subr.bf16.mxu0 0
        %3343 = vmatpush1.bf16.msra.mxu0 0
        %3344 = vmatprep.subr.bf16.mxu0 0
        %3345 = vmatpush1.bf16.msra.mxu0 0
        %3346 = vmatprep.subr.bf16.mxu0 0
        %3347 = vmatpush1.bf16.msra.mxu0 0
        %3348 = vmatprep.mubr.bf16.mxu0 0
        %3349 = vmatmul.mubr.bf16.gmra.mrb[0].mxu0 %v3305
        %v3350 = vpop.f32.mrb[0].mxu0
        %v3351 = vadd.f32 0.0, %v3350
        %v3352 = vpop.f32.mrb[0].mxu0
        %v3353 = vpop.f32.mrb[0].mxu0
        %v3354 = vadd.f32 0.0, %v3353
        %v3355 = vpop.f32.mrb[0].mxu0
        %3356 = vmatprep.mubr.bf16.mxu0 0
        %3357 = vmatmul.mubr.bf16.gmra.mrb[0].mxu0 %v3308
        %v3358 = vpop.f32.mrb[0].mxu0
        %v3359 = vadd.f32 0.0, %v3358
        %v3360 = vpop.f32.mrb[0].mxu0
        %v3361 = vpop.f32.mrb[0].mxu0
        %v3362 = vadd.f32 0.0, %v3361
        %v3363 = vpop.f32.mrb[0].mxu0
        %3364 = vmatprep.mubr.bf16.mxu0 0
        %3365 = vmatmul.mubr.bf16.gmra.mrb[0].mxu0 %v3311
        %v3366 = vpop.f32.mrb[0].mxu0
        %v3367 = vadd.f32 0.0, %v3366
        %v3368 = vpop.f32.mrb[0].mxu0
        %v3369 = vpop.f32.mrb[0].mxu0
        %v3370 = vadd.f32 0.0, %v3369
        %v3371 = vpop.f32.mrb[0].mxu0
        %3372 = vmatprep.mubr.bf16.mxu0 0
        %3373 = vmatmul.mubr.bf16.gmra.mrb[0].mxu0 %v3314
        %v3374 = vpop.f32.mrb[0].mxu0
        %v3375 = vadd.f32 0.0, %v3374
        %v3376 = vpop.f32.mrb[0].mxu0
        %v3377 = vpop.f32.mrb[0].mxu0
        %v3378 = vadd.f32 0.0, %v3377
        %v3379 = vpop.f32.mrb[0].mxu0
        %3380 = vdwg.mxu0
        %3385 = vrot.lane.b32.xlu0 %v1175, 32
        %v3386 = vpop.permute.xlu0 %3385
        %3387 = vrot.lane.b32.xlu0 %v1176, 32
        %v3388 = vpop.permute.xlu0 %3387
        %3389 = vrot.lane.b32.xlu0 %v1177, 32
        %v3390 = vpop.permute.xlu0 %3389
        %3391 = vrot.lane.b32.xlu0 %v1178, 32
        %v3392 = vpop.permute.xlu0 %3391
        %3393 = vrot.lane.b32.xlu0 %v1179, 32
        %v3394 = vpop.permute.xlu0 %3393
        %3395 = vrot.lane.b32.xlu0 %v1180, 32
        %v3396 = vpop.permute.xlu0 %3395
        %3397 = vrot.lane.b32.xlu0 %v1181, 32
        %v3398 = vpop.permute.xlu0 %3397
        %3399 = vrot.lane.b32.xlu0 %v1182, 32
        %v3400 = vpop.permute.xlu0 %3399
        %v3401 = vsel %vm2821, %v3386, %v3388
        %v3402 = vsel %vm2821, %v3390, %v3392
        %v3403 = vsel %vm2821, %v3394, %v3396
        %v3404 = vsel %vm2821, %v3398, %v3400
        %v3410 = vsel %vm481, %v3272, 0
        %v3413 = vsel %vm481, %v3273, 0
        %v3416 = vsel %vm481, %v3274, 0
        %v3419 = vsel %vm481, %v3275, 0
        %3421 = vmatprep.subr.bf16.mxu0 0
        %3422 = vmatpush1.bf16.msra.mxu0 %v3401
        %3423 = vmatprep.subr.bf16.mxu0 0
        %3424 = vmatpush1.bf16.msra.mxu0 %v3402
        %3425 = vmatprep.subr.bf16.mxu0 0
        %3426 = vmatpush1.bf16.msra.mxu0 %v3403
        %3427 = vmatprep.subr.bf16.mxu0 0
        %3428 = vmatpush1.bf16.msra.mxu0 %v3404
        %3429 = vmatprep.subr.bf16.mxu0 0
        %3430 = vmatpush1.bf16.msra.mxu0 0
        %3431 = vmatprep.subr.bf16.mxu0 0
        %3432 = vmatpush1.bf16.msra.mxu0 0
        %3433 = vmatprep.subr.bf16.mxu0 0
        %3434 = vmatpush1.bf16.msra.mxu0 0
        %3435 = vmatprep.subr.bf16.mxu0 0
        %3436 = vmatpush1.bf16.msra.mxu0 0
        %3437 = vmatprep.subr.bf16.mxu0 0
        %3438 = vmatpush1.bf16.msra.mxu0 0
        %3439 = vmatprep.subr.bf16.mxu0 0
        %3440 = vmatpush1.bf16.msra.mxu0 0
        %3441 = vmatprep.subr.bf16.mxu0 0
        %3442 = vmatpush1.bf16.msra.mxu0 0
        %3443 = vmatprep.subr.bf16.mxu0 0
        %3444 = vmatpush1.bf16.msra.mxu0 0
        %3445 = vmatprep.subr.bf16.mxu0 0
        %3446 = vmatpush1.bf16.msra.mxu0 0
        %3447 = vmatprep.subr.bf16.mxu0 0
        %3448 = vmatpush1.bf16.msra.mxu0 0
        %3449 = vmatprep.subr.bf16.mxu0 0
        %3450 = vmatpush1.bf16.msra.mxu0 0
        %3451 = vmatprep.subr.bf16.mxu0 0
        %3452 = vmatpush1.bf16.msra.mxu0 0
        %3453 = vmatprep.mubr.bf16.mxu0 0
        %3454 = vmatmul.mubr.bf16.gmra.mrb[0].mxu0 %v3410
        %v3455 = vpop.f32.mrb[0].mxu0
        %v3456 = vadd.f32 0.0, %v3455
        %v3457 = vpop.f32.mrb[0].mxu0
        %v3458 = vpop.f32.mrb[0].mxu0
        %v3459 = vadd.f32 0.0, %v3458
        %v3460 = vpop.f32.mrb[0].mxu0
        %3461 = vmatprep.mubr.bf16.mxu0 0
        %3462 = vmatmul.mubr.bf16.gmra.mrb[0].mxu0 %v3413
        %v3463 = vpop.f32.mrb[0].mxu0
        %v3464 = vadd.f32 0.0, %v3463
        %v3465 = vpop.f32.mrb[0].mxu0
        %v3466 = vpop.f32.mrb[0].mxu0
        %v3467 = vadd.f32 0.0, %v3466
        %v3468 = vpop.f32.mrb[0].mxu0
        %3469 = vmatprep.mubr.bf16.mxu0 0
        %3470 = vmatmul.mubr.bf16.gmra.mrb[0].mxu0 %v3416
        %v3471 = vpop.f32.mrb[0].mxu0
        %v3472 = vadd.f32 0.0, %v3471
        %v3473 = vpop.f32.mrb[0].mxu0
        %v3474 = vpop.f32.mrb[0].mxu0
        %v3475 = vadd.f32 0.0, %v3474
        %v3476 = vpop.f32.mrb[0].mxu0
        %3477 = vmatprep.mubr.bf16.mxu0 0
        %3478 = vmatmul.mubr.bf16.gmra.mrb[0].mxu0 %v3419
        %v3479 = vpop.f32.mrb[0].mxu0
        %v3480 = vadd.f32 0.0, %v3479
        %v3481 = vpop.f32.mrb[0].mxu0
        %v3482 = vpop.f32.mrb[0].mxu0
        %v3483 = vadd.f32 0.0, %v3482
        %v3484 = vpop.f32.mrb[0].mxu0
        %3485 = vdwg.mxu0
        %v3486 = vpack.c.bf16 %v3354, %v3351
        %v3487 = vpack.c.bf16 %v3362, %v3359
        %v3488 = vpack.c.bf16 %v3370, %v3367
        %v3489 = vpack.c.bf16 %v3378, %v3375
        %v3490 = vpack.c.bf16 %v3459, %v3456
        %v3491 = vpack.c.bf16 %v3467, %v3464
        %v3492 = vpack.c.bf16 %v3475, %v3472
        %v3493 = vpack.c.bf16 %v3483, %v3480
        %v3494 = vld [vmem:[#allocation7 + $0x60] sm:$0xff]
        %v3495 = vld [vmem:[#allocation7 + $0x68] sm:$0xff]
        %v3496 = vld [vmem:[#allocation7 + $0x70] sm:$0xff]
        %v3497 = vld [vmem:[#allocation7 + $0x78] sm:$0xff]
        %v3498 = vld [vmem:[#allocation7 + $0x80] sm:$0xff]
        %v3499 = vld [vmem:[#allocation7 + $0x88] sm:$0xff]
        %v3506 = vunpack.c.l.b16 %v3494
        %v3507 = vunpack.c.h.b16 %v3494
        %v3508 = vunpack.c.l.b16 %v3495
        %v3509 = vunpack.c.h.b16 %v3495
        %v3510 = vunpack.c.l.b16 %v3496
        %v3511 = vunpack.c.h.b16 %v3496
        %v3512 = vunpack.c.l.b16 %v3497
        %v3513 = vunpack.c.h.b16 %v3497
        %v3514 = vunpack.c.l.b16 %v3498
        %v3515 = vunpack.c.h.b16 %v3498
        %v3516 = vunpack.c.l.b16 %v3499
        %v3517 = vunpack.c.h.b16 %v3499
        %v3518 = vpack.c.b16 %v3508, %v3506
        %v3519 = vpack.c.b16 %v3509, %v3507
        %v3520 = vpack.c.b16 %v3512, %v3510
        %v3521 = vpack.c.b16 %v3513, %v3511
        %v3522 = vpack.c.b16 %v3516, %v3514
        %v3523 = vpack.c.b16 %v3517, %v3515
        %v3531 = vsel %vm1214, %v3486, 0
        %v3534 = vsel %vm1214, %v3487, 0
        %v3537 = vsel %vm1214, %v3488, 0
        %v3540 = vsel %vm1214, %v3489, 0
        %v3543 = vsel %vm1214, %v3490, 0
        %v3546 = vsel %vm1214, %v3491, 0
        %v3549 = vsel %vm1214, %v3492, 0
        %v3552 = vsel %vm1214, %v3493, 0
        %3554 = vmatprep.subr.bf16.mxu0 %v3519
        %3555 = vmatpush1.bf16.msra.mxu0 %v3518
        %3556 = vmatprep.subr.bf16.mxu0 %v3521
        %3557 = vmatpush1.bf16.msra.mxu0 %v3520
        %3558 = vmatprep.subr.bf16.mxu0 %v3523
        %3559 = vmatpush1.bf16.msra.mxu0 %v3522
        %3560 = vmatprep.subr.bf16.mxu0 0
        %3561 = vmatpush1.bf16.msra.mxu0 0
        %3562 = vmatprep.subr.bf16.mxu0 0
        %3563 = vmatpush1.bf16.msra.mxu0 0
        %3564 = vmatprep.subr.bf16.mxu0 0
        %3565 = vmatpush1.bf16.msra.mxu0 0
        %3566 = vmatprep.subr.bf16.mxu0 0
        %3567 = vmatpush1.bf16.msra.mxu0 0
        %3568 = vmatprep.subr.bf16.mxu0 0
        %3569 = vmatpush1.bf16.msra.mxu0 0
        %3570 = vmatprep.subr.bf16.mxu0 0
        %3571 = vmatpush1.bf16.msra.mxu0 0
        %3572 = vmatprep.subr.bf16.mxu0 0
        %3573 = vmatpush1.bf16.msra.mxu0 0
        %3574 = vmatprep.subr.bf16.mxu0 0
        %3575 = vmatpush1.bf16.msra.mxu0 0
        %3576 = vmatprep.subr.bf16.mxu0 0
        %3577 = vmatpush1.bf16.msra.mxu0 0
        %3578 = vmatprep.subr.bf16.mxu0 0
        %3579 = vmatpush1.bf16.msra.mxu0 0
        %3580 = vmatprep.subr.bf16.mxu0 0
        %3581 = vmatpush1.bf16.msra.mxu0 0
        %3582 = vmatprep.subr.bf16.mxu0 0
        %3583 = vmatpush1.bf16.msra.mxu0 0
        %3584 = vmatprep.subr.bf16.mxu0 0
        %3585 = vmatpush1.bf16.msra.mxu0 0
        %3586 = vmatprep.mubr.bf16.mxu0 0
        %3587 = vmatmul.mubr.bf16.gmra.mrb[0].mxu0 %v3531
        %v3588 = vpop.f32.mrb[0].mxu0
        %v3589 = vadd.f32 0.0, %v3588
        %v3590 = vpop.f32.mrb[0].mxu0
        %v3591 = vadd.f32 0.0, %v3590
        %v3592 = vpop.f32.mrb[0].mxu0
        %v3593 = vadd.f32 0.0, %v3592
        %v3594 = vpop.f32.mrb[0].mxu0
        %v3595 = vadd.f32 0.0, %v3594
        %3596 = vmatprep.mubr.bf16.mxu0 0
        %3597 = vmatmul.mubr.bf16.gmra.mrb[0].mxu0 %v3534
        %v3598 = vpop.f32.mrb[0].mxu0
        %v3599 = vadd.f32 0.0, %v3598
        %v3600 = vpop.f32.mrb[0].mxu0
        %v3601 = vadd.f32 0.0, %v3600
        %v3602 = vpop.f32.mrb[0].mxu0
        %v3603 = vadd.f32 0.0, %v3602
        %v3604 = vpop.f32.mrb[0].mxu0
        %v3605 = vadd.f32 0.0, %v3604
        %3606 = vmatprep.mubr.bf16.mxu0 0
        %3607 = vmatmul.mubr.bf16.gmra.mrb[0].mxu0 %v3537
        %v3608 = vpop.f32.mrb[0].mxu0
        %v3609 = vadd.f32 0.0, %v3608
        %v3610 = vpop.f32.mrb[0].mxu0
        %v3611 = vadd.f32 0.0, %v3610
        %v3612 = vpop.f32.mrb[0].mxu0
        %v3613 = vadd.f32 0.0, %v3612
        %v3614 = vpop.f32.mrb[0].mxu0
        %v3615 = vadd.f32 0.0, %v3614
        %3616 = vmatprep.mubr.bf16.mxu0 0
        %3617 = vmatmul.mubr.bf16.gmra.mrb[0].mxu0 %v3540
        %v3618 = vpop.f32.mrb[0].mxu0
        %v3619 = vadd.f32 0.0, %v3618
        %v3620 = vpop.f32.mrb[0].mxu0
        %v3621 = vadd.f32 0.0, %v3620
        %v3622 = vpop.f32.mrb[0].mxu0
        %v3623 = vadd.f32 0.0, %v3622
        %v3624 = vpop.f32.mrb[0].mxu0
        %v3625 = vadd.f32 0.0, %v3624
        %3626 = vmatprep.mubr.bf16.mxu0 0
        %3627 = vmatmul.mubr.bf16.gmra.mrb[0].mxu0 %v3543
        %v3628 = vpop.f32.mrb[0].mxu0
        %v3629 = vadd.f32 0.0, %v3628
        %v3630 = vpop.f32.mrb[0].mxu0
        %v3631 = vadd.f32 0.0, %v3630
        %v3632 = vpop.f32.mrb[0].mxu0
        %v3633 = vadd.f32 0.0, %v3632
        %v3634 = vpop.f32.mrb[0].mxu0
        %v3635 = vadd.f32 0.0, %v3634
        %3636 = vmatprep.mubr.bf16.mxu0 0
        %3637 = vmatmul.mubr.bf16.gmra.mrb[0].mxu0 %v3546
        %v3638 = vpop.f32.mrb[0].mxu0
        %v3639 = vadd.f32 0.0, %v3638
        %v3640 = vpop.f32.mrb[0].mxu0
        %v3641 = vadd.f32 0.0, %v3640
        %v3642 = vpop.f32.mrb[0].mxu0
        %v3643 = vadd.f32 0.0, %v3642
        %v3644 = vpop.f32.mrb[0].mxu0
        %v3645 = vadd.f32 0.0, %v3644
        %3646 = vmatprep.mubr.bf16.mxu0 0
        %3647 = vmatmul.mubr.bf16.gmra.mrb[0].mxu0 %v3549
        %v3648 = vpop.f32.mrb[0].mxu0
        %v3649 = vadd.f32 0.0, %v3648
        %v3650 = vpop.f32.mrb[0].mxu0
        %v3651 = vadd.f32 0.0, %v3650
        %v3652 = vpop.f32.mrb[0].mxu0
        %v3653 = vadd.f32 0.0, %v3652
        %v3654 = vpop.f32.mrb[0].mxu0
        %v3655 = vadd.f32 0.0, %v3654
        %3656 = vmatprep.mubr.bf16.mxu0 0
        %3657 = vmatmul.mubr.bf16.gmra.mrb[0].mxu0 %v3552
        %v3658 = vpop.f32.mrb[0].mxu0
        %v3659 = vadd.f32 0.0, %v3658
        %v3660 = vpop.f32.mrb[0].mxu0
        %v3661 = vadd.f32 0.0, %v3660
        %v3662 = vpop.f32.mrb[0].mxu0
        %v3663 = vadd.f32 0.0, %v3662
        %v3664 = vpop.f32.mrb[0].mxu0
        %v3665 = vadd.f32 0.0, %v3664
        %3666 = vdwg.mxu0
        %v3667 = vadd.f32 %v2769, %v3589
        %v3668 = vadd.f32 %v2770, %v3591
        %v3669 = vadd.f32 %v2771, %v3593
        %v3670 = vadd.f32 %v2772, %v3595
        %v3671 = vadd.f32 %v2773, %v3599
        %v3672 = vadd.f32 %v2774, %v3601
        %v3673 = vadd.f32 %v2775, %v3603
        %v3674 = vadd.f32 %v2776, %v3605
        %v3675 = vadd.f32 %v2777, %v3609
        %v3676 = vadd.f32 %v2778, %v3611
        %v3677 = vadd.f32 %v2779, %v3613
        %v3678 = vadd.f32 %v2780, %v3615
        %v3679 = vadd.f32 %v2781, %v3619
        %v3680 = vadd.f32 %v2782, %v3621
        %v3681 = vadd.f32 %v2783, %v3623
        %v3682 = vadd.f32 %v2784, %v3625
        %v3683 = vadd.f32 %v2785, %v3629
        %v3684 = vadd.f32 %v2786, %v3631
        %v3685 = vadd.f32 %v2787, %v3633
        %v3686 = vadd.f32 %v2788, %v3635
        %v3687 = vadd.f32 %v2789, %v3639
        %v3688 = vadd.f32 %v2790, %v3641
        %v3689 = vadd.f32 %v2791, %v3643
        %v3690 = vadd.f32 %v2792, %v3645
        %v3691 = vadd.f32 %v2793, %v3649
        %v3692 = vadd.f32 %v2794, %v3651
        %v3693 = vadd.f32 %v2795, %v3653
        %v3694 = vadd.f32 %v2796, %v3655
        %v3695 = vadd.f32 %v2797, %v3659
        %v3696 = vadd.f32 %v2798, %v3661
        %v3697 = vadd.f32 %v2799, %v3663
        %v3698 = vadd.f32 %v2800, %v3665
        %3699 = vrot.lane.b32.xlu0 %v1136, 112
        %v3700 = vpop.permute.xlu0 %3699
        %3701 = vrot.lane.b32.xlu0 %v1138, 112
        %v3702 = vpop.permute.xlu0 %3701
        %3703 = vrot.lane.b32.xlu0 %v1140, 112
        %v3704 = vpop.permute.xlu0 %3703
        %3705 = vrot.lane.b32.xlu0 %v1142, 112
        %v3706 = vpop.permute.xlu0 %3705
        %3707 = vrot.lane.b32.xlu0 %v1152, 112
        %v3708 = vpop.permute.xlu0 %3707
        %3709 = vrot.lane.b32.xlu0 %v1154, 112
        %v3710 = vpop.permute.xlu0 %3709
        %3711 = vrot.lane.b32.xlu0 %v1156, 112
        %v3712 = vpop.permute.xlu0 %3711
        %3713 = vrot.lane.b32.xlu0 %v1158, 112
        %v3714 = vpop.permute.xlu0 %3713
        %v3716 = vsel %vm1214, %v3700, 0
        %v3719 = vsel %vm1214, %v3702, 0
        %v3722 = vsel %vm1214, %v3704, 0
        %v3725 = vsel %vm1214, %v3706, 0
        %v3728 = vsel %vm1214, %v3708, 0
        %v3731 = vsel %vm1214, %v3710, 0
        %v3734 = vsel %vm1214, %v3712, 0
        %v3737 = vsel %vm1214, %v3714, 0
        %3739 = vmatprep.subr.bf16.mxu0 0
        %3740 = vmatpush1.bf16.xpose.msra.mxu0 %v3728
        %3741 = vmatprep.subr.bf16.mxu0 0
        %3742 = vmatpush1.bf16.xpose.msra.mxu0 %v3731
        %3743 = vmatprep.subr.bf16.mxu0 0
        %3744 = vmatpush1.bf16.xpose.msra.mxu0 %v3734
        %3745 = vmatprep.subr.bf16.mxu0 0
        %3746 = vmatpush1.bf16.xpose.msra.mxu0 %v3737
        %3747 = vmatprep.subr.bf16.mxu0 0
        %3748 = vmatpush1.bf16.xpose.msra.mxu0 0
        %3749 = vmatprep.subr.bf16.mxu0 0
        %3750 = vmatpush1.bf16.xpose.msra.mxu0 0
        %3751 = vmatprep.subr.bf16.mxu0 0
        %3752 = vmatpush1.bf16.xpose.msra.mxu0 0
        %3753 = vmatprep.subr.bf16.mxu0 0
        %3754 = vmatpush1.bf16.xpose.msra.mxu0 0
        %3755 = vmatprep.subr.bf16.mxu0 0
        %3756 = vmatpush1.bf16.xpose.msra.mxu0 0
        %3757 = vmatprep.subr.bf16.mxu0 0
        %3758 = vmatpush1.bf16.xpose.msra.mxu0 0
        %3759 = vmatprep.subr.bf16.mxu0 0
        %3760 = vmatpush1.bf16.xpose.msra.mxu0 0
        %3761 = vmatprep.subr.bf16.mxu0 0
        %3762 = vmatpush1.bf16.xpose.msra.mxu0 0
        %3763 = vmatprep.subr.bf16.mxu0 0
        %3764 = vmatpush1.bf16.xpose.msra.mxu0 0
        %3765 = vmatprep.subr.bf16.mxu0 0
        %3766 = vmatpush1.bf16.xpose.msra.mxu0 0
        %3767 = vmatprep.subr.bf16.mxu0 0
        %3768 = vmatpush1.bf16.xpose.msra.mxu0 0
        %3769 = vmatprep.subr.bf16.mxu0 0
        %3770 = vmatpush1.bf16.xpose.msra.mxu0 0
        %3771 = vmatprep.mubr.bf16.mxu0 0
        %3772 = vmatmul.mubr.bf16.gmra.mrb[0].mxu0 %v3716
        %v3773 = vpop.f32.mrb[0].mxu0
        %v3774 = vadd.f32 0.0, %v3773
        %v3775 = vpop.f32.mrb[0].mxu0
        %v3776 = vpop.f32.mrb[0].mxu0
        %v3777 = vadd.f32 0.0, %v3776
        %v3778 = vpop.f32.mrb[0].mxu0
        %3779 = vmatprep.mubr.bf16.mxu0 0
        %3780 = vmatmul.mubr.bf16.gmra.mrb[0].mxu0 %v3719
        %v3781 = vpop.f32.mrb[0].mxu0
        %v3782 = vadd.f32 0.0, %v3781
        %v3783 = vpop.f32.mrb[0].mxu0
        %v3784 = vpop.f32.mrb[0].mxu0
        %v3785 = vadd.f32 0.0, %v3784
        %v3786 = vpop.f32.mrb[0].mxu0
        %3787 = vmatprep.mubr.bf16.mxu0 0
        %3788 = vmatmul.mubr.bf16.gmra.mrb[0].mxu0 %v3722
        %v3789 = vpop.f32.mrb[0].mxu0
        %v3790 = vadd.f32 0.0, %v3789
        %v3791 = vpop.f32.mrb[0].mxu0
        %v3792 = vpop.f32.mrb[0].mxu0
        %v3793 = vadd.f32 0.0, %v3792
        %v3794 = vpop.f32.mrb[0].mxu0
        %3795 = vmatprep.mubr.bf16.mxu0 0
        %3796 = vmatmul.mubr.bf16.gmra.mrb[0].mxu0 %v3725
        %v3797 = vpop.f32.mrb[0].mxu0
        %v3798 = vadd.f32 0.0, %v3797
        %v3799 = vpop.f32.mrb[0].mxu0
        %v3800 = vpop.f32.mrb[0].mxu0
        %v3801 = vadd.f32 0.0, %v3800
        %v3802 = vpop.f32.mrb[0].mxu0
        %3803 = vdwg.mxu0
        %3804 = vrot.lane.b32.xlu0 %v1144, 112
        %v3805 = vpop.permute.xlu0 %3804
        %3806 = vrot.lane.b32.xlu0 %v1146, 112
        %v3807 = vpop.permute.xlu0 %3806
        %3808 = vrot.lane.b32.xlu0 %v1148, 112
        %v3809 = vpop.permute.xlu0 %3808
        %3810 = vrot.lane.b32.xlu0 %v1150, 112
        %v3811 = vpop.permute.xlu0 %3810
        %3812 = vrot.lane.b32.xlu0 %v1160, 112
        %v3813 = vpop.permute.xlu0 %3812
        %3814 = vrot.lane.b32.xlu0 %v1162, 112
        %v3815 = vpop.permute.xlu0 %3814
        %3816 = vrot.lane.b32.xlu0 %v1164, 112
        %v3817 = vpop.permute.xlu0 %3816
        %3818 = vrot.lane.b32.xlu0 %v1166, 112
        %v3819 = vpop.permute.xlu0 %3818
        %v3821 = vsel %vm1214, %v3805, 0
        %v3824 = vsel %vm1214, %v3807, 0
        %v3827 = vsel %vm1214, %v3809, 0
        %v3830 = vsel %vm1214, %v3811, 0
        %v3833 = vsel %vm1214, %v3813, 0
        %v3836 = vsel %vm1214, %v3815, 0
        %v3839 = vsel %vm1214, %v3817, 0
        %v3842 = vsel %vm1214, %v3819, 0
        %3844 = vmatprep.subr.bf16.mxu0 0
        %3845 = vmatpush1.bf16.xpose.msra.mxu0 %v3833
        %3846 = vmatprep.subr.bf16.mxu0 0
        %3847 = vmatpush1.bf16.xpose.msra.mxu0 %v3836
        %3848 = vmatprep.subr.bf16.mxu0 0
        %3849 = vmatpush1.bf16.xpose.msra.mxu0 %v3839
        %3850 = vmatprep.subr.bf16.mxu0 0
        %3851 = vmatpush1.bf16.xpose.msra.mxu0 %v3842
        %3852 = vmatprep.subr.bf16.mxu0 0
        %3853 = vmatpush1.bf16.xpose.msra.mxu0 0
        %3854 = vmatprep.subr.bf16.mxu0 0
        %3855 = vmatpush1.bf16.xpose.msra.mxu0 0
        %3856 = vmatprep.subr.bf16.mxu0 0
        %3857 = vmatpush1.bf16.xpose.msra.mxu0 0
        %3858 = vmatprep.subr.bf16.mxu0 0
        %3859 = vmatpush1.bf16.xpose.msra.mxu0 0
        %3860 = vmatprep.subr.bf16.mxu0 0
        %3861 = vmatpush1.bf16.xpose.msra.mxu0 0
        %3862 = vmatprep.subr.bf16.mxu0 0
        %3863 = vmatpush1.bf16.xpose.msra.mxu0 0
        %3864 = vmatprep.subr.bf16.mxu0 0
        %3865 = vmatpush1.bf16.xpose.msra.mxu0 0
        %3866 = vmatprep.subr.bf16.mxu0 0
        %3867 = vmatpush1.bf16.xpose.msra.mxu0 0
        %3868 = vmatprep.subr.bf16.mxu0 0
        %3869 = vmatpush1.bf16.xpose.msra.mxu0 0
        %3870 = vmatprep.subr.bf16.mxu0 0
        %3871 = vmatpush1.bf16.xpose.msra.mxu0 0
        %3872 = vmatprep.subr.bf16.mxu0 0
        %3873 = vmatpush1.bf16.xpose.msra.mxu0 0
        %3874 = vmatprep.subr.bf16.mxu0 0
        %3875 = vmatpush1.bf16.xpose.msra.mxu0 0
        %3876 = vmatprep.mubr.bf16.mxu0 0
        %3877 = vmatmul.mubr.bf16.gmra.mrb[0].mxu0 %v3821
        %v3878 = vpop.f32.mrb[0].mxu0
        %v3879 = vadd.f32 0.0, %v3878
        %v3880 = vpop.f32.mrb[0].mxu0
        %v3881 = vpop.f32.mrb[0].mxu0
        %v3882 = vadd.f32 0.0, %v3881
        %v3883 = vpop.f32.mrb[0].mxu0
        %3884 = vmatprep.mubr.bf16.mxu0 0
        %3885 = vmatmul.mubr.bf16.gmra.mrb[0].mxu0 %v3824
        %v3886 = vpop.f32.mrb[0].mxu0
        %v3887 = vadd.f32 0.0, %v3886
        %v3888 = vpop.f32.mrb[0].mxu0
        %v3889 = vpop.f32.mrb[0].mxu0
        %v3890 = vadd.f32 0.0, %v3889
        %v3891 = vpop.f32.mrb[0].mxu0
        %3892 = vmatprep.mubr.bf16.mxu0 0
        %3893 = vmatmul.mubr.bf16.gmra.mrb[0].mxu0 %v3827
        %v3894 = vpop.f32.mrb[0].mxu0
        %v3895 = vadd.f32 0.0, %v3894
        %v3896 = vpop.f32.mrb[0].mxu0
        %v3897 = vpop.f32.mrb[0].mxu0
        %v3898 = vadd.f32 0.0, %v3897
        %v3899 = vpop.f32.mrb[0].mxu0
        %3900 = vmatprep.mubr.bf16.mxu0 0
        %3901 = vmatmul.mubr.bf16.gmra.mrb[0].mxu0 %v3830
        %v3902 = vpop.f32.mrb[0].mxu0
        %v3903 = vadd.f32 0.0, %v3902
        %v3904 = vpop.f32.mrb[0].mxu0
        %v3905 = vpop.f32.mrb[0].mxu0
        %v3906 = vadd.f32 0.0, %v3905
        %v3907 = vpop.f32.mrb[0].mxu0
        %3908 = vdwg.mxu0
        %v3909 = vsel %vm1401, %v3774, -inf
        %v3910 = vsel %vm1402, %v3777, -inf
        %v3911 = vsel %vm1403, %v3782, -inf
        %v3912 = vsel %vm1404, %v3785, -inf
        %v3913 = vsel %vm1405, %v3790, -inf
        %v3914 = vsel %vm1406, %v3793, -inf
        %v3915 = vsel %vm1407, %v3798, -inf
        %v3916 = vsel %vm1408, %v3801, -inf
        %v3917 = vsel %vm1401, %v3879, -inf
        %v3918 = vsel %vm1402, %v3882, -inf
        %v3919 = vsel %vm1403, %v3887, -inf
        %v3920 = vsel %vm1404, %v3890, -inf
        %v3921 = vsel %vm1405, %v3895, -inf
        %v3922 = vsel %vm1406, %v3898, -inf
        %v3923 = vsel %vm1407, %v3903, -inf
        %v3924 = vsel %vm1408, %v3906, -inf
        %v3925 = vsel %vm481, %v3909, -inf
        %3926 = vmax.xlane.f32.xlu0 %v3925
        %v3927 = vpop.xlane.xlu0 %3926
        %v3928 = vsel %vm481, %v3910, -inf
        %3929 = vmax.xlane.f32.xlu0 %v3928
        %v3930 = vpop.xlane.xlu0 %3929
        %v3931 = vsel %vm481, %v3911, -inf
        %3932 = vmax.xlane.f32.xlu0 %v3931
        %v3933 = vpop.xlane.xlu0 %3932
        %v3934 = vsel %vm481, %v3912, -inf
        %3935 = vmax.xlane.f32.xlu0 %v3934
        %v3936 = vpop.xlane.xlu0 %3935
        %v3937 = vsel %vm481, %v3913, -inf
        %3938 = vmax.xlane.f32.xlu0 %v3937
        %v3939 = vpop.xlane.xlu0 %3938
        %v3940 = vsel %vm481, %v3914, -inf
        %3941 = vmax.xlane.f32.xlu0 %v3940
        %v3942 = vpop.xlane.xlu0 %3941
        %v3943 = vsel %vm481, %v3915, -inf
        %3944 = vmax.xlane.f32.xlu0 %v3943
        %v3945 = vpop.xlane.xlu0 %3944
        %v3946 = vsel %vm481, %v3916, -inf
        %3947 = vmax.xlane.f32.xlu0 %v3946
        %v3948 = vpop.xlane.xlu0 %3947
        %v3949 = vsel %vm481, %v3917, -inf
        %3950 = vmax.xlane.f32.xlu0 %v3949
        %v3951 = vpop.xlane.xlu0 %3950
        %v3952 = vsel %vm481, %v3918, -inf
        %3953 = vmax.xlane.f32.xlu0 %v3952
        %v3954 = vpop.xlane.xlu0 %3953
        %v3955 = vsel %vm481, %v3919, -inf
        %3956 = vmax.xlane.f32.xlu0 %v3955
        %v3957 = vpop.xlane.xlu0 %3956
        %v3958 = vsel %vm481, %v3920, -inf
        %3959 = vmax.xlane.f32.xlu0 %v3958
        %v3960 = vpop.xlane.xlu0 %3959
        %v3961 = vsel %vm481, %v3921, -inf
        %3962 = vmax.xlane.f32.xlu0 %v3961
        %v3963 = vpop.xlane.xlu0 %3962
        %v3964 = vsel %vm481, %v3922, -inf
        %3965 = vmax.xlane.f32.xlu0 %v3964
        %v3966 = vpop.xlane.xlu0 %3965
        %v3967 = vsel %vm481, %v3923, -inf
        %3968 = vmax.xlane.f32.xlu0 %v3967
        %v3969 = vpop.xlane.xlu0 %3968
        %v3970 = vsel %vm481, %v3924, -inf
        %3971 = vmax.xlane.f32.xlu0 %v3970
        %v3972 = vpop.xlane.xlu0 %3971
        %v3973 = vsub.f32 %v3909, %v3927
        %v3974 = vsub.f32 %v3910, %v3930
        %v3975 = vsub.f32 %v3911, %v3933
        %v3976 = vsub.f32 %v3912, %v3936
        %v3977 = vsub.f32 %v3913, %v3939
        %v3978 = vsub.f32 %v3914, %v3942
        %v3979 = vsub.f32 %v3915, %v3945
        %v3980 = vsub.f32 %v3916, %v3948
        %v3981 = vsub.f32 %v3917, %v3951
        %v3982 = vsub.f32 %v3918, %v3954
        %v3983 = vsub.f32 %v3919, %v3957
        %v3984 = vsub.f32 %v3920, %v3960
        %v3985 = vsub.f32 %v3921, %v3963
        %v3986 = vsub.f32 %v3922, %v3966
        %v3987 = vsub.f32 %v3923, %v3969
        %v3988 = vsub.f32 %v3924, %v3972
        %v3989 = vmul.f32 %v3973, 1.442695
        %v3990 = vpow.pop %v3989
        %v3991 = vmul.f32 %v3974, 1.442695
        %v3992 = vpow.pop %v3991
        %v3993 = vmul.f32 %v3975, 1.442695
        %v3994 = vpow.pop %v3993
        %v3995 = vmul.f32 %v3976, 1.442695
        %v3996 = vpow.pop %v3995
        %v3997 = vmul.f32 %v3977, 1.442695
        %v3998 = vpow.pop %v3997
        %v3999 = vmul.f32 %v3978, 1.442695
        %v4000 = vpow.pop %v3999
        %v4001 = vmul.f32 %v3979, 1.442695
        %v4002 = vpow.pop %v4001
        %v4003 = vmul.f32 %v3980, 1.442695
        %v4004 = vpow.pop %v4003
        %v4005 = vmul.f32 %v3981, 1.442695
        %v4006 = vpow.pop %v4005
        %v4007 = vmul.f32 %v3982, 1.442695
        %v4008 = vpow.pop %v4007
        %v4009 = vmul.f32 %v3983, 1.442695
        %v4010 = vpow.pop %v4009
        %v4011 = vmul.f32 %v3984, 1.442695
        %v4012 = vpow.pop %v4011
        %v4013 = vmul.f32 %v3985, 1.442695
        %v4014 = vpow.pop %v4013
        %v4015 = vmul.f32 %v3986, 1.442695
        %v4016 = vpow.pop %v4015
        %v4017 = vmul.f32 %v3987, 1.442695
        %v4018 = vpow.pop %v4017
        %v4019 = vmul.f32 %v3988, 1.442695
        %v4020 = vpow.pop %v4019
        %v4021 = vsel %vm481, %v3990, 0.0
        %4022 = vadd.xlane.f32.xlu0 %v4021
        %v4023 = vpop.xlane.xlu0 %4022
        %v4024 = vsel %vm481, %v3992, 0.0
        %4025 = vadd.xlane.f32.xlu0 %v4024
        %v4026 = vpop.xlane.xlu0 %4025
        %v4027 = vsel %vm481, %v3994, 0.0
        %4028 = vadd.xlane.f32.xlu0 %v4027
        %v4029 = vpop.xlane.xlu0 %4028
        %v4030 = vsel %vm481, %v3996, 0.0
        %4031 = vadd.xlane.f32.xlu0 %v4030
        %v4032 = vpop.xlane.xlu0 %4031
        %v4033 = vsel %vm481, %v3998, 0.0
        %4034 = vadd.xlane.f32.xlu0 %v4033
        %v4035 = vpop.xlane.xlu0 %4034
        %v4036 = vsel %vm481, %v4000, 0.0
        %4037 = vadd.xlane.f32.xlu0 %v4036
        %v4038 = vpop.xlane.xlu0 %4037
        %v4039 = vsel %vm481, %v4002, 0.0
        %4040 = vadd.xlane.f32.xlu0 %v4039
        %v4041 = vpop.xlane.xlu0 %4040
        %v4042 = vsel %vm481, %v4004, 0.0
        %4043 = vadd.xlane.f32.xlu0 %v4042
        %v4044 = vpop.xlane.xlu0 %4043
        %v4045 = vsel %vm481, %v4006, 0.0
        %4046 = vadd.xlane.f32.xlu0 %v4045
        %v4047 = vpop.xlane.xlu0 %4046
        %v4048 = vsel %vm481, %v4008, 0.0
        %4049 = vadd.xlane.f32.xlu0 %v4048
        %v4050 = vpop.xlane.xlu0 %4049
        %v4051 = vsel %vm481, %v4010, 0.0
        %4052 = vadd.xlane.f32.xlu0 %v4051
        %v4053 = vpop.xlane.xlu0 %4052
        %v4054 = vsel %vm481, %v4012, 0.0
        %4055 = vadd.xlane.f32.xlu0 %v4054
        %v4056 = vpop.xlane.xlu0 %4055
        %v4057 = vsel %vm481, %v4014, 0.0
        %4058 = vadd.xlane.f32.xlu0 %v4057
        %v4059 = vpop.xlane.xlu0 %4058
        %v4060 = vsel %vm481, %v4016, 0.0
        %4061 = vadd.xlane.f32.xlu0 %v4060
        %v4062 = vpop.xlane.xlu0 %4061
        %v4063 = vsel %vm481, %v4018, 0.0
        %4064 = vadd.xlane.f32.xlu0 %v4063
        %v4065 = vpop.xlane.xlu0 %4064
        %v4066 = vsel %vm481, %v4020, 0.0
        %4067 = vadd.xlane.f32.xlu0 %v4066
        %v4068 = vpop.xlane.xlu0 %4067
        %v4069 = vrcp.pop %v4023
        %v4070 = vrcp.pop %v4026
        %v4071 = vrcp.pop %v4029
        %v4072 = vrcp.pop %v4032
        %v4073 = vrcp.pop %v4035
        %v4074 = vrcp.pop %v4038
        %v4075 = vrcp.pop %v4041
        %v4076 = vrcp.pop %v4044
        %v4077 = vrcp.pop %v4047
        %v4078 = vrcp.pop %v4050
        %v4079 = vrcp.pop %v4053
        %v4080 = vrcp.pop %v4056
        %v4081 = vrcp.pop %v4059
        %v4082 = vrcp.pop %v4062
        %v4083 = vrcp.pop %v4065
        %v4084 = vrcp.pop %v4068
        %v4085 = vmul.f32 %v3990, %v4069
        %v4086 = vmul.f32 %v3992, %v4070
        %v4087 = vmul.f32 %v3994, %v4071
        %v4088 = vmul.f32 %v3996, %v4072
        %v4089 = vmul.f32 %v3998, %v4073
        %v4090 = vmul.f32 %v4000, %v4074
        %v4091 = vmul.f32 %v4002, %v4075
        %v4092 = vmul.f32 %v4004, %v4076
        %v4093 = vmul.f32 %v4006, %v4077
        %v4094 = vmul.f32 %v4008, %v4078
        %v4095 = vmul.f32 %v4010, %v4079
        %v4096 = vmul.f32 %v4012, %v4080
        %v4097 = vmul.f32 %v4014, %v4081
        %v4098 = vmul.f32 %v4016, %v4082
        %v4099 = vmul.f32 %v4018, %v4083
        %v4100 = vmul.f32 %v4020, %v4084
        %v4101 = vpack.c.bf16 %v4086, %v4085
        %v4102 = vpack.c.bf16 %v4088, %v4087
        %v4103 = vpack.c.bf16 %v4090, %v4089
        %v4104 = vpack.c.bf16 %v4092, %v4091
        %v4105 = vpack.c.bf16 %v4094, %v4093
        %v4106 = vpack.c.bf16 %v4096, %v4095
        %v4107 = vpack.c.bf16 %v4098, %v4097
        %v4108 = vpack.c.bf16 %v4100, %v4099
        %4109 = vrot.lane.b32.xlu0 %v1168, 112
        %v4110 = vpop.permute.xlu0 %4109
        %4111 = vrot.lane.b32.xlu0 %v1170, 112
        %v4112 = vpop.permute.xlu0 %4111
        %4113 = vrot.lane.b32.xlu0 %v1172, 112
        %v4114 = vpop.permute.xlu0 %4113
        %4115 = vrot.lane.b32.xlu0 %v1174, 112
        %v4116 = vpop.permute.xlu0 %4115
        %v4122 = vsel %vm481, %v4101, 0
        %v4125 = vsel %vm481, %v4102, 0
        %v4128 = vsel %vm481, %v4103, 0
        %v4131 = vsel %vm481, %v4104, 0
        %4133 = vmatprep.subr.bf16.mxu0 0
        %4134 = vmatpush1.bf16.msra.mxu0 %v4110
        %4135 = vmatprep.subr.bf16.mxu0 0
        %4136 = vmatpush1.bf16.msra.mxu0 %v4112
        %4137 = vmatprep.subr.bf16.mxu0 0
        %4138 = vmatpush1.bf16.msra.mxu0 %v4114
        %4139 = vmatprep.subr.bf16.mxu0 0
        %4140 = vmatpush1.bf16.msra.mxu0 %v4116
        %4141 = vmatprep.subr.bf16.mxu0 0
        %4142 = vmatpush1.bf16.msra.mxu0 0
        %4143 = vmatprep.subr.bf16.mxu0 0
        %4144 = vmatpush1.bf16.msra.mxu0 0
        %4145 = vmatprep.subr.bf16.mxu0 0
        %4146 = vmatpush1.bf16.msra.mxu0 0
        %4147 = vmatprep.subr.bf16.mxu0 0
        %4148 = vmatpush1.bf16.msra.mxu0 0
        %4149 = vmatprep.subr.bf16.mxu0 0
        %4150 = vmatpush1.bf16.msra.mxu0 0
        %4151 = vmatprep.subr.bf16.mxu0 0
        %4152 = vmatpush1.bf16.msra.mxu0 0
        %4153 = vmatprep.subr.bf16.mxu0 0
        %4154 = vmatpush1.bf16.msra.mxu0 0
        %4155 = vmatprep.subr.bf16.mxu0 0
        %4156 = vmatpush1.bf16.msra.mxu0 0
        %4157 = vmatprep.subr.bf16.mxu0 0
        %4158 = vmatpush1.bf16.msra.mxu0 0
        %4159 = vmatprep.subr.bf16.mxu0 0
        %4160 = vmatpush1.bf16.msra.mxu0 0
        %4161 = vmatprep.subr.bf16.mxu0 0
        %4162 = vmatpush1.bf16.msra.mxu0 0
        %4163 = vmatprep.subr.bf16.mxu0 0
        %4164 = vmatpush1.bf16.msra.mxu0 0
        %4165 = vmatprep.mubr.bf16.mxu0 0
        %4166 = vmatmul.mubr.bf16.gmra.mrb[0].mxu0 %v4122
        %v4167 = vpop.f32.mrb[0].mxu0
        %v4168 = vadd.f32 0.0, %v4167
        %v4169 = vpop.f32.mrb[0].mxu0
        %v4170 = vpop.f32.mrb[0].mxu0
        %v4171 = vadd.f32 0.0, %v4170
        %v4172 = vpop.f32.mrb[0].mxu0
        %4173 = vmatprep.mubr.bf16.mxu0 0
        %4174 = vmatmul.mubr.bf16.gmra.mrb[0].mxu0 %v4125
        %v4175 = vpop.f32.mrb[0].mxu0
        %v4176 = vadd.f32 0.0, %v4175
        %v4177 = vpop.f32.mrb[0].mxu0
        %v4178 = vpop.f32.mrb[0].mxu0
        %v4179 = vadd.f32 0.0, %v4178
        %v4180 = vpop.f32.mrb[0].mxu0
        %4181 = vmatprep.mubr.bf16.mxu0 0
        %4182 = vmatmul.mubr.bf16.gmra.mrb[0].mxu0 %v4128
        %v4183 = vpop.f32.mrb[0].mxu0
        %v4184 = vadd.f32 0.0, %v4183
        %v4185 = vpop.f32.mrb[0].mxu0
        %v4186 = vpop.f32.mrb[0].mxu0
        %v4187 = vadd.f32 0.0, %v4186
        %v4188 = vpop.f32.mrb[0].mxu0
        %4189 = vmatprep.mubr.bf16.mxu0 0
        %4190 = vmatmul.mubr.bf16.gmra.mrb[0].mxu0 %v4131
        %v4191 = vpop.f32.mrb[0].mxu0
        %v4192 = vadd.f32 0.0, %v4191
        %v4193 = vpop.f32.mrb[0].mxu0
        %v4194 = vpop.f32.mrb[0].mxu0
        %v4195 = vadd.f32 0.0, %v4194
        %v4196 = vpop.f32.mrb[0].mxu0
        %4197 = vdwg.mxu0
        %4198 = vrot.lane.b32.xlu0 %v1176, 112
        %v4199 = vpop.permute.xlu0 %4198
        %4200 = vrot.lane.b32.xlu0 %v1178, 112
        %v4201 = vpop.permute.xlu0 %4200
        %4202 = vrot.lane.b32.xlu0 %v1180, 112
        %v4203 = vpop.permute.xlu0 %4202
        %4204 = vrot.lane.b32.xlu0 %v1182, 112
        %v4205 = vpop.permute.xlu0 %4204
        %v4211 = vsel %vm481, %v4105, 0
        %v4214 = vsel %vm481, %v4106, 0
        %v4217 = vsel %vm481, %v4107, 0
        %v4220 = vsel %vm481, %v4108, 0
        %4222 = vmatprep.subr.bf16.mxu0 0
        %4223 = vmatpush1.bf16.msra.mxu0 %v4199
        %4224 = vmatprep.subr.bf16.mxu0 0
        %4225 = vmatpush1.bf16.msra.mxu0 %v4201
        %4226 = vmatprep.subr.bf16.mxu0 0
        %4227 = vmatpush1.bf16.msra.mxu0 %v4203
        %4228 = vmatprep.subr.bf16.mxu0 0
        %4229 = vmatpush1.bf16.msra.mxu0 %v4205
        %4230 = vmatprep.subr.bf16.mxu0 0
        %4231 = vmatpush1.bf16.msra.mxu0 0
        %4232 = vmatprep.subr.bf16.mxu0 0
        %4233 = vmatpush1.bf16.msra.mxu0 0
        %4234 = vmatprep.subr.bf16.mxu0 0
        %4235 = vmatpush1.bf16.msra.mxu0 0
        %4236 = vmatprep.subr.bf16.mxu0 0
        %4237 = vmatpush1.bf16.msra.mxu0 0
        %4238 = vmatprep.subr.bf16.mxu0 0
        %4239 = vmatpush1.bf16.msra.mxu0 0
        %4240 = vmatprep.subr.bf16.mxu0 0
        %4241 = vmatpush1.bf16.msra.mxu0 0
        %4242 = vmatprep.subr.bf16.mxu0 0
        %4243 = vmatpush1.bf16.msra.mxu0 0
        %4244 = vmatprep.subr.bf16.mxu0 0
        %4245 = vmatpush1.bf16.msra.mxu0 0
        %4246 = vmatprep.subr.bf16.mxu0 0
        %4247 = vmatpush1.bf16.msra.mxu0 0
        %4248 = vmatprep.subr.bf16.mxu0 0
        %4249 = vmatpush1.bf16.msra.mxu0 0
        %4250 = vmatprep.subr.bf16.mxu0 0
        %4251 = vmatpush1.bf16.msra.mxu0 0
        %4252 = vmatprep.subr.bf16.mxu0 0
        %4253 = vmatpush1.bf16.msra.mxu0 0
        %4254 = vmatprep.mubr.bf16.mxu0 0
        %4255 = vmatmul.mubr.bf16.gmra.mrb[0].mxu0 %v4211
        %v4256 = vpop.f32.mrb[0].mxu0
        %v4257 = vadd.f32 0.0, %v4256
        %v4258 = vpop.f32.mrb[0].mxu0
        %v4259 = vpop.f32.mrb[0].mxu0
        %v4260 = vadd.f32 0.0, %v4259
        %v4261 = vpop.f32.mrb[0].mxu0
        %4262 = vmatprep.mubr.bf16.mxu0 0
        %4263 = vmatmul.mubr.bf16.gmra.mrb[0].mxu0 %v4214
        %v4264 = vpop.f32.mrb[0].mxu0
        %v4265 = vadd.f32 0.0, %v4264
        %v4266 = vpop.f32.mrb[0].mxu0
        %v4267 = vpop.f32.mrb[0].mxu0
        %v4268 = vadd.f32 0.0, %v4267
        %v4269 = vpop.f32.mrb[0].mxu0
        %4270 = vmatprep.mubr.bf16.mxu0 0
        %4271 = vmatmul.mubr.bf16.gmra.mrb[0].mxu0 %v4217
        %v4272 = vpop.f32.mrb[0].mxu0
        %v4273 = vadd.f32 0.0, %v4272
        %v4274 = vpop.f32.mrb[0].mxu0
        %v4275 = vpop.f32.mrb[0].mxu0
        %v4276 = vadd.f32 0.0, %v4275
        %v4277 = vpop.f32.mrb[0].mxu0
        %4278 = vmatprep.mubr.bf16.mxu0 0
        %4279 = vmatmul.mubr.bf16.gmra.mrb[0].mxu0 %v4220
        %v4280 = vpop.f32.mrb[0].mxu0
        %v4281 = vadd.f32 0.0, %v4280
        %v4282 = vpop.f32.mrb[0].mxu0
        %v4283 = vpop.f32.mrb[0].mxu0
        %v4284 = vadd.f32 0.0, %v4283
        %v4285 = vpop.f32.mrb[0].mxu0
        %4286 = vdwg.mxu0
        %v4287 = vpack.c.bf16 %v4171, %v4168
        %v4288 = vpack.c.bf16 %v4179, %v4176
        %v4289 = vpack.c.bf16 %v4187, %v4184
        %v4290 = vpack.c.bf16 %v4195, %v4192
        %v4291 = vpack.c.bf16 %v4260, %v4257
        %v4292 = vpack.c.bf16 %v4268, %v4265
        %v4293 = vpack.c.bf16 %v4276, %v4273
        %v4294 = vpack.c.bf16 %v4284, %v4281
        %v4295 = vld [vmem:[#allocation7 + $0x90] sm:$0xff]
        %v4296 = vld [vmem:[#allocation7 + $0x98] sm:$0xff]
        %v4297 = vld [vmem:[#allocation7 + $0xa0] sm:$0xff]
        %v4298 = vld [vmem:[#allocation7 + $0xa8] sm:$0xff]
        %v4299 = vld [vmem:[#allocation7 + $0xb0] sm:$0xff]
        %v4300 = vld [vmem:[#allocation7 + $0xb8] sm:$0xff]
        %v4307 = vunpack.c.l.b16 %v4295
        %v4308 = vunpack.c.h.b16 %v4295
        %v4309 = vunpack.c.l.b16 %v4296
        %v4310 = vunpack.c.h.b16 %v4296
        %v4311 = vunpack.c.l.b16 %v4297
        %v4312 = vunpack.c.h.b16 %v4297
        %v4313 = vunpack.c.l.b16 %v4298
        %v4314 = vunpack.c.h.b16 %v4298
        %v4315 = vunpack.c.l.b16 %v4299
        %v4316 = vunpack.c.h.b16 %v4299
        %v4317 = vunpack.c.l.b16 %v4300
        %v4318 = vunpack.c.h.b16 %v4300
        %v4319 = vpack.c.b16 %v4309, %v4307
        %v4320 = vpack.c.b16 %v4310, %v4308
        %v4321 = vpack.c.b16 %v4313, %v4311
        %v4322 = vpack.c.b16 %v4314, %v4312
        %v4323 = vpack.c.b16 %v4317, %v4315
        %v4324 = vpack.c.b16 %v4318, %v4316
        %v4332 = vsel %vm1214, %v4287, 0
        %v4335 = vsel %vm1214, %v4288, 0
        %v4338 = vsel %vm1214, %v4289, 0
        %v4341 = vsel %vm1214, %v4290, 0
        %v4344 = vsel %vm1214, %v4291, 0
        %v4347 = vsel %vm1214, %v4292, 0
        %v4350 = vsel %vm1214, %v4293, 0
        %v4353 = vsel %vm1214, %v4294, 0
        %4355 = vmatprep.subr.bf16.mxu0 %v4320
        %4356 = vmatpush1.bf16.msra.mxu0 %v4319
        %4357 = vmatprep.subr.bf16.mxu0 %v4322
        %4358 = vmatpush1.bf16.msra.mxu0 %v4321
        %4359 = vmatprep.subr.bf16.mxu0 %v4324
        %4360 = vmatpush1.bf16.msra.mxu0 %v4323
        %4361 = vmatprep.subr.bf16.mxu0 0
        %4362 = vmatpush1.bf16.msra.mxu0 0
        %4363 = vmatprep.subr.bf16.mxu0 0
        %4364 = vmatpush1.bf16.msra.mxu0 0
        %4365 = vmatprep.subr.bf16.mxu0 0
        %4366 = vmatpush1.bf16.msra.mxu0 0
        %4367 = vmatprep.subr.bf16.mxu0 0
        %4368 = vmatpush1.bf16.msra.mxu0 0
        %4369 = vmatprep.subr.bf16.mxu0 0
        %4370 = vmatpush1.bf16.msra.mxu0 0
        %4371 = vmatprep.subr.bf16.mxu0 0
        %4372 = vmatpush1.bf16.msra.mxu0 0
        %4373 = vmatprep.subr.bf16.mxu0 0
        %4374 = vmatpush1.bf16.msra.mxu0 0
        %4375 = vmatprep.subr.bf16.mxu0 0
        %4376 = vmatpush1.bf16.msra.mxu0 0
        %4377 = vmatprep.subr.bf16.mxu0 0
        %4378 = vmatpush1.bf16.msra.mxu0 0
        %4379 = vmatprep.subr.bf16.mxu0 0
        %4380 = vmatpush1.bf16.msra.mxu0 0
        %4381 = vmatprep.subr.bf16.mxu0 0
        %4382 = vmatpush1.bf16.msra.mxu0 0
        %4383 = vmatprep.subr.bf16.mxu0 0
        %4384 = vmatpush1.bf16.msra.mxu0 0
        %4385 = vmatprep.subr.bf16.mxu0 0
        %4386 = vmatpush1.bf16.msra.mxu0 0
        %4387 = vmatprep.mubr.bf16.mxu0 0
        %4388 = vmatmul.mubr.bf16.gmra.mrb[0].mxu0 %v4332
        %v4389 = vpop.f32.mrb[0].mxu0
        %v4390 = vadd.f32 0.0, %v4389
        %v4391 = vpop.f32.mrb[0].mxu0
        %v4392 = vadd.f32 0.0, %v4391
        %v4393 = vpop.f32.mrb[0].mxu0
        %v4394 = vadd.f32 0.0, %v4393
        %v4395 = vpop.f32.mrb[0].mxu0
        %v4396 = vadd.f32 0.0, %v4395
        %4397 = vmatprep.mubr.bf16.mxu0 0
        %4398 = vmatmul.mubr.bf16.gmra.mrb[0].mxu0 %v4335
        %v4399 = vpop.f32.mrb[0].mxu0
        %v4400 = vadd.f32 0.0, %v4399
        %v4401 = vpop.f32.mrb[0].mxu0
        %v4402 = vadd.f32 0.0, %v4401
        %v4403 = vpop.f32.mrb[0].mxu0
        %v4404 = vadd.f32 0.0, %v4403
        %v4405 = vpop.f32.mrb[0].mxu0
        %v4406 = vadd.f32 0.0, %v4405
        %4407 = vmatprep.mubr.bf16.mxu0 0
        %4408 = vmatmul.mubr.bf16.gmra.mrb[0].mxu0 %v4338
        %v4409 = vpop.f32.mrb[0].mxu0
        %v4410 = vadd.f32 0.0, %v4409
        %v4411 = vpop.f32.mrb[0].mxu0
        %v4412 = vadd.f32 0.0, %v4411
        %v4413 = vpop.f32.mrb[0].mxu0
        %v4414 = vadd.f32 0.0, %v4413
        %v4415 = vpop.f32.mrb[0].mxu0
        %v4416 = vadd.f32 0.0, %v4415
        %4417 = vmatprep.mubr.bf16.mxu0 0
        %4418 = vmatmul.mubr.bf16.gmra.mrb[0].mxu0 %v4341
        %v4419 = vpop.f32.mrb[0].mxu0
        %v4420 = vadd.f32 0.0, %v4419
        %v4421 = vpop.f32.mrb[0].mxu0
        %v4422 = vadd.f32 0.0, %v4421
        %v4423 = vpop.f32.mrb[0].mxu0
        %v4424 = vadd.f32 0.0, %v4423
        %v4425 = vpop.f32.mrb[0].mxu0
        %v4426 = vadd.f32 0.0, %v4425
        %4427 = vmatprep.mubr.bf16.mxu0 0
        %4428 = vmatmul.mubr.bf16.gmra.mrb[0].mxu0 %v4344
        %v4429 = vpop.f32.mrb[0].mxu0
        %v4430 = vadd.f32 0.0, %v4429
        %v4431 = vpop.f32.mrb[0].mxu0
        %v4432 = vadd.f32 0.0, %v4431
        %v4433 = vpop.f32.mrb[0].mxu0
        %v4434 = vadd.f32 0.0, %v4433
        %v4435 = vpop.f32.mrb[0].mxu0
        %v4436 = vadd.f32 0.0, %v4435
        %4437 = vmatprep.mubr.bf16.mxu0 0
        %4438 = vmatmul.mubr.bf16.gmra.mrb[0].mxu0 %v4347
        %v4439 = vpop.f32.mrb[0].mxu0
        %v4440 = vadd.f32 0.0, %v4439
        %v4441 = vpop.f32.mrb[0].mxu0
        %v4442 = vadd.f32 0.0, %v4441
        %v4443 = vpop.f32.mrb[0].mxu0
        %v4444 = vadd.f32 0.0, %v4443
        %v4445 = vpop.f32.mrb[0].mxu0
        %v4446 = vadd.f32 0.0, %v4445
        %4447 = vmatprep.mubr.bf16.mxu0 0
        %4448 = vmatmul.mubr.bf16.gmra.mrb[0].mxu0 %v4350
        %v4449 = vpop.f32.mrb[0].mxu0
        %v4450 = vadd.f32 0.0, %v4449
        %v4451 = vpop.f32.mrb[0].mxu0
        %v4452 = vadd.f32 0.0, %v4451
        %v4453 = vpop.f32.mrb[0].mxu0
        %v4454 = vadd.f32 0.0, %v4453
        %v4455 = vpop.f32.mrb[0].mxu0
        %v4456 = vadd.f32 0.0, %v4455
        %4457 = vmatprep.mubr.bf16.mxu0 0
        %4458 = vmatmul.mubr.bf16.gmra.mrb[0].mxu0 %v4353
        %v4459 = vpop.f32.mrb[0].mxu0
        %v4460 = vadd.f32 0.0, %v4459
        %v4461 = vpop.f32.mrb[0].mxu0
        %v4462 = vadd.f32 0.0, %v4461
        %v4463 = vpop.f32.mrb[0].mxu0
        %v4464 = vadd.f32 0.0, %v4463
        %v4465 = vpop.f32.mrb[0].mxu0
        %v4466 = vadd.f32 0.0, %v4465
        %4467 = vdwg.mxu0
        %v4468 = vadd.f32 %v3667, %v4390
        %v4469 = vadd.f32 %v3668, %v4392
        %v4470 = vadd.f32 %v3669, %v4394
        %v4471 = vadd.f32 %v3670, %v4396
        %v4472 = vadd.f32 %v3671, %v4400
        %v4473 = vadd.f32 %v3672, %v4402
        %v4474 = vadd.f32 %v3673, %v4404
        %v4475 = vadd.f32 %v3674, %v4406
        %v4476 = vadd.f32 %v3675, %v4410
        %v4477 = vadd.f32 %v3676, %v4412
        %v4478 = vadd.f32 %v3677, %v4414
        %v4479 = vadd.f32 %v3678, %v4416
        %v4480 = vadd.f32 %v3679, %v4420
        %v4481 = vadd.f32 %v3680, %v4422
        %v4482 = vadd.f32 %v3681, %v4424
        %v4483 = vadd.f32 %v3682, %v4426
        %v4484 = vadd.f32 %v3683, %v4430
        %v4485 = vadd.f32 %v3684, %v4432
        %v4486 = vadd.f32 %v3685, %v4434
        %v4487 = vadd.f32 %v3686, %v4436
        %v4488 = vadd.f32 %v3687, %v4440
        %v4489 = vadd.f32 %v3688, %v4442
        %v4490 = vadd.f32 %v3689, %v4444
        %v4491 = vadd.f32 %v3690, %v4446
        %v4492 = vadd.f32 %v3691, %v4450
        %v4493 = vadd.f32 %v3692, %v4452
        %v4494 = vadd.f32 %v3693, %v4454
        %v4495 = vadd.f32 %v3694, %v4456
        %v4496 = vadd.f32 %v3695, %v4460
        %v4497 = vadd.f32 %v3696, %v4462
        %v4498 = vadd.f32 %v3697, %v4464
        %v4499 = vadd.f32 %v3698, %v4466
        %4500 = vst [vmem:[%s245] sm:$0xff] %v4468
        %4501 = vst.msk [vmem:[%s245 + $0x8] sm:$0xff] %vm481, %v4469
        %4502 = vst [vmem:[%s245 + $0x10] sm:$0xff] %v4470
        %4503 = vst.msk [vmem:[%s245 + $0x18] sm:$0xff] %vm481, %v4471
        %4504 = vst [vmem:[%s245 + $0x20] sm:$0xff] %v4472
        %4505 = vst.msk [vmem:[%s245 + $0x28] sm:$0xff] %vm481, %v4473
        %4506 = vst [vmem:[%s245 + $0x30] sm:$0xff] %v4474
        %4507 = vst.msk [vmem:[%s245 + $0x38] sm:$0xff] %vm481, %v4475
        %4508 = vst [vmem:[%s245 + $0x40] sm:$0xff] %v4476
        %4509 = vst.msk [vmem:[%s245 + $0x48] sm:$0xff] %vm481, %v4477
        %4510 = vst [vmem:[%s245 + $0x50] sm:$0xff] %v4478
        %4511 = vst.msk [vmem:[%s245 + $0x58] sm:$0xff] %vm481, %v4479
        %4512 = vst [vmem:[%s245 + $0x60] sm:$0xff] %v4480
        %4513 = vst.msk [vmem:[%s245 + $0x68] sm:$0xff] %vm481, %v4481
        %4514 = vst [vmem:[%s245 + $0x70] sm:$0xff] %v4482
        %4515 = vst.msk [vmem:[%s245 + $0x78] sm:$0xff] %vm481, %v4483
        %4516 = vst [vmem:[%s245 + $0x80] sm:$0xff] %v4484
        %4517 = vst.msk [vmem:[%s245 + $0x88] sm:$0xff] %vm481, %v4485
        %4518 = vst [vmem:[%s245 + $0x90] sm:$0xff] %v4486
        %4519 = vst.msk [vmem:[%s245 + $0x98] sm:$0xff] %vm481, %v4487
        %4520 = vst [vmem:[%s245 + $0xa0] sm:$0xff] %v4488
        %4521 = vst.msk [vmem:[%s245 + $0xa8] sm:$0xff] %vm481, %v4489
        %4522 = vst [vmem:[%s245 + $0xb0] sm:$0xff] %v4490
        %4523 = vst.msk [vmem:[%s245 + $0xb8] sm:$0xff] %vm481, %v4491
        %4524 = vst [vmem:[%s245 + $0xc0] sm:$0xff] %v4492
        %4525 = vst.msk [vmem:[%s245 + $0xc8] sm:$0xff] %vm481, %v4493
        %4526 = vst [vmem:[%s245 + $0xd0] sm:$0xff] %v4494
        %4527 = vst.msk [vmem:[%s245 + $0xd8] sm:$0xff] %vm481, %v4495
        %4528 = vst [vmem:[%s245 + $0xe0] sm:$0xff] %v4496
        %4529 = vst.msk [vmem:[%s245 + $0xe8] sm:$0xff] %vm481, %v4497
        %4530 = vst [vmem:[%s245 + $0xf0] sm:$0xff] %v4498
        %4531 = vst.msk [vmem:[%s245 + $0xf8] sm:$0xff] %vm481, %v4499
        %s4532 = sand.u32 %s119, 1
        %s4533 = scalar_lea.sflag [#allocation4], %s4532
        %s4534 = sand.u32 %s119, 1
        %s4535 = smul.addr %s4534, 256
        %s4536 = scalar_lea.vmem [#allocation8], %s4535
        // Predicated region
        $region49: #{tpu_custom_call.1} parent=35 // pred_check
          %p4537 = pneg %p129
        $region50: #{tpu_custom_call.1} parent=35 // pred_check_branch
          %4539 = sbr.rel (%p4537) target = $region52
        $region51: #{tpu_custom_call.1} parent=35 // pred_region
          %s4540 = smul.u32 2, %s22
          %s4542 = ssub.s32 4096, 4096
          %4543 = vsyncadd %s4533, %s4542
          %s4544 = smul.addr %s4540, 16
          %s4545 = smul.addr %s4544, 128
          %s4546 = scalar_lea.hbm %s4, %s4545
          %s4547 = sshll.u32 %s4536, 4
          %s4548 = int_to_ptr.vmem [resolvable:$true] %s4547
          %4553 = dma.vmem_to_hbm [thread:$0]  %s4548, 4096, %s4546, %s4533, 256, 256, 16
        $region52: #{tpu_custom_call.1} parent=35 // pred_fallthru
          _
      $region36: #{tpu_custom_call.1} parent=5 // pred_fallthru
        _
      %p4554 = scmp.le.s32.totalorder 2, %s17
      // Predicated region
      $region53: #{tpu_custom_call.1} parent=5 // pred_check
        %p4555 = pneg %p4554
      $region54: #{tpu_custom_call.1} parent=5 // pred_check_branch
        %4557 = sbr.rel (%p4555) target = $region56
      $region55: #{tpu_custom_call.1} parent=5 // pred_region
        %s4558 = ssub.s32 %s17, 2
        // Predicated region
        $region57: #{tpu_custom_call.1} parent=55 // pred_check
          %p4559 = pneg %p135
        $region58: #{tpu_custom_call.1} parent=55 // pred_check_branch
          %4561 = sbr.rel (%p4559) target = $region60
        $region59: #{tpu_custom_call.1} parent=55 // pred_region
          %s4562 = sand.u32 %s120, 1
          %s4563 = scalar_lea.sflag [#allocation4], %s4562
          %s4564 = sand.u32 %s120, 1
          %s4565 = smul.addr %s4564, 256
          %s4566 = scalar_lea.vmem [#allocation8], %s4565
          %4567 = dma.done %s4563, 4096
        $region60: #{tpu_custom_call.1} parent=55 // pred_fallthru
          _
      $region56: #{tpu_custom_call.1} parent=5 // pred_fallthru
        _
    $region6: #{tpu_custom_call.1} parent=1 // loop_footer
      %s21 = sadd.s32 1, %s17
    $region7: #{tpu_custom_call.1} parent=1 // loop_footer_branch
      %16 = sbr.rel target = $region3
    $region8: #{tpu_custom_call.1} parent=1 // loop_exit
      _
    %4568 = vsyncpa [#allocation3], 1
    %s4569 = scalar_lea.sflag [#allocation3], 1
    %4570 = vsyncpa %s4569, 1
    %4571 = vsyncpa [#allocation6], 1
    %4572 = vsyncpa [#allocation4], 1
    %s4573 = scalar_lea.sflag [#allocation4], 1
    %4574 = vsyncpa %s4573, 1

</llo_original>
